<compile_context>
chip_gen: v5e
topology: v5e:2x2
jax: 0.10.0
libtpu: 0.0.40
codegen_flags: <defaults>
</compile_context>

<pallas_src>
import jax
import jax.numpy as jnp
from jax.experimental import pallas as pl
from jax.experimental.pallas import tpu as pltpu

EPS = 1e-5
D_IN = 768
D_OUT = 3072
TN = 768                         # output-column tile -> 4 tiles total
GRID_I = 2                       # leading ("parallel") axis, v7x megacore split
GRID_J = D_OUT // TN // GRID_I   # trailing ("arbitrary") axis, per-core loop
_INV_SQRT2 = 0.7071067811865476


def fused_kernel(a_ref, b_ref, w_ref, bias_ref, o_ref, xn_ref):
    # Residual add + LayerNorm + bf16 cast, computed once per core (first
    # iteration of the per-core trailing axis) into VMEM scratch.  LayerNorm
    # affine (gamma/beta) was folded into W/bias on the host.
    @pl.when(pl.program_id(1) == 0)
    def _():
        x = a_ref[...] + b_ref[...]                              # [Np, 768] f32
        inv_d = jnp.float32(1.0 / D_IN)
        s = jnp.sum(x, axis=-1, keepdims=True)
        sq = jnp.sum(x * x, axis=-1, keepdims=True)
        mean = s * inv_d
        var = sq * inv_d - mean * mean
        xn = (x - mean) * jax.lax.rsqrt(var + EPS)
        xn_ref[...] = xn.astype(jnp.bfloat16)

    # Linear column tile on the MXU: bf16 x bf16 -> f32 accumulate.
    y = jnp.dot(xn_ref[...], w_ref[...],
                preferred_element_type=jnp.float32)              # [Np, TN]
    y = y + bias_ref[...]

    # Exact GELU (approximate='none'): 0.5*x*(1+erf(x/sqrt(2)))
    y = 0.5 * y * (1.0 + jax.lax.erf(y * jnp.float32(_INV_SQRT2)))

    # Dropout p=0.0 -> identity
    o_ref[...] = y.astype(o_ref.dtype)


def prepare_params(w, bias, gamma, beta):
    """One-time parameter preparation (NOT on the per-call path).

    w: [768, 3072] f32 (torch Linear weight, pre-transposed), bias: [3072],
    gamma/beta: [768].  Folds the LayerNorm affine into the linear layer:
        (xn*gamma + beta) @ W + b == xn @ (gamma[:,None]*W) + (beta @ W + b)
    and casts the folded weight to bf16.
    """
    w_folded = (gamma[:, None] * w).astype(jnp.bfloat16)            # [768, 3072]
    b_folded = (beta @ w + bias).reshape(1, D_OUT).astype(jnp.float32)
    return w_folded, b_folded


def fused_forward(x280, x294, w_folded, b_folded):
    """x280/x294: [B,H,W,768] f32; w_folded: [768,3072] bf16 (cached);
    b_folded: [1,3072] f32 (cached)."""
    B, H, W, C = x280.shape
    assert C == D_IN and D_OUT == GRID_I * GRID_J * TN
    n_tok = B * H * W
    n_pad = ((n_tok + 7) // 8) * 8       # 49 -> 56 (full sublane tiles)
    pad = n_pad - n_tok

    a2d = jnp.pad(x280.reshape(n_tok, C).astype(jnp.float32), ((0, pad), (0, 0)))
    b2d = jnp.pad(x294.reshape(n_tok, C).astype(jnp.float32), ((0, pad), (0, 0)))

    cost = pl.CostEstimate(
        flops=2 * n_tok * D_IN * D_OUT,
        transcendentals=n_tok * D_OUT,
        bytes_accessed=(D_IN * D_OUT * 2          # bf16 weight
                        + 2 * n_pad * D_IN * 4    # two activation inputs
                        + n_pad * D_OUT * 4       # output
                        + D_OUT * 4),             # bias
    )

    # column-tile index for grid point (i, j)
    col = lambda i, j: i * GRID_J + j

    out2d = pl.pallas_call(
        fused_kernel,
        out_shape=jax.ShapeDtypeStruct((n_pad, D_OUT), jnp.float32),
        grid=(GRID_I, GRID_J),
        in_specs=[
            pl.BlockSpec((n_pad, C), lambda i, j: (0, 0)),        # x280 (resident)
            pl.BlockSpec((n_pad, C), lambda i, j: (0, 0)),        # x294 (resident)
            pl.BlockSpec((C, TN), lambda i, j: (0, col(i, j))),   # weight tile
            pl.BlockSpec((1, TN), lambda i, j: (0, col(i, j))),   # bias tile
        ],
        out_specs=pl.BlockSpec((n_pad, TN), lambda i, j: (0, col(i, j))),
        scratch_shapes=[pltpu.VMEM((n_pad, C), jnp.bfloat16)],    # cached xn
        compiler_params=pltpu.CompilerParams(
            dimension_semantics=("parallel", "arbitrary")),
        cost_estimate=cost,
    )(a2d, b2d, w_folded, b_folded)

    return out2d[:n_tok].reshape(B, H, W, D_OUT)


if __name__ == "__main__":
    key = jax.random.PRNGKey(0)
    k1, k2, k3, k4 = jax.random.split(key, 4)

    # inputs, same shapes as the PyTorch module
    x280 = jax.random.normal(k1, (1, 7, 7, D_IN), dtype=jnp.float32)
    x294 = jax.random.normal(k2, (1, 7, 7, D_IN), dtype=jnp.float32)

    # deterministic synthetic parameters
    # torch Linear weight is [out, in]; we keep it pre-transposed [in, out]
    w = (jax.random.normal(k3, (D_IN, D_OUT), dtype=jnp.float32)
         * (1.0 / jnp.sqrt(D_IN)))
    bias = jax.random.normal(k4, (D_OUT,), dtype=jnp.float32) * 0.01
    gamma = jnp.ones((D_IN,), dtype=jnp.float32)
    beta = jnp.zeros((D_IN,), dtype=jnp.float32)

    # One-time parameter prep (cached bf16 weight + folded bias); the forward
    # path only consumes the cached tensors.
    w_folded, b_folded = prepare_params(w, bias, gamma, beta)
    w_folded, b_folded = jax.block_until_ready((w_folded, b_folded))

    fwd = jax.jit(fused_forward)
    out = fwd(x280, x294, w_folded, b_folded)
    jax.block_until_ready(out)

    # pure-f32 reference (kernel uses bf16 weights/activations -> relaxed tol)
    xs = x280 + x294
    mean = jnp.mean(xs, axis=-1, keepdims=True)
    var = jnp.mean((xs - mean) ** 2, axis=-1, keepdims=True)
    xn = (xs - mean) / jnp.sqrt(var + EPS) * gamma + beta
    yref = xn.reshape(-1, D_IN) @ w + bias
    yref = 0.5 * yref * (1.0 + jax.lax.erf(yref / jnp.sqrt(2.0)))
    yref = yref.reshape(1, 7, 7, D_OUT)

    max_err = jnp.max(jnp.abs(out - yref))
    assert max_err < 3e-2, f"mismatch vs reference, max abs err = {max_err}"
    print("KERNEL_OK")
</pallas_src>

<mosaic_0001>
module attributes {stable_mosaic.version = 11 : i64} {
  func.func @fused_kernel(%arg0: i32, %arg1: i32, %arg2: memref<56x768xf32, #tpu.memory_space<vmem>>, %arg3: memref<56x768xf32, #tpu.memory_space<vmem>>, %arg4: memref<768x768xbf16, #tpu.memory_space<vmem>>, %arg5: memref<1x768xf32, #tpu.memory_space<vmem>>, %arg6: memref<56x768xf32, #tpu.memory_space<vmem>>, %arg7: memref<56x768xbf16, #tpu.memory_space<vmem>>) attributes {dimension_semantics = [#tpu.dimension_semantics<parallel>, #tpu.dimension_semantics<arbitrary>], iteration_bounds = array<i64: 2, 2>, scalar_prefetch = 0 : i64, scratch_operands = 1 : i64, tpu.core_type = #tpu.core_type<tc>, window_params = [{pipeline_mode = #tpu.pipeline_mode<synchronous>, transform_indices = @transform_0, window_bounds = array<i64: 56, 768>}, {pipeline_mode = #tpu.pipeline_mode<synchronous>, transform_indices = @transform_1, window_bounds = array<i64: 56, 768>}, {transform_indices = @transform_2, window_bounds = array<i64: 768, 768>}, {transform_indices = @transform_3, window_bounds = array<i64: 1, 768>}, {transform_indices = @transform_4, window_bounds = array<i64: 56, 768>}]} {
    %c0_i32 = arith.constant 0 : i32
    %0 = arith.cmpi eq, %arg1, %c0_i32 : i32
    %1 = arith.extui %0 : i1 to i32
    %c0_i32_0 = arith.constant 0 : i32
    %2 = arith.cmpi ne, %1, %c0_i32_0 : i32
    scf.if %2 {
      %c0_11 = arith.constant 0 : index
      %c0_12 = arith.constant 0 : index
      %18 = vector.load %arg2[%c0_11, %c0_12] : memref<56x768xf32, #tpu.memory_space<vmem>>, vector<56x768xf32>
      %c0_13 = arith.constant 0 : index
      %c0_14 = arith.constant 0 : index
      %19 = vector.load %arg3[%c0_13, %c0_14] : memref<56x768xf32, #tpu.memory_space<vmem>>, vector<56x768xf32>
      %20 = arith.addf %18, %19 : vector<56x768xf32>
      %cst_15 = arith.constant dense<0.000000e+00> : vector<56xf32>
      %21 = vector.multi_reduction <add>, %20, %cst_15 [1] : vector<56x768xf32> to vector<56xf32>
      %22 = vector.shape_cast %21 : vector<56xf32> to vector<56x1xf32>
      %23 = arith.mulf %20, %20 : vector<56x768xf32>
      %cst_16 = arith.constant dense<0.000000e+00> : vector<56xf32>
      %24 = vector.multi_reduction <add>, %23, %cst_16 [1] : vector<56x768xf32> to vector<56xf32>
      %25 = vector.shape_cast %24 : vector<56xf32> to vector<56x1xf32>
      %cst_17 = arith.constant 0.00130208337 : f32
      %26 = vector.broadcast %cst_17 : f32 to vector<56x1xf32>
      %27 = arith.mulf %22, %26 : vector<56x1xf32>
      %cst_18 = arith.constant 0.00130208337 : f32
      %28 = vector.broadcast %cst_18 : f32 to vector<56x1xf32>
      %29 = arith.mulf %25, %28 : vector<56x1xf32>
      %30 = arith.mulf %27, %27 : vector<56x1xf32>
      %31 = arith.subf %29, %30 : vector<56x1xf32>
      %32 = vector.broadcast %27 : vector<56x1xf32> to vector<56x768xf32>
      %33 = arith.subf %20, %32 : vector<56x768xf32>
      %cst_19 = arith.constant 9.99999974E-6 : f32
      %34 = vector.broadcast %cst_19 : f32 to vector<56x1xf32>
      %35 = arith.addf %31, %34 : vector<56x1xf32>
      %36 = math.rsqrt %35 : vector<56x1xf32>
      %37 = vector.broadcast %36 : vector<56x1xf32> to vector<56x768xf32>
      %38 = arith.mulf %33, %37 : vector<56x768xf32>
      %39 = arith.truncf %38 : vector<56x768xf32> to vector<56x768xbf16>
      %c0_20 = arith.constant 0 : index
      %c0_21 = arith.constant 0 : index
      %40 = vector.load %arg7[%c0_20, %c0_21] : memref<56x768xbf16, #tpu.memory_space<vmem>>, vector<56x768xbf16>
      tpu.vector_store %arg7[%c0_20, %c0_21], %39 {strides = array<i32>} : memref<56x768xbf16, #tpu.memory_space<vmem>>, vector<56x768xbf16>,
    } else {
    }
    %c0 = arith.constant 0 : index
    %c0_1 = arith.constant 0 : index
    %3 = vector.load %arg7[%c0, %c0_1] : memref<56x768xbf16, #tpu.memory_space<vmem>>, vector<56x768xbf16>
    %c0_2 = arith.constant 0 : index
    %c0_3 = arith.constant 0 : index
    %4 = vector.load %arg4[%c0_2, %c0_3] : memref<768x768xbf16, #tpu.memory_space<vmem>>, vector<768x768xbf16>
    %cst = arith.constant dense<0.000000e+00> : vector<56x768xf32>
    %5 = tpu.matmul %3, %4, %cst {dimension_numbers = #tpu.dot_dimension_numbers<[1], [0], [0], [1], [0, 0, 1, 1], [], []>} : vector<56x768xbf16>, vector<768x768xbf16>, vector<56x768xf32> -> vector<56x768xf32>
    %c0_4 = arith.constant 0 : index
    %c0_5 = arith.constant 0 : index
    %6 = vector.load %arg5[%c0_4, %c0_5] : memref<1x768xf32, #tpu.memory_space<vmem>>, vector<1x768xf32>
    %7 = vector.broadcast %6 : vector<1x768xf32> to vector<56x768xf32>
    %8 = arith.addf %5, %7 : vector<56x768xf32>
    %cst_6 = arith.constant 5.000000e-01 : f32
    %9 = vector.broadcast %cst_6 : f32 to vector<56x768xf32>
    %10 = arith.mulf %9, %8 : vector<56x768xf32>
    %cst_7 = arith.constant 0.707106769 : f32
    %11 = vector.broadcast %cst_7 : f32 to vector<56x768xf32>
    %12 = arith.mulf %8, %11 : vector<56x768xf32>
    %13 = math.erf %12 : vector<56x768xf32>
    %cst_8 = arith.constant 1.000000e+00 : f32
    %14 = vector.broadcast %cst_8 : f32 to vector<56x768xf32>
    %15 = arith.addf %14, %13 : vector<56x768xf32>
    %16 = arith.mulf %10, %15 : vector<56x768xf32>
    %c0_9 = arith.constant 0 : index
    %c0_10 = arith.constant 0 : index
    %17 = vector.load %arg6[%c0_9, %c0_10] : memref<56x768xf32, #tpu.memory_space<vmem>>, vector<56x768xf32>
    tpu.vector_store %arg6[%c0_9, %c0_10], %16 {strides = array<i32>} : memref<56x768xf32, #tpu.memory_space<vmem>>, vector<56x768xf32>,
    return
  }
  func.func @transform_0(%arg0: i32, %arg1: i32) -> (i32, i32) {
    %c0_i32 = arith.constant 0 : i32
    %c0_i32_0 = arith.constant 0 : i32
    %c0_i32_1 = arith.constant 0 : i32
    return %c0_i32, %c0_i32_0 : i32, i32
  }
  func.func @transform_1(%arg0: i32, %arg1: i32) -> (i32, i32) {
    %c0_i32 = arith.constant 0 : i32
    %c0_i32_0 = arith.constant 0 : i32
    %c0_i32_1 = arith.constant 0 : i32
    return %c0_i32, %c0_i32_0 : i32, i32
  }
  func.func @transform_2(%arg0: i32, %arg1: i32) -> (i32, i32) {
    %c2_i32 = arith.constant 2 : i32
    %0 = arith.muli %arg0, %c2_i32 : i32
    %1 = arith.addi %0, %arg1 : i32
    %c0_i32 = arith.constant 0 : i32
    %c0_i32_0 = arith.constant 0 : i32
    return %c0_i32, %1 : i32, i32
  }
  func.func @transform_3(%arg0: i32, %arg1: i32) -> (i32, i32) {
    %c2_i32 = arith.constant 2 : i32
    %0 = arith.muli %arg0, %c2_i32 : i32
    %1 = arith.addi %0, %arg1 : i32
    %c0_i32 = arith.constant 0 : i32
    %c0_i32_0 = arith.constant 0 : i32
    return %c0_i32, %1 : i32, i32
  }
  func.func @transform_4(%arg0: i32, %arg1: i32) -> (i32, i32) {
    %c2_i32 = arith.constant 2 : i32
    %0 = arith.muli %arg0, %c2_i32 : i32
    %1 = arith.addi %0, %arg1 : i32
    %c0_i32 = arith.constant 0 : i32
    %c0_i32_0 = arith.constant 0 : i32
    return %c0_i32, %1 : i32, i32
  }
}

</mosaic_0001>

<llo_original>
// kernel: fused_forward.1
$region0: #{fused_forward.1}
  #allocation0 [shape = 'u32[]', space=smem, size = 0x4, offset = 0x4, fixed_abs, tag = 'smem constant byte address 0x4 - core index']
  #allocation1 [shape = 'u32[72,128]{1,0:T(1,128)}', space=vmem, size = 0x9000, scoped, tag = 'internal scratch']
  #allocation2 [shape = 'bf16[56,768]{1,0:T(8,128)(2,1)}', space=vmem, size = 0x15000, scoped, tag = 'scratch operand']
  %s0 = inlined_call_operand.vmem [shape: f32[56,768], index: 0, kind: input, shape index: {}]
  %s1 = inlined_call_operand.vmem [shape: f32[56,768], index: 1, kind: input, shape index: {}]
  %s2 = inlined_call_operand.hbm [shape: bf16[768,3072], index: 2, kind: input, shape index: {}]
  %s3 = inlined_call_operand.hbm [shape: f32[1,3072], index: 3, kind: input, shape index: {}]
  %s4 = inlined_call_operand.vmem [shape: f32[56,3072], index: 4, kind: output, shape index: {}]
  %s5 = sld [smem:[#allocation0]]
  $region80: #{fused_forward.1} parent=0
    _
  %s7 = ssub.s32 1, %s5
  %s8 = scalar_select 0, %s7, %s5
  $region1: #{fused_forward.1} parent=0
    #allocation3 [shape = 'u8[2359296]{0}', space=vmem, size = 0x240000, scoped, tag = 'input window, operand 2']
    #allocation4 [shape = 's32[2]{0}', space=sflag, size = 0x8, scoped, tag = 'scoped memory for fused_forward.1']
    #allocation5 [shape = 'u8[6144]{0}', space=vmem, size = 0x1800, scoped, tag = 'input window, operand 3']
    #allocation6 [shape = 's32[2]{0}', space=sflag, size = 0x8, scoped, tag = 'scoped memory for fused_forward.1']
    #allocation7 [shape = 'u8[344064]{0}', space=vmem, size = 0x54000, scoped, tag = 'output window, operand 0']
    %9 = vsyncpa [#allocation4], 0
    %s10 = scalar_lea.sflag [#allocation4], 1
    %11 = vsyncpa %s10, 0
    %12 = vsyncpa [#allocation6], 0
    %s13 = scalar_lea.sflag [#allocation6], 1
    %14 = vsyncpa %s13, 0
    loop: start=0, step=1, limit=6
    $region2: #{fused_forward.1} parent=1 // loop_pre_header
      _
    $region3: #{fused_forward.1} parent=1 // loop_header
      %s16 = sphi 0, %s20
      %p17 = scmp.ge.s32.totalorder %s16, 6
      %s23 = sphi 0, %s35
      %s24 = sphi 0, %s31
      %s25 = sphi 0, %s23
      %s26 = sphi 0, %s24
      %s27 = sphi 0, %s25
      %s28 = sphi 0, %s26
      %s36 = sphi 0, %s36
      %s38 = sphi 0, %s36
      %s39 = sphi 0, %s38
      %s53 = sphi 0, %s39
      %s57 = sphi 0, %s57
      %s59 = sphi 0, %s57
      %s60 = sphi 0, %s59
      %s74 = sphi 0, %s60
      %s84 = sphi 0, %s86
      %s87 = sphi 0, %s84
      %s88 = sphi 0, %s87
      %s104 = sphi 0, %s88
      %s114 = sphi 0, %s116
      %s117 = sphi 0, %s114
      %s118 = sphi 0, %s117
      %s134 = sphi 0, %s118
      %s144 = sphi 0, %s146
      %s147 = sphi 0, %s144
      %s148 = sphi 0, %s147
      %s164 = sphi 0, %s148
    $region4: #{fused_forward.1} parent=1 // loop_header_branch
      %19 = sbr.rel (%p17) target = $region8
    $region5: #{fused_forward.1} parent=1 // loop_body
      %s21 = ssub.s32 %s16, 1
      %s22 = ssub.s32 %s16, 2
      %s29 = sadd.s32 1, %s24
      %p30 = scmp.ge.s32.totalorder %s29, 2
      %s31 = scalar_select %p30, 0, %s29
      %s32 = sadd.s32 1, %s23
      %s33 = scalar_select %p30, %s32, %s23
      %p34 = scmp.ge.s32.totalorder %s33, 2
      %s35 = scalar_select %p34, 0, %s33
      %s37 = sadd.s32 %s36, 1
      %p40 = scmp.eq.s32.totalorder %s16, 3
      %p41 = scmp.ne.s32.totalorder %s36, %s38
      %p42 = scmp.eq.s32.totalorder %s16, 0
      %p43 = por %p41, %p42
      %p44 = scmp.ne.s32.totalorder %s36, %s38
      %p45 = scmp.eq.s32.totalorder %s21, 3
      %p46 = por %p44, %p45
      %p47 = scmp.ne.s32.totalorder %s38, %s39
      %p48 = scmp.eq.s32.totalorder %s21, 0
      %p49 = por %p47, %p48
      %p50 = scmp.ne.s32.totalorder %s38, %s39
      %p51 = scmp.eq.s32.totalorder %s22, 3
      %p52 = por %p50, %p51
      %p54 = scmp.ne.s32.totalorder %s39, %s53
      %p55 = scmp.eq.s32.totalorder %s22, 0
      %p56 = por %p54, %p55
      %s58 = sadd.s32 %s57, 1
      %p61 = scmp.eq.s32.totalorder %s16, 3
      %p62 = scmp.ne.s32.totalorder %s57, %s59
      %p63 = scmp.eq.s32.totalorder %s16, 0
      %p64 = por %p62, %p63
      %p65 = scmp.ne.s32.totalorder %s57, %s59
      %p66 = scmp.eq.s32.totalorder %s21, 3
      %p67 = por %p65, %p66
      %p68 = scmp.ne.s32.totalorder %s59, %s60
      %p69 = scmp.eq.s32.totalorder %s21, 0
      %p70 = por %p68, %p69
      %p71 = scmp.ne.s32.totalorder %s59, %s60
      %p72 = scmp.eq.s32.totalorder %s22, 3
      %p73 = por %p71, %p72
      %p75 = scmp.ne.s32.totalorder %s60, %s74
      %p76 = scmp.eq.s32.totalorder %s22, 0
      %p77 = por %p75, %p76
      %s78 = smul.u32 %s23, 2
      %s79 = sadd.s32 %s78, %s24
      %s80 = smul.u32 %s35, 2
      %s81 = sadd.s32 %s80, %s31
      %s82 = ssub.s32 %s79, %s81
      %p83 = scmp.eq.s32.totalorder %s82, 0
      %s85 = sadd.s32 %s84, 1
      %s86 = scalar_select %p83, %s84, %s85
      %p89 = pneg %p83
      %p90 = scmp.eq.s32.totalorder %s16, 3
      %p91 = por %p89, %p90
      %p92 = scmp.ne.s32.totalorder %s84, %s87
      %p93 = scmp.eq.s32.totalorder %s16, 0
      %p94 = por %p92, %p93
      %p95 = scmp.ne.s32.totalorder %s84, %s87
      %p96 = scmp.eq.s32.totalorder %s21, 3
      %p97 = por %p95, %p96
      %p98 = scmp.ne.s32.totalorder %s87, %s88
      %p99 = scmp.eq.s32.totalorder %s21, 0
      %p100 = por %p98, %p99
      %p101 = scmp.ne.s32.totalorder %s87, %s88
      %p102 = scmp.eq.s32.totalorder %s22, 3
      %p103 = por %p101, %p102
      %p105 = scmp.ne.s32.totalorder %s88, %s104
      %p106 = scmp.eq.s32.totalorder %s22, 0
      %p107 = por %p105, %p106
      %s108 = smul.u32 %s23, 2
      %s109 = sadd.s32 %s108, %s24
      %s110 = smul.u32 %s35, 2
      %s111 = sadd.s32 %s110, %s31
      %s112 = ssub.s32 %s109, %s111
      %p113 = scmp.eq.s32.totalorder %s112, 0
      %s115 = sadd.s32 %s114, 1
      %s116 = scalar_select %p113, %s114, %s115
      %p119 = pneg %p113
      %p120 = scmp.eq.s32.totalorder %s16, 3
      %p121 = por %p119, %p120
      %p122 = scmp.ne.s32.totalorder %s114, %s117
      %p123 = scmp.eq.s32.totalorder %s16, 0
      %p124 = por %p122, %p123
      %p125 = scmp.ne.s32.totalorder %s114, %s117
      %p126 = scmp.eq.s32.totalorder %s21, 3
      %p127 = por %p125, %p126
      %p128 = scmp.ne.s32.totalorder %s117, %s118
      %p129 = scmp.eq.s32.totalorder %s21, 0
      %p130 = por %p128, %p129
      %p131 = scmp.ne.s32.totalorder %s117, %s118
      %p132 = scmp.eq.s32.totalorder %s22, 3
      %p133 = por %p131, %p132
      %p135 = scmp.ne.s32.totalorder %s118, %s134
      %p136 = scmp.eq.s32.totalorder %s22, 0
      %p137 = por %p135, %p136
      %s138 = smul.u32 %s23, 2
      %s139 = sadd.s32 %s138, %s24
      %s140 = smul.u32 %s35, 2
      %s141 = sadd.s32 %s140, %s31
      %s142 = ssub.s32 %s139, %s141
      %p143 = scmp.eq.s32.totalorder %s142, 0
      %s145 = sadd.s32 %s144, 1
      %s146 = scalar_select %p143, %s144, %s145
      %p149 = pneg %p143
      %p150 = scmp.eq.s32.totalorder %s16, 3
      %p151 = por %p149, %p150
      %p152 = scmp.ne.s32.totalorder %s144, %s147
      %p153 = scmp.eq.s32.totalorder %s16, 0
      %p154 = por %p152, %p153
      %p155 = scmp.ne.s32.totalorder %s144, %s147
      %p156 = scmp.eq.s32.totalorder %s21, 3
      %p157 = por %p155, %p156
      %p158 = scmp.ne.s32.totalorder %s147, %s148
      %p159 = scmp.eq.s32.totalorder %s21, 0
      %p160 = por %p158, %p159
      %p161 = scmp.ne.s32.totalorder %s147, %s148
      %p162 = scmp.eq.s32.totalorder %s22, 3
      %p163 = por %p161, %p162
      %p165 = scmp.ne.s32.totalorder %s148, %s164
      %p166 = scmp.eq.s32.totalorder %s22, 0
      %p167 = por %p165, %p166
      %p168 = scmp.le.s32.totalorder 1, %s16
      %p169 = scmp.lt.s32.totalorder %s16, 5
      %p170 = pnand %p168, %p169
      %p171 = pneg %p170
      // Predicated region
      $region9: #{fused_forward.1} parent=5 // pred_check
        _
      $region10: #{fused_forward.1} parent=5 // pred_check_branch
        %173 = sbr.rel (%p170) target = $region12
      $region11: #{fused_forward.1} parent=5 // pred_region
        %s174 = ssub.s32 %s16, 1
        // Predicated region
        $region13: #{fused_forward.1} parent=11 // pred_check
          %p175 = pneg %p49
        $region14: #{fused_forward.1} parent=11 // pred_check_branch
          %177 = sbr.rel (%p175) target = $region16
        $region15: #{fused_forward.1} parent=11 // pred_region
          _
        $region16: #{fused_forward.1} parent=11 // pred_fallthru
          _
        // Predicated region
        $region17: #{fused_forward.1} parent=11 // pred_check
          %p178 = pneg %p70
        $region18: #{fused_forward.1} parent=11 // pred_check_branch
          %180 = sbr.rel (%p178) target = $region20
        $region19: #{fused_forward.1} parent=11 // pred_region
          _
        $region20: #{fused_forward.1} parent=11 // pred_fallthru
          _
      $region12: #{fused_forward.1} parent=5 // pred_fallthru
        _
      %p181 = scmp.lt.s32.totalorder %s16, 4
      // Predicated region
      $region21: #{fused_forward.1} parent=5 // pred_check
        %p182 = pneg %p181
      $region22: #{fused_forward.1} parent=5 // pred_check_branch
        %184 = sbr.rel (%p182) target = $region24
      $region23: #{fused_forward.1} parent=5 // pred_region
        // Predicated region
        $region25: #{fused_forward.1} parent=23 // pred_check
          %p185 = pneg %p94
        $region26: #{fused_forward.1} parent=23 // pred_check_branch
          %187 = sbr.rel (%p185) target = $region28
        $region27: #{fused_forward.1} parent=23 // pred_region
          %s188 = sand.u32 %s84, 1
          %s189 = scalar_lea.sflag [#allocation4], %s188
          %s190 = sand.u32 %s84, 1
          %s191 = smul.addr %s190, 2304
          %s192 = scalar_lea.vmem [#allocation3], %s191
          %s193 = smul.u32 %s23, 2
          %s194 = sadd.s32 %s193, %s24
          %s195 = smul.u32 6, %s194
          %197 = vsyncadd %s189, 0
          %s198 = smul.addr %s195, 4
          %s199 = scalar_lea.hbm %s2, %s198
          %s200 = sshll.u32 %s199, 4
          %s201 = int_to_ptr.hbm [resolvable:$true] %s200
          %s202 = sshll.u32 %s192, 4
          %s203 = int_to_ptr.vmem [resolvable:$true] %s202
          %208 = dma.hbm_to_vmem [thread:$0]  %s201, 36864, %s203, %s189, 1536, 384, 24
        $region28: #{fused_forward.1} parent=23 // pred_fallthru
          _
        // Predicated region
        $region29: #{fused_forward.1} parent=23 // pred_check
          %p209 = pneg %p124
        $region30: #{fused_forward.1} parent=23 // pred_check_branch
          %211 = sbr.rel (%p209) target = $region32
        $region31: #{fused_forward.1} parent=23 // pred_region
          %s212 = sand.u32 %s114, 1
          %s213 = scalar_lea.sflag [#allocation6], %s212
          %s214 = sand.u32 %s114, 1
          %s215 = smul.addr %s214, 6
          %s216 = scalar_lea.vmem [#allocation5], %s215
          %s217 = smul.u32 %s23, 2
          %s218 = sadd.s32 %s217, %s24
          %s219 = smul.u32 6, %s218
          %221 = vsyncadd %s213, 0
          %s222 = scalar_lea.hbm %s3, %s219
          %s224 = sshll.u32 %s222, 4
          %s225 = int_to_ptr.hbm [resolvable:$true] %s224
          %s226 = sshll.u32 %s216, 4
          %s227 = int_to_ptr.vmem [resolvable:$true] %s226
          %229 = dma.hbm_to_vmem [thread:$0]  %s225, 96, %s227, %s213
        $region32: #{fused_forward.1} parent=23 // pred_fallthru
          _
      $region24: #{fused_forward.1} parent=5 // pred_fallthru
        _
      %p230 = scmp.le.s32.totalorder 1, %s16
      %p231 = scmp.lt.s32.totalorder %s16, 5
      %p232 = pnand %p230, %p231
      %p233 = pneg %p232
      // Predicated region
      $region33: #{fused_forward.1} parent=5 // pred_check
        _
      $region34: #{fused_forward.1} parent=5 // pred_check_branch
        %235 = sbr.rel (%p232) target = $region36
      $region35: #{fused_forward.1} parent=5 // pred_region
        %s236 = ssub.s32 %s16, 1
        %s237 = sand.u32 %s87, 1
        %s238 = scalar_lea.sflag [#allocation4], %s237
        %s239 = sand.u32 %s87, 1
        %s240 = smul.addr %s239, 2304
        %s241 = scalar_lea.vmem [#allocation3], %s240
        // Predicated region
        $region37: #{fused_forward.1} parent=35 // pred_check
          %p242 = pneg %p100
        $region38: #{fused_forward.1} parent=35 // pred_check_branch
          %244 = sbr.rel (%p242) target = $region40
        $region39: #{fused_forward.1} parent=35 // pred_region
          %246 = dma.done %s238, 36864
        $region40: #{fused_forward.1} parent=35 // pred_fallthru
          _
        %s247 = sand.u32 %s117, 1
        %s248 = scalar_lea.sflag [#allocation6], %s247
        %s249 = sand.u32 %s117, 1
        %s250 = smul.addr %s249, 6
        %s251 = scalar_lea.vmem [#allocation5], %s250
        // Predicated region
        $region41: #{fused_forward.1} parent=35 // pred_check
          %p252 = pneg %p130
        $region42: #{fused_forward.1} parent=35 // pred_check_branch
          %254 = sbr.rel (%p252) target = $region44
        $region43: #{fused_forward.1} parent=35 // pred_region
          %256 = dma.done %s248, 96
        $region44: #{fused_forward.1} parent=35 // pred_fallthru
          _
        %p257 = pneg %p49
        %p258 = pneg %p46
        %p259 = pneg %p70
        %p260 = pneg %p67
        %s261 = sand.u32 %s87, 1
        %s262 = scalar_lea.sflag [#allocation4], %s261
        %s263 = sand.u32 %s87, 1
        %s264 = smul.addr %s263, 2304
        %s265 = scalar_lea.vmem [#allocation3], %s264
        %p266 = pneg %p100
        %p267 = pneg %p97
        %s268 = sand.u32 %s117, 1
        %s269 = scalar_lea.sflag [#allocation6], %s268
        %s270 = sand.u32 %s117, 1
        %s271 = smul.addr %s270, 6
        %s272 = scalar_lea.vmem [#allocation5], %s271
        %p273 = pneg %p130
        %p274 = pneg %p127
        %p275 = pneg %p160
        %p276 = pneg %p157
        %s277 = sand.u32 %s147, 1
        %s278 = sand.u32 %s147, 1
        %s279 = smul.addr %s278, 336
        %s280 = scalar_lea.vmem [#allocation7], %s279
        %s281 = smul.u32 %s25, 2
        %s282 = sadd.s32 %s281, %s26
        %s283 = smul.u32 6, %s282
        %s284 = smul.u32 %s25, 2
        %s285 = sadd.s32 %s284, %s26
        %s286 = smul.u32 6, %s285
        %s287 = smul.u32 %s25, 2
        %s288 = sadd.s32 %s287, %s26
        %s289 = smul.u32 6, %s288
        %p290 = scmp.eq.s32.totalorder %s26, 0
        // Predicated region
        $region45: #{fused_forward.1} parent=35 // pred_check
          %p291 = pneg %p290
        $region46: #{fused_forward.1} parent=35 // pred_check_branch
          %293 = sbr.rel (%p291) target = $region48
        $region47: #{fused_forward.1} parent=35 // pred_region
          %v294 = vld [vmem:[%s0] sm:$0xff]
          %v295 = vld [vmem:[%s0 + $0x8] sm:$0xff]
          %v296 = vld [vmem:[%s0 + $0x10] sm:$0xff]
          %v297 = vld [vmem:[%s0 + $0x18] sm:$0xff]
          %v298 = vld [vmem:[%s0 + $0x20] sm:$0xff]
          %v299 = vld [vmem:[%s0 + $0x28] sm:$0xff]
          %v300 = vld [vmem:[%s0 + $0x30] sm:$0xff]
          %v301 = vld [vmem:[%s0 + $0x38] sm:$0xff]
          %v302 = vld [vmem:[%s0 + $0x40] sm:$0xff]
          %v303 = vld [vmem:[%s0 + $0x48] sm:$0xff]
          %v304 = vld [vmem:[%s0 + $0x50] sm:$0xff]
          %v305 = vld [vmem:[%s0 + $0x58] sm:$0xff]
          %v306 = vld [vmem:[%s0 + $0x60] sm:$0xff]
          %v307 = vld [vmem:[%s0 + $0x68] sm:$0xff]
          %v308 = vld [vmem:[%s0 + $0x70] sm:$0xff]
          %v309 = vld [vmem:[%s0 + $0x78] sm:$0xff]
          %v310 = vld [vmem:[%s0 + $0x80] sm:$0xff]
          %v311 = vld [vmem:[%s0 + $0x88] sm:$0xff]
          %v312 = vld [vmem:[%s0 + $0x90] sm:$0xff]
          %v313 = vld [vmem:[%s0 + $0x98] sm:$0xff]
          %v314 = vld [vmem:[%s0 + $0xa0] sm:$0xff]
          %v315 = vld [vmem:[%s0 + $0xa8] sm:$0xff]
          %v316 = vld [vmem:[%s0 + $0xb0] sm:$0xff]
          %v317 = vld [vmem:[%s0 + $0xb8] sm:$0xff]
          %v318 = vld [vmem:[%s0 + $0xc0] sm:$0xff]
          %v319 = vld [vmem:[%s0 + $0xc8] sm:$0xff]
          %v320 = vld [vmem:[%s0 + $0xd0] sm:$0xff]
          %v321 = vld [vmem:[%s0 + $0xd8] sm:$0xff]
          %v322 = vld [vmem:[%s0 + $0xe0] sm:$0xff]
          %v323 = vld [vmem:[%s0 + $0xe8] sm:$0xff]
          %v324 = vld [vmem:[%s0 + $0xf0] sm:$0xff]
          %v325 = vld [vmem:[%s0 + $0xf8] sm:$0xff]
          %v326 = vld [vmem:[%s0 + $0x100] sm:$0xff]
          %v327 = vld [vmem:[%s0 + $0x108] sm:$0xff]
          %v328 = vld [vmem:[%s0 + $0x110] sm:$0xff]
          %v329 = vld [vmem:[%s0 + $0x118] sm:$0xff]
          %v330 = vld [vmem:[%s0 + $0x120] sm:$0xff]
          %v331 = vld [vmem:[%s0 + $0x128] sm:$0xff]
          %v332 = vld [vmem:[%s0 + $0x130] sm:$0xff]
          %v333 = vld [vmem:[%s0 + $0x138] sm:$0xff]
          %v334 = vld [vmem:[%s0 + $0x140] sm:$0xff]
          %v335 = vld [vmem:[%s0 + $0x148] sm:$0xff]
          %v336 = vld [vmem:[%s1] sm:$0xff]
          %v337 = vld [vmem:[%s1 + $0x8] sm:$0xff]
          %v338 = vld [vmem:[%s1 + $0x10] sm:$0xff]
          %v339 = vld [vmem:[%s1 + $0x18] sm:$0xff]
          %v340 = vld [vmem:[%s1 + $0x20] sm:$0xff]
          %v341 = vld [vmem:[%s1 + $0x28] sm:$0xff]
          %v342 = vld [vmem:[%s1 + $0x30] sm:$0xff]
          %v343 = vld [vmem:[%s1 + $0x38] sm:$0xff]
          %v344 = vld [vmem:[%s1 + $0x40] sm:$0xff]
          %v345 = vld [vmem:[%s1 + $0x48] sm:$0xff]
          %v346 = vld [vmem:[%s1 + $0x50] sm:$0xff]
          %v347 = vld [vmem:[%s1 + $0x58] sm:$0xff]
          %v348 = vld [vmem:[%s1 + $0x60] sm:$0xff]
          %v349 = vld [vmem:[%s1 + $0x68] sm:$0xff]
          %v350 = vld [vmem:[%s1 + $0x70] sm:$0xff]
          %v351 = vld [vmem:[%s1 + $0x78] sm:$0xff]
          %v352 = vld [vmem:[%s1 + $0x80] sm:$0xff]
          %v353 = vld [vmem:[%s1 + $0x88] sm:$0xff]
          %v354 = vld [vmem:[%s1 + $0x90] sm:$0xff]
          %v355 = vld [vmem:[%s1 + $0x98] sm:$0xff]
          %v356 = vld [vmem:[%s1 + $0xa0] sm:$0xff]
          %v357 = vld [vmem:[%s1 + $0xa8] sm:$0xff]
          %v358 = vld [vmem:[%s1 + $0xb0] sm:$0xff]
          %v359 = vld [vmem:[%s1 + $0xb8] sm:$0xff]
          %v360 = vld [vmem:[%s1 + $0xc0] sm:$0xff]
          %v361 = vld [vmem:[%s1 + $0xc8] sm:$0xff]
          %v362 = vld [vmem:[%s1 + $0xd0] sm:$0xff]
          %v363 = vld [vmem:[%s1 + $0xd8] sm:$0xff]
          %v364 = vld [vmem:[%s1 + $0xe0] sm:$0xff]
          %v365 = vld [vmem:[%s1 + $0xe8] sm:$0xff]
          %v366 = vld [vmem:[%s1 + $0xf0] sm:$0xff]
          %v367 = vld [vmem:[%s1 + $0xf8] sm:$0xff]
          %v368 = vld [vmem:[%s1 + $0x100] sm:$0xff]
          %v369 = vld [vmem:[%s1 + $0x108] sm:$0xff]
          %v370 = vld [vmem:[%s1 + $0x110] sm:$0xff]
          %v371 = vld [vmem:[%s1 + $0x118] sm:$0xff]
          %v372 = vld [vmem:[%s1 + $0x120] sm:$0xff]
          %v373 = vld [vmem:[%s1 + $0x128] sm:$0xff]
          %v374 = vld [vmem:[%s1 + $0x130] sm:$0xff]
          %v375 = vld [vmem:[%s1 + $0x138] sm:$0xff]
          %v376 = vld [vmem:[%s1 + $0x140] sm:$0xff]
          %v377 = vld [vmem:[%s1 + $0x148] sm:$0xff]
          %v378 = vadd.f32 %v294, %v336
          %v379 = vadd.f32 %v295, %v337
          %v380 = vadd.f32 %v296, %v338
          %v381 = vadd.f32 %v297, %v339
          %v382 = vadd.f32 %v298, %v340
          %v383 = vadd.f32 %v299, %v341
          %v384 = vadd.f32 %v300, %v342
          %v385 = vadd.f32 %v301, %v343
          %v386 = vadd.f32 %v302, %v344
          %v387 = vadd.f32 %v303, %v345
          %v388 = vadd.f32 %v304, %v346
          %v389 = vadd.f32 %v305, %v347
          %v390 = vadd.f32 %v306, %v348
          %v391 = vadd.f32 %v307, %v349
          %v392 = vadd.f32 %v308, %v350
          %v393 = vadd.f32 %v309, %v351
          %v394 = vadd.f32 %v310, %v352
          %v395 = vadd.f32 %v311, %v353
          %v396 = vadd.f32 %v312, %v354
          %v397 = vadd.f32 %v313, %v355
          %v398 = vadd.f32 %v314, %v356
          %v399 = vadd.f32 %v315, %v357
          %v400 = vadd.f32 %v316, %v358
          %v401 = vadd.f32 %v317, %v359
          %v402 = vadd.f32 %v318, %v360
          %v403 = vadd.f32 %v319, %v361
          %v404 = vadd.f32 %v320, %v362
          %v405 = vadd.f32 %v321, %v363
          %v406 = vadd.f32 %v322, %v364
          %v407 = vadd.f32 %v323, %v365
          %v408 = vadd.f32 %v324, %v366
          %v409 = vadd.f32 %v325, %v367
          %v410 = vadd.f32 %v326, %v368
          %v411 = vadd.f32 %v327, %v369
          %v412 = vadd.f32 %v328, %v370
          %v413 = vadd.f32 %v329, %v371
          %v414 = vadd.f32 %v330, %v372
          %v415 = vadd.f32 %v331, %v373
          %v416 = vadd.f32 %v332, %v374
          %v417 = vadd.f32 %v333, %v375
          %v418 = vadd.f32 %v334, %v376
          %v419 = vadd.f32 %v335, %v377
          %v420 = vadd.f32 %v378, %v379
          %v421 = vadd.f32 %v420, %v380
          %v422 = vadd.f32 %v421, %v381
          %v423 = vadd.f32 %v422, %v382
          %v424 = vadd.f32 %v423, %v383
          %425 = vadd.xlane.f32.xlu0 %v424
          %v426 = vpop.xlane.xlu0 %425
          %v427 = vadd.f32 %v384, %v385
          %v428 = vadd.f32 %v427, %v386
          %v429 = vadd.f32 %v428, %v387
          %v430 = vadd.f32 %v429, %v388
          %v431 = vadd.f32 %v430, %v389
          %432 = vadd.xlane.f32.xlu0 %v431
          %v433 = vpop.xlane.xlu0 %432
          %v434 = vadd.f32 %v390, %v391
          %v435 = vadd.f32 %v434, %v392
          %v436 = vadd.f32 %v435, %v393
          %v437 = vadd.f32 %v436, %v394
          %v438 = vadd.f32 %v437, %v395
          %439 = vadd.xlane.f32.xlu0 %v438
          %v440 = vpop.xlane.xlu0 %439
          %v441 = vadd.f32 %v396, %v397
          %v442 = vadd.f32 %v441, %v398
          %v443 = vadd.f32 %v442, %v399
          %v444 = vadd.f32 %v443, %v400
          %v445 = vadd.f32 %v444, %v401
          %446 = vadd.xlane.f32.xlu0 %v445
          %v447 = vpop.xlane.xlu0 %446
          %v448 = vadd.f32 %v402, %v403
          %v449 = vadd.f32 %v448, %v404
          %v450 = vadd.f32 %v449, %v405
          %v451 = vadd.f32 %v450, %v406
          %v452 = vadd.f32 %v451, %v407
          %453 = vadd.xlane.f32.xlu0 %v452
          %v454 = vpop.xlane.xlu0 %453
          %v455 = vadd.f32 %v408, %v409
          %v456 = vadd.f32 %v455, %v410
          %v457 = vadd.f32 %v456, %v411
          %v458 = vadd.f32 %v457, %v412
          %v459 = vadd.f32 %v458, %v413
          %460 = vadd.xlane.f32.xlu0 %v459
          %v461 = vpop.xlane.xlu0 %460
          %v462 = vadd.f32 %v414, %v415
          %v463 = vadd.f32 %v462, %v416
          %v464 = vadd.f32 %v463, %v417
          %v465 = vadd.f32 %v464, %v418
          %v466 = vadd.f32 %v465, %v419
          %467 = vadd.xlane.f32.xlu0 %v466
          %v468 = vpop.xlane.xlu0 %467
          %v469 = vmul.f32 %v378, %v378
          %v470 = vmul.f32 %v379, %v379
          %v471 = vmul.f32 %v380, %v380
          %v472 = vmul.f32 %v381, %v381
          %v473 = vmul.f32 %v382, %v382
          %v474 = vmul.f32 %v383, %v383
          %v475 = vmul.f32 %v384, %v384
          %v476 = vmul.f32 %v385, %v385
          %v477 = vmul.f32 %v386, %v386
          %v478 = vmul.f32 %v387, %v387
          %v479 = vmul.f32 %v388, %v388
          %v480 = vmul.f32 %v389, %v389
          %v481 = vmul.f32 %v390, %v390
          %v482 = vmul.f32 %v391, %v391
          %v483 = vmul.f32 %v392, %v392
          %v484 = vmul.f32 %v393, %v393
          %v485 = vmul.f32 %v394, %v394
          %v486 = vmul.f32 %v395, %v395
          %v487 = vmul.f32 %v396, %v396
          %v488 = vmul.f32 %v397, %v397
          %v489 = vmul.f32 %v398, %v398
          %v490 = vmul.f32 %v399, %v399
          %v491 = vmul.f32 %v400, %v400
          %v492 = vmul.f32 %v401, %v401
          %v493 = vmul.f32 %v402, %v402
          %v494 = vmul.f32 %v403, %v403
          %v495 = vmul.f32 %v404, %v404
          %v496 = vmul.f32 %v405, %v405
          %v497 = vmul.f32 %v406, %v406
          %v498 = vmul.f32 %v407, %v407
          %v499 = vmul.f32 %v408, %v408
          %v500 = vmul.f32 %v409, %v409
          %v501 = vmul.f32 %v410, %v410
          %v502 = vmul.f32 %v411, %v411
          %v503 = vmul.f32 %v412, %v412
          %v504 = vmul.f32 %v413, %v413
          %v505 = vmul.f32 %v414, %v414
          %v506 = vmul.f32 %v415, %v415
          %v507 = vmul.f32 %v416, %v416
          %v508 = vmul.f32 %v417, %v417
          %v509 = vmul.f32 %v418, %v418
          %v510 = vmul.f32 %v419, %v419
          %v511 = vadd.f32 %v469, %v470
          %v512 = vadd.f32 %v511, %v471
          %v513 = vadd.f32 %v512, %v472
          %v514 = vadd.f32 %v513, %v473
          %v515 = vadd.f32 %v514, %v474
          %516 = vadd.xlane.f32.xlu0 %v515
          %v517 = vpop.xlane.xlu0 %516
          %v518 = vadd.f32 %v475, %v476
          %v519 = vadd.f32 %v518, %v477
          %v520 = vadd.f32 %v519, %v478
          %v521 = vadd.f32 %v520, %v479
          %v522 = vadd.f32 %v521, %v480
          %523 = vadd.xlane.f32.xlu0 %v522
          %v524 = vpop.xlane.xlu0 %523
          %v525 = vadd.f32 %v481, %v482
          %v526 = vadd.f32 %v525, %v483
          %v527 = vadd.f32 %v526, %v484
          %v528 = vadd.f32 %v527, %v485
          %v529 = vadd.f32 %v528, %v486
          %530 = vadd.xlane.f32.xlu0 %v529
          %v531 = vpop.xlane.xlu0 %530
          %v532 = vadd.f32 %v487, %v488
          %v533 = vadd.f32 %v532, %v489
          %v534 = vadd.f32 %v533, %v490
          %v535 = vadd.f32 %v534, %v491
          %v536 = vadd.f32 %v535, %v492
          %537 = vadd.xlane.f32.xlu0 %v536
          %v538 = vpop.xlane.xlu0 %537
          %v539 = vadd.f32 %v493, %v494
          %v540 = vadd.f32 %v539, %v495
          %v541 = vadd.f32 %v540, %v496
          %v542 = vadd.f32 %v541, %v497
          %v543 = vadd.f32 %v542, %v498
          %544 = vadd.xlane.f32.xlu0 %v543
          %v545 = vpop.xlane.xlu0 %544
          %v546 = vadd.f32 %v499, %v500
          %v547 = vadd.f32 %v546, %v501
          %v548 = vadd.f32 %v547, %v502
          %v549 = vadd.f32 %v548, %v503
          %v550 = vadd.f32 %v549, %v504
          %551 = vadd.xlane.f32.xlu0 %v550
          %v552 = vpop.xlane.xlu0 %551
          %v553 = vadd.f32 %v505, %v506
          %v554 = vadd.f32 %v553, %v507
          %v555 = vadd.f32 %v554, %v508
          %v556 = vadd.f32 %v555, %v509
          %v557 = vadd.f32 %v556, %v510
          %558 = vadd.xlane.f32.xlu0 %v557
          %v559 = vpop.xlane.xlu0 %558
          %v560 = vmul.f32 %v426, 0.0013020834
          %v561 = vmul.f32 %v433, 0.0013020834
          %v562 = vmul.f32 %v440, 0.0013020834
          %v563 = vmul.f32 %v447, 0.0013020834
          %v564 = vmul.f32 %v454, 0.0013020834
          %v565 = vmul.f32 %v461, 0.0013020834
          %v566 = vmul.f32 %v468, 0.0013020834
          %v567 = vmul.f32 %v517, 0.0013020834
          %v568 = vmul.f32 %v524, 0.0013020834
          %v569 = vmul.f32 %v531, 0.0013020834
          %v570 = vmul.f32 %v538, 0.0013020834
          %v571 = vmul.f32 %v545, 0.0013020834
          %v572 = vmul.f32 %v552, 0.0013020834
          %v573 = vmul.f32 %v559, 0.0013020834
          %v574 = vmul.f32 %v560, %v560
          %v575 = vmul.f32 %v561, %v561
          %v576 = vmul.f32 %v562, %v562
          %v577 = vmul.f32 %v563, %v563
          %v578 = vmul.f32 %v564, %v564
          %v579 = vmul.f32 %v565, %v565
          %v580 = vmul.f32 %v566, %v566
          %v581 = vsub.f32 %v567, %v574
          %v582 = vsub.f32 %v568, %v575
          %v583 = vsub.f32 %v569, %v576
          %v584 = vsub.f32 %v570, %v577
          %v585 = vsub.f32 %v571, %v578
          %v586 = vsub.f32 %v572, %v579
          %v587 = vsub.f32 %v573, %v580
          %v588 = vsub.f32 %v378, %v560
          %v589 = vsub.f32 %v379, %v560
          %v590 = vsub.f32 %v380, %v560
          %v591 = vsub.f32 %v381, %v560
          %v592 = vsub.f32 %v382, %v560
          %v593 = vsub.f32 %v383, %v560
          %v594 = vsub.f32 %v384, %v561
          %v595 = vsub.f32 %v385, %v561
          %v596 = vsub.f32 %v386, %v561
          %v597 = vsub.f32 %v387, %v561
          %v598 = vsub.f32 %v388, %v561
          %v599 = vsub.f32 %v389, %v561
          %v600 = vsub.f32 %v390, %v562
          %v601 = vsub.f32 %v391, %v562
          %v602 = vsub.f32 %v392, %v562
          %v603 = vsub.f32 %v393, %v562
          %v604 = vsub.f32 %v394, %v562
          %v605 = vsub.f32 %v395, %v562
          %v606 = vsub.f32 %v396, %v563
          %v607 = vsub.f32 %v397, %v563
          %v608 = vsub.f32 %v398, %v563
          %v609 = vsub.f32 %v399, %v563
          %v610 = vsub.f32 %v400, %v563
          %v611 = vsub.f32 %v401, %v563
          %v612 = vsub.f32 %v402, %v564
          %v613 = vsub.f32 %v403, %v564
          %v614 = vsub.f32 %v404, %v564
          %v615 = vsub.f32 %v405, %v564
          %v616 = vsub.f32 %v406, %v564
          %v617 = vsub.f32 %v407, %v564
          %v618 = vsub.f32 %v408, %v565
          %v619 = vsub.f32 %v409, %v565
          %v620 = vsub.f32 %v410, %v565
          %v621 = vsub.f32 %v411, %v565
          %v622 = vsub.f32 %v412, %v565
          %v623 = vsub.f32 %v413, %v565
          %v624 = vsub.f32 %v414, %v566
          %v625 = vsub.f32 %v415, %v566
          %v626 = vsub.f32 %v416, %v566
          %v627 = vsub.f32 %v417, %v566
          %v628 = vsub.f32 %v418, %v566
          %v629 = vsub.f32 %v419, %v566
          %v630 = vadd.f32 %v581, 1e-05
          %v631 = vadd.f32 %v582, 1e-05
          %v632 = vadd.f32 %v583, 1e-05
          %v633 = vadd.f32 %v584, 1e-05
          %v634 = vadd.f32 %v585, 1e-05
          %v635 = vadd.f32 %v586, 1e-05
          %v636 = vadd.f32 %v587, 1e-05
          %v637 = vrsqrt.pop %v630
          %v638 = vmul.f32 %v637, %v630
          %v639 = vmul.f32 %v638, %v637
          %v640 = vmul.f32 0.5, %v639
          %v641 = vsub.f32 1.5, %v640
          %v642 = vmul.f32 %v637, %v641
          %vm643 = vweird.f32 %v630
          %vm644 = vweird.f32 %v637
          %vm645 = vmor %vm643, %vm644
          %v646 = vsel %vm645, %v637, %v642
          %v647 = vrsqrt.pop %v631
          %v648 = vmul.f32 %v647, %v631
          %v649 = vmul.f32 %v648, %v647
          %v650 = vmul.f32 0.5, %v649
          %v651 = vsub.f32 1.5, %v650
          %v652 = vmul.f32 %v647, %v651
          %vm653 = vweird.f32 %v631
          %vm654 = vweird.f32 %v647
          %vm655 = vmor %vm653, %vm654
          %v656 = vsel %vm655, %v647, %v652
          %v657 = vrsqrt.pop %v632
          %v658 = vmul.f32 %v657, %v632
          %v659 = vmul.f32 %v658, %v657
          %v660 = vmul.f32 0.5, %v659
          %v661 = vsub.f32 1.5, %v660
          %v662 = vmul.f32 %v657, %v661
          %vm663 = vweird.f32 %v632
          %vm664 = vweird.f32 %v657
          %vm665 = vmor %vm663, %vm664
          %v666 = vsel %vm665, %v657, %v662
          %v667 = vrsqrt.pop %v633
          %v668 = vmul.f32 %v667, %v633
          %v669 = vmul.f32 %v668, %v667
          %v670 = vmul.f32 0.5, %v669
          %v671 = vsub.f32 1.5, %v670
          %v672 = vmul.f32 %v667, %v671
          %vm673 = vweird.f32 %v633
          %vm674 = vweird.f32 %v667
          %vm675 = vmor %vm673, %vm674
          %v676 = vsel %vm675, %v667, %v672
          %v677 = vrsqrt.pop %v634
          %v678 = vmul.f32 %v677, %v634
          %v679 = vmul.f32 %v678, %v677
          %v680 = vmul.f32 0.5, %v679
          %v681 = vsub.f32 1.5, %v680
          %v682 = vmul.f32 %v677, %v681
          %vm683 = vweird.f32 %v634
          %vm684 = vweird.f32 %v677
          %vm685 = vmor %vm683, %vm684
          %v686 = vsel %vm685, %v677, %v682
          %v687 = vrsqrt.pop %v635
          %v688 = vmul.f32 %v687, %v635
          %v689 = vmul.f32 %v688, %v687
          %v690 = vmul.f32 0.5, %v689
          %v691 = vsub.f32 1.5, %v690
          %v692 = vmul.f32 %v687, %v691
          %vm693 = vweird.f32 %v635
          %vm694 = vweird.f32 %v687
          %vm695 = vmor %vm693, %vm694
          %v696 = vsel %vm695, %v687, %v692
          %v697 = vrsqrt.pop %v636
          %v698 = vmul.f32 %v697, %v636
          %v699 = vmul.f32 %v698, %v697
          %v700 = vmul.f32 0.5, %v699
          %v701 = vsub.f32 1.5, %v700
          %v702 = vmul.f32 %v697, %v701
          %vm703 = vweird.f32 %v636
          %vm704 = vweird.f32 %v697
          %vm705 = vmor %vm703, %vm704
          %v706 = vsel %vm705, %v697, %v702
          %v707 = vmul.f32 %v588, %v646
          %v708 = vmul.f32 %v589, %v646
          %v709 = vmul.f32 %v590, %v646
          %v710 = vmul.f32 %v591, %v646
          %v711 = vmul.f32 %v592, %v646
          %v712 = vmul.f32 %v593, %v646
          %v713 = vmul.f32 %v594, %v656
          %v714 = vmul.f32 %v595, %v656
          %v715 = vmul.f32 %v596, %v656
          %v716 = vmul.f32 %v597, %v656
          %v717 = vmul.f32 %v598, %v656
          %v718 = vmul.f32 %v599, %v656
          %v719 = vmul.f32 %v600, %v666
          %v720 = vmul.f32 %v601, %v666
          %v721 = vmul.f32 %v602, %v666
          %v722 = vmul.f32 %v603, %v666
          %v723 = vmul.f32 %v604, %v666
          %v724 = vmul.f32 %v605, %v666
          %v725 = vmul.f32 %v606, %v676
          %v726 = vmul.f32 %v607, %v676
          %v727 = vmul.f32 %v608, %v676
          %v728 = vmul.f32 %v609, %v676
          %v729 = vmul.f32 %v610, %v676
          %v730 = vmul.f32 %v611, %v676
          %v731 = vmul.f32 %v612, %v686
          %v732 = vmul.f32 %v613, %v686
          %v733 = vmul.f32 %v614, %v686
          %v734 = vmul.f32 %v615, %v686
          %v735 = vmul.f32 %v616, %v686
          %v736 = vmul.f32 %v617, %v686
          %v737 = vmul.f32 %v618, %v696
          %v738 = vmul.f32 %v619, %v696
          %v739 = vmul.f32 %v620, %v696
          %v740 = vmul.f32 %v621, %v696
          %v741 = vmul.f32 %v622, %v696
          %v742 = vmul.f32 %v623, %v696
          %v743 = vmul.f32 %v624, %v706
          %v744 = vmul.f32 %v625, %v706
          %v745 = vmul.f32 %v626, %v706
          %v746 = vmul.f32 %v627, %v706
          %v747 = vmul.f32 %v628, %v706
          %v748 = vmul.f32 %v629, %v706
          %v749 = vpack.c.bf16 %v708, %v707
          %v750 = vpack.c.bf16 %v710, %v709
          %v751 = vpack.c.bf16 %v712, %v711
          %v752 = vpack.c.bf16 %v714, %v713
          %v753 = vpack.c.bf16 %v716, %v715
          %v754 = vpack.c.bf16 %v718, %v717
          %v755 = vpack.c.bf16 %v720, %v719
          %v756 = vpack.c.bf16 %v722, %v721
          %v757 = vpack.c.bf16 %v724, %v723
          %v758 = vpack.c.bf16 %v726, %v725
          %v759 = vpack.c.bf16 %v728, %v727
          %v760 = vpack.c.bf16 %v730, %v729
          %v761 = vpack.c.bf16 %v732, %v731
          %v762 = vpack.c.bf16 %v734, %v733
          %v763 = vpack.c.bf16 %v736, %v735
          %v764 = vpack.c.bf16 %v738, %v737
          %v765 = vpack.c.bf16 %v740, %v739
          %v766 = vpack.c.bf16 %v742, %v741
          %v767 = vpack.c.bf16 %v744, %v743
          %v768 = vpack.c.bf16 %v746, %v745
          %v769 = vpack.c.bf16 %v748, %v747
          %770 = vst [vmem:[#allocation2] sm:$0xff] %v749
          %771 = vst [vmem:[#allocation2 + $0x8] sm:$0xff] %v750
          %772 = vst [vmem:[#allocation2 + $0x10] sm:$0xff] %v751
          %773 = vst [vmem:[#allocation2 + $0x18] sm:$0xff] %v752
          %774 = vst [vmem:[#allocation2 + $0x20] sm:$0xff] %v753
          %775 = vst [vmem:[#allocation2 + $0x28] sm:$0xff] %v754
          %776 = vst [vmem:[#allocation2 + $0x30] sm:$0xff] %v755
          %777 = vst [vmem:[#allocation2 + $0x38] sm:$0xff] %v756
          %778 = vst [vmem:[#allocation2 + $0x40] sm:$0xff] %v757
          %779 = vst [vmem:[#allocation2 + $0x48] sm:$0xff] %v758
          %780 = vst [vmem:[#allocation2 + $0x50] sm:$0xff] %v759
          %781 = vst [vmem:[#allocation2 + $0x58] sm:$0xff] %v760
          %782 = vst [vmem:[#allocation2 + $0x60] sm:$0xff] %v761
          %783 = vst [vmem:[#allocation2 + $0x68] sm:$0xff] %v762
          %784 = vst [vmem:[#allocation2 + $0x70] sm:$0xff] %v763
          %785 = vst [vmem:[#allocation2 + $0x78] sm:$0xff] %v764
          %786 = vst [vmem:[#allocation2 + $0x80] sm:$0xff] %v765
          %787 = vst [vmem:[#allocation2 + $0x88] sm:$0xff] %v766
          %788 = vst [vmem:[#allocation2 + $0x90] sm:$0xff] %v767
          %789 = vst [vmem:[#allocation2 + $0x98] sm:$0xff] %v768
          %790 = vst [vmem:[#allocation2 + $0xa0] sm:$0xff] %v769
        $region48: #{fused_forward.1} parent=35 // pred_fallthru
          _
        %v791 = vld [vmem:[#allocation2] sm:$0xff]
        %v792 = vld [vmem:[#allocation2 + $0x8] sm:$0xff]
        %v793 = vld [vmem:[#allocation2 + $0x10] sm:$0xff]
        %v794 = vld [vmem:[#allocation2 + $0x18] sm:$0xff]
        %v795 = vld [vmem:[#allocation2 + $0x20] sm:$0xff]
        %v796 = vld [vmem:[#allocation2 + $0x28] sm:$0xff]
        %v797 = vld [vmem:[#allocation2 + $0x30] sm:$0xff]
        %v798 = vld [vmem:[#allocation2 + $0x38] sm:$0xff]
        %v799 = vld [vmem:[#allocation2 + $0x40] sm:$0xff]
        %v800 = vld [vmem:[#allocation2 + $0x48] sm:$0xff]
        %v801 = vld [vmem:[#allocation2 + $0x50] sm:$0xff]
        %v802 = vld [vmem:[#allocation2 + $0x58] sm:$0xff]
        %v803 = vld [vmem:[#allocation2 + $0x60] sm:$0xff]
        %v804 = vld [vmem:[#allocation2 + $0x68] sm:$0xff]
        %v805 = vld [vmem:[#allocation2 + $0x70] sm:$0xff]
        %v806 = vld [vmem:[#allocation2 + $0x78] sm:$0xff]
        %v807 = vld [vmem:[#allocation2 + $0x80] sm:$0xff]
        %v808 = vld [vmem:[#allocation2 + $0x88] sm:$0xff]
        %v809 = vld [vmem:[#allocation2 + $0x90] sm:$0xff]
        %v810 = vld [vmem:[#allocation2 + $0x98] sm:$0xff]
        %v811 = vld [vmem:[#allocation2 + $0xa0] sm:$0xff]
        %v812 = vld [vmem:[%s241] sm:$0xff]
        %v813 = vld [vmem:[%s241 + $0x8] sm:$0xff]
        %v814 = vld [vmem:[%s241 + $0x10] sm:$0xff]
        %v815 = vld [vmem:[%s241 + $0x18] sm:$0xff]
        %v816 = vld [vmem:[%s241 + $0x20] sm:$0xff]
        %v817 = vld [vmem:[%s241 + $0x28] sm:$0xff]
        %v818 = vld [vmem:[%s241 + $0x30] sm:$0xff]
        %v819 = vld [vmem:[%s241 + $0x38] sm:$0xff]
        %v820 = vld [vmem:[%s241 + $0x40] sm:$0xff]
        %v821 = vld [vmem:[%s241 + $0x48] sm:$0xff]
        %v822 = vld [vmem:[%s241 + $0x50] sm:$0xff]
        %v823 = vld [vmem:[%s241 + $0x58] sm:$0xff]
        %v824 = vld [vmem:[%s241 + $0x60] sm:$0xff]
        %v825 = vld [vmem:[%s241 + $0x68] sm:$0xff]
        %v826 = vld [vmem:[%s241 + $0x70] sm:$0xff]
        %v827 = vld [vmem:[%s241 + $0x78] sm:$0xff]
        %v828 = vld [vmem:[%s241 + $0x80] sm:$0xff]
        %v829 = vld [vmem:[%s241 + $0x88] sm:$0xff]
        %v830 = vld [vmem:[%s241 + $0x90] sm:$0xff]
        %v831 = vld [vmem:[%s241 + $0x98] sm:$0xff]
        %v832 = vld [vmem:[%s241 + $0xa0] sm:$0xff]
        %v833 = vld [vmem:[%s241 + $0xa8] sm:$0xff]
        %v834 = vld [vmem:[%s241 + $0xb0] sm:$0xff]
        %v835 = vld [vmem:[%s241 + $0xb8] sm:$0xff]
        %v836 = vld [vmem:[%s241 + $0xc0] sm:$0xff]
        %v837 = vld [vmem:[%s241 + $0xc8] sm:$0xff]
        %v838 = vld [vmem:[%s241 + $0xd0] sm:$0xff]
        %v839 = vld [vmem:[%s241 + $0xd8] sm:$0xff]
        %v840 = vld [vmem:[%s241 + $0xe0] sm:$0xff]
        %v841 = vld [vmem:[%s241 + $0xe8] sm:$0xff]
        %v842 = vld [vmem:[%s241 + $0xf0] sm:$0xff]
        %v843 = vld [vmem:[%s241 + $0xf8] sm:$0xff]
        %v844 = vld [vmem:[%s241 + $0x100] sm:$0xff]
        %v845 = vld [vmem:[%s241 + $0x108] sm:$0xff]
        %v846 = vld [vmem:[%s241 + $0x110] sm:$0xff]
        %v847 = vld [vmem:[%s241 + $0x118] sm:$0xff]
        %v848 = vld [vmem:[%s241 + $0x120] sm:$0xff]
        %v849 = vld [vmem:[%s241 + $0x128] sm:$0xff]
        %v850 = vld [vmem:[%s241 + $0x130] sm:$0xff]
        %v851 = vld [vmem:[%s241 + $0x138] sm:$0xff]
        %v852 = vld [vmem:[%s241 + $0x140] sm:$0xff]
        %v853 = vld [vmem:[%s241 + $0x148] sm:$0xff]
        %v854 = vld [vmem:[%s241 + $0x150] sm:$0xff]
        %v855 = vld [vmem:[%s241 + $0x158] sm:$0xff]
        %v856 = vld [vmem:[%s241 + $0x160] sm:$0xff]
        %v857 = vld [vmem:[%s241 + $0x168] sm:$0xff]
        %v858 = vld [vmem:[%s241 + $0x170] sm:$0xff]
        %v859 = vld [vmem:[%s241 + $0x178] sm:$0xff]
        %v860 = vld [vmem:[%s241 + $0x180] sm:$0xff]
        %v861 = vld [vmem:[%s241 + $0x188] sm:$0xff]
        %v862 = vld [vmem:[%s241 + $0x190] sm:$0xff]
        %v863 = vld [vmem:[%s241 + $0x198] sm:$0xff]
        %v864 = vld [vmem:[%s241 + $0x1a0] sm:$0xff]
        %v865 = vld [vmem:[%s241 + $0x1a8] sm:$0xff]
        %v866 = vld [vmem:[%s241 + $0x1b0] sm:$0xff]
        %v867 = vld [vmem:[%s241 + $0x1b8] sm:$0xff]
        %v868 = vld [vmem:[%s241 + $0x1c0] sm:$0xff]
        %v869 = vld [vmem:[%s241 + $0x1c8] sm:$0xff]
        %v870 = vld [vmem:[%s241 + $0x1d0] sm:$0xff]
        %v871 = vld [vmem:[%s241 + $0x1d8] sm:$0xff]
        %v872 = vld [vmem:[%s241 + $0x1e0] sm:$0xff]
        %v873 = vld [vmem:[%s241 + $0x1e8] sm:$0xff]
        %v874 = vld [vmem:[%s241 + $0x1f0] sm:$0xff]
        %v875 = vld [vmem:[%s241 + $0x1f8] sm:$0xff]
        %v876 = vld [vmem:[%s241 + $0x200] sm:$0xff]
        %v877 = vld [vmem:[%s241 + $0x208] sm:$0xff]
        %v878 = vld [vmem:[%s241 + $0x210] sm:$0xff]
        %v879 = vld [vmem:[%s241 + $0x218] sm:$0xff]
        %v880 = vld [vmem:[%s241 + $0x220] sm:$0xff]
        %v881 = vld [vmem:[%s241 + $0x228] sm:$0xff]
        %v882 = vld [vmem:[%s241 + $0x230] sm:$0xff]
        %v883 = vld [vmem:[%s241 + $0x238] sm:$0xff]
        %v884 = vld [vmem:[%s241 + $0x240] sm:$0xff]
        %v885 = vld [vmem:[%s241 + $0x248] sm:$0xff]
        %v886 = vld [vmem:[%s241 + $0x250] sm:$0xff]
        %v887 = vld [vmem:[%s241 + $0x258] sm:$0xff]
        %v888 = vld [vmem:[%s241 + $0x260] sm:$0xff]
        %v889 = vld [vmem:[%s241 + $0x268] sm:$0xff]
        %v890 = vld [vmem:[%s241 + $0x270] sm:$0xff]
        %v891 = vld [vmem:[%s241 + $0x278] sm:$0xff]
        %v892 = vld [vmem:[%s241 + $0x280] sm:$0xff]
        %v893 = vld [vmem:[%s241 + $0x288] sm:$0xff]
        %v894 = vld [vmem:[%s241 + $0x290] sm:$0xff]
        %v895 = vld [vmem:[%s241 + $0x298] sm:$0xff]
        %v896 = vld [vmem:[%s241 + $0x2a0] sm:$0xff]
        %v897 = vld [vmem:[%s241 + $0x2a8] sm:$0xff]
        %v898 = vld [vmem:[%s241 + $0x2b0] sm:$0xff]
        %v899 = vld [vmem:[%s241 + $0x2b8] sm:$0xff]
        %v900 = vld [vmem:[%s241 + $0x2c0] sm:$0xff]
        %v901 = vld [vmem:[%s241 + $0x2c8] sm:$0xff]
        %v902 = vld [vmem:[%s241 + $0x2d0] sm:$0xff]
        %v903 = vld [vmem:[%s241 + $0x2d8] sm:$0xff]
        %v904 = vld [vmem:[%s241 + $0x2e0] sm:$0xff]
        %v905 = vld [vmem:[%s241 + $0x2e8] sm:$0xff]
        %v906 = vld [vmem:[%s241 + $0x2f0] sm:$0xff]
        %v907 = vld [vmem:[%s241 + $0x2f8] sm:$0xff]
        %v908 = vld [vmem:[%s241 + $0x300] sm:$0xff]
        %v909 = vld [vmem:[%s241 + $0x308] sm:$0xff]
        %v910 = vld [vmem:[%s241 + $0x310] sm:$0xff]
        %v911 = vld [vmem:[%s241 + $0x318] sm:$0xff]
        %v912 = vld [vmem:[%s241 + $0x320] sm:$0xff]
        %v913 = vld [vmem:[%s241 + $0x328] sm:$0xff]
        %v914 = vld [vmem:[%s241 + $0x330] sm:$0xff]
        %v915 = vld [vmem:[%s241 + $0x338] sm:$0xff]
        %v916 = vld [vmem:[%s241 + $0x340] sm:$0xff]
        %v917 = vld [vmem:[%s241 + $0x348] sm:$0xff]
        %v918 = vld [vmem:[%s241 + $0x350] sm:$0xff]
        %v919 = vld [vmem:[%s241 + $0x358] sm:$0xff]
        %v920 = vld [vmem:[%s241 + $0x360] sm:$0xff]
        %v921 = vld [vmem:[%s241 + $0x368] sm:$0xff]
        %v922 = vld [vmem:[%s241 + $0x370] sm:$0xff]
        %v923 = vld [vmem:[%s241 + $0x378] sm:$0xff]
        %v924 = vld [vmem:[%s241 + $0x380] sm:$0xff]
        %v925 = vld [vmem:[%s241 + $0x388] sm:$0xff]
        %v926 = vld [vmem:[%s241 + $0x390] sm:$0xff]
        %v927 = vld [vmem:[%s241 + $0x398] sm:$0xff]
        %v928 = vld [vmem:[%s241 + $0x3a0] sm:$0xff]
        %v929 = vld [vmem:[%s241 + $0x3a8] sm:$0xff]
        %v930 = vld [vmem:[%s241 + $0x3b0] sm:$0xff]
        %v931 = vld [vmem:[%s241 + $0x3b8] sm:$0xff]
        %v932 = vld [vmem:[%s241 + $0x3c0] sm:$0xff]
        %v933 = vld [vmem:[%s241 + $0x3c8] sm:$0xff]
        %v934 = vld [vmem:[%s241 + $0x3d0] sm:$0xff]
        %v935 = vld [vmem:[%s241 + $0x3d8] sm:$0xff]
        %v936 = vld [vmem:[%s241 + $0x3e0] sm:$0xff]
        %v937 = vld [vmem:[%s241 + $0x3e8] sm:$0xff]
        %v938 = vld [vmem:[%s241 + $0x3f0] sm:$0xff]
        %v939 = vld [vmem:[%s241 + $0x3f8] sm:$0xff]
        %v940 = vld [vmem:[%s241 + $0x400] sm:$0xff]
        %v941 = vld [vmem:[%s241 + $0x408] sm:$0xff]
        %v942 = vld [vmem:[%s241 + $0x410] sm:$0xff]
        %v943 = vld [vmem:[%s241 + $0x418] sm:$0xff]
        %v944 = vld [vmem:[%s241 + $0x420] sm:$0xff]
        %v945 = vld [vmem:[%s241 + $0x428] sm:$0xff]
        %v946 = vld [vmem:[%s241 + $0x430] sm:$0xff]
        %v947 = vld [vmem:[%s241 + $0x438] sm:$0xff]
        %v948 = vld [vmem:[%s241 + $0x440] sm:$0xff]
        %v949 = vld [vmem:[%s241 + $0x448] sm:$0xff]
        %v950 = vld [vmem:[%s241 + $0x450] sm:$0xff]
        %v951 = vld [vmem:[%s241 + $0x458] sm:$0xff]
        %v952 = vld [vmem:[%s241 + $0x460] sm:$0xff]
        %v953 = vld [vmem:[%s241 + $0x468] sm:$0xff]
        %v954 = vld [vmem:[%s241 + $0x470] sm:$0xff]
        %v955 = vld [vmem:[%s241 + $0x478] sm:$0xff]
        %v956 = vld [vmem:[%s241 + $0x480] sm:$0xff]
        %v957 = vld [vmem:[%s241 + $0x488] sm:$0xff]
        %v958 = vld [vmem:[%s241 + $0x490] sm:$0xff]
        %v959 = vld [vmem:[%s241 + $0x498] sm:$0xff]
        %v960 = vld [vmem:[%s241 + $0x4a0] sm:$0xff]
        %v961 = vld [vmem:[%s241 + $0x4a8] sm:$0xff]
        %v962 = vld [vmem:[%s241 + $0x4b0] sm:$0xff]
        %v963 = vld [vmem:[%s241 + $0x4b8] sm:$0xff]
        %v964 = vld [vmem:[%s241 + $0x4c0] sm:$0xff]
        %v965 = vld [vmem:[%s241 + $0x4c8] sm:$0xff]
        %v966 = vld [vmem:[%s241 + $0x4d0] sm:$0xff]
        %v967 = vld [vmem:[%s241 + $0x4d8] sm:$0xff]
        %v968 = vld [vmem:[%s241 + $0x4e0] sm:$0xff]
        %v969 = vld [vmem:[%s241 + $0x4e8] sm:$0xff]
        %v970 = vld [vmem:[%s241 + $0x4f0] sm:$0xff]
        %v971 = vld [vmem:[%s241 + $0x4f8] sm:$0xff]
        %v972 = vld [vmem:[%s241 + $0x500] sm:$0xff]
        %v973 = vld [vmem:[%s241 + $0x508] sm:$0xff]
        %v974 = vld [vmem:[%s241 + $0x510] sm:$0xff]
        %v975 = vld [vmem:[%s241 + $0x518] sm:$0xff]
        %v976 = vld [vmem:[%s241 + $0x520] sm:$0xff]
        %v977 = vld [vmem:[%s241 + $0x528] sm:$0xff]
        %v978 = vld [vmem:[%s241 + $0x530] sm:$0xff]
        %v979 = vld [vmem:[%s241 + $0x538] sm:$0xff]
        %v980 = vld [vmem:[%s241 + $0x540] sm:$0xff]
        %v981 = vld [vmem:[%s241 + $0x548] sm:$0xff]
        %v982 = vld [vmem:[%s241 + $0x550] sm:$0xff]
        %v983 = vld [vmem:[%s241 + $0x558] sm:$0xff]
        %v984 = vld [vmem:[%s241 + $0x560] sm:$0xff]
        %v985 = vld [vmem:[%s241 + $0x568] sm:$0xff]
        %v986 = vld [vmem:[%s241 + $0x570] sm:$0xff]
        %v987 = vld [vmem:[%s241 + $0x578] sm:$0xff]
        %v988 = vld [vmem:[%s241 + $0x580] sm:$0xff]
        %v989 = vld [vmem:[%s241 + $0x588] sm:$0xff]
        %v990 = vld [vmem:[%s241 + $0x590] sm:$0xff]
        %v991 = vld [vmem:[%s241 + $0x598] sm:$0xff]
        %v992 = vld [vmem:[%s241 + $0x5a0] sm:$0xff]
        %v993 = vld [vmem:[%s241 + $0x5a8] sm:$0xff]
        %v994 = vld [vmem:[%s241 + $0x5b0] sm:$0xff]
        %v995 = vld [vmem:[%s241 + $0x5b8] sm:$0xff]
        %v996 = vld [vmem:[%s241 + $0x5c0] sm:$0xff]
        %v997 = vld [vmem:[%s241 + $0x5c8] sm:$0xff]
        %v998 = vld [vmem:[%s241 + $0x5d0] sm:$0xff]
        %v999 = vld [vmem:[%s241 + $0x5d8] sm:$0xff]
        %v1000 = vld [vmem:[%s241 + $0x5e0] sm:$0xff]
        %v1001 = vld [vmem:[%s241 + $0x5e8] sm:$0xff]
        %v1002 = vld [vmem:[%s241 + $0x5f0] sm:$0xff]
        %v1003 = vld [vmem:[%s241 + $0x5f8] sm:$0xff]
        %v1004 = vld [vmem:[%s241 + $0x600] sm:$0xff]
        %v1005 = vld [vmem:[%s241 + $0x608] sm:$0xff]
        %v1006 = vld [vmem:[%s241 + $0x610] sm:$0xff]
        %v1007 = vld [vmem:[%s241 + $0x618] sm:$0xff]
        %v1008 = vld [vmem:[%s241 + $0x620] sm:$0xff]
        %v1009 = vld [vmem:[%s241 + $0x628] sm:$0xff]
        %v1010 = vld [vmem:[%s241 + $0x630] sm:$0xff]
        %v1011 = vld [vmem:[%s241 + $0x638] sm:$0xff]
        %v1012 = vld [vmem:[%s241 + $0x640] sm:$0xff]
        %v1013 = vld [vmem:[%s241 + $0x648] sm:$0xff]
        %v1014 = vld [vmem:[%s241 + $0x650] sm:$0xff]
        %v1015 = vld [vmem:[%s241 + $0x658] sm:$0xff]
        %v1016 = vld [vmem:[%s241 + $0x660] sm:$0xff]
        %v1017 = vld [vmem:[%s241 + $0x668] sm:$0xff]
        %v1018 = vld [vmem:[%s241 + $0x670] sm:$0xff]
        %v1019 = vld [vmem:[%s241 + $0x678] sm:$0xff]
        %v1020 = vld [vmem:[%s241 + $0x680] sm:$0xff]
        %v1021 = vld [vmem:[%s241 + $0x688] sm:$0xff]
        %v1022 = vld [vmem:[%s241 + $0x690] sm:$0xff]
        %v1023 = vld [vmem:[%s241 + $0x698] sm:$0xff]
        %v1024 = vld [vmem:[%s241 + $0x6a0] sm:$0xff]
        %v1025 = vld [vmem:[%s241 + $0x6a8] sm:$0xff]
        %v1026 = vld [vmem:[%s241 + $0x6b0] sm:$0xff]
        %v1027 = vld [vmem:[%s241 + $0x6b8] sm:$0xff]
        %v1028 = vld [vmem:[%s241 + $0x6c0] sm:$0xff]
        %v1029 = vld [vmem:[%s241 + $0x6c8] sm:$0xff]
        %v1030 = vld [vmem:[%s241 + $0x6d0] sm:$0xff]
        %v1031 = vld [vmem:[%s241 + $0x6d8] sm:$0xff]
        %v1032 = vld [vmem:[%s241 + $0x6e0] sm:$0xff]
        %v1033 = vld [vmem:[%s241 + $0x6e8] sm:$0xff]
        %v1034 = vld [vmem:[%s241 + $0x6f0] sm:$0xff]
        %v1035 = vld [vmem:[%s241 + $0x6f8] sm:$0xff]
        %v1036 = vld [vmem:[%s241 + $0x700] sm:$0xff]
        %v1037 = vld [vmem:[%s241 + $0x708] sm:$0xff]
        %v1038 = vld [vmem:[%s241 + $0x710] sm:$0xff]
        %v1039 = vld [vmem:[%s241 + $0x718] sm:$0xff]
        %v1040 = vld [vmem:[%s241 + $0x720] sm:$0xff]
        %v1041 = vld [vmem:[%s241 + $0x728] sm:$0xff]
        %v1042 = vld [vmem:[%s241 + $0x730] sm:$0xff]
        %v1043 = vld [vmem:[%s241 + $0x738] sm:$0xff]
        %v1044 = vld [vmem:[%s241 + $0x740] sm:$0xff]
        %v1045 = vld [vmem:[%s241 + $0x748] sm:$0xff]
        %v1046 = vld [vmem:[%s241 + $0x750] sm:$0xff]
        %v1047 = vld [vmem:[%s241 + $0x758] sm:$0xff]
        %v1048 = vld [vmem:[%s241 + $0x760] sm:$0xff]
        %v1049 = vld [vmem:[%s241 + $0x768] sm:$0xff]
        %v1050 = vld [vmem:[%s241 + $0x770] sm:$0xff]
        %v1051 = vld [vmem:[%s241 + $0x778] sm:$0xff]
        %v1052 = vld [vmem:[%s241 + $0x780] sm:$0xff]
        %v1053 = vld [vmem:[%s241 + $0x788] sm:$0xff]
        %v1054 = vld [vmem:[%s241 + $0x790] sm:$0xff]
        %v1055 = vld [vmem:[%s241 + $0x798] sm:$0xff]
        %v1056 = vld [vmem:[%s241 + $0x7a0] sm:$0xff]
        %v1057 = vld [vmem:[%s241 + $0x7a8] sm:$0xff]
        %v1058 = vld [vmem:[%s241 + $0x7b0] sm:$0xff]
        %v1059 = vld [vmem:[%s241 + $0x7b8] sm:$0xff]
        %v1060 = vld [vmem:[%s241 + $0x7c0] sm:$0xff]
        %v1061 = vld [vmem:[%s241 + $0x7c8] sm:$0xff]
        %v1062 = vld [vmem:[%s241 + $0x7d0] sm:$0xff]
        %v1063 = vld [vmem:[%s241 + $0x7d8] sm:$0xff]
        %v1064 = vld [vmem:[%s241 + $0x7e0] sm:$0xff]
        %v1065 = vld [vmem:[%s241 + $0x7e8] sm:$0xff]
        %v1066 = vld [vmem:[%s241 + $0x7f0] sm:$0xff]
        %v1067 = vld [vmem:[%s241 + $0x7f8] sm:$0xff]
        %v1068 = vld [vmem:[%s241 + $0x800] sm:$0xff]
        %v1069 = vld [vmem:[%s241 + $0x808] sm:$0xff]
        %v1070 = vld [vmem:[%s241 + $0x810] sm:$0xff]
        %v1071 = vld [vmem:[%s241 + $0x818] sm:$0xff]
        %v1072 = vld [vmem:[%s241 + $0x820] sm:$0xff]
        %v1073 = vld [vmem:[%s241 + $0x828] sm:$0xff]
        %v1074 = vld [vmem:[%s241 + $0x830] sm:$0xff]
        %v1075 = vld [vmem:[%s241 + $0x838] sm:$0xff]
        %v1076 = vld [vmem:[%s241 + $0x840] sm:$0xff]
        %v1077 = vld [vmem:[%s241 + $0x848] sm:$0xff]
        %v1078 = vld [vmem:[%s241 + $0x850] sm:$0xff]
        %v1079 = vld [vmem:[%s241 + $0x858] sm:$0xff]
        %v1080 = vld [vmem:[%s241 + $0x860] sm:$0xff]
        %v1081 = vld [vmem:[%s241 + $0x868] sm:$0xff]
        %v1082 = vld [vmem:[%s241 + $0x870] sm:$0xff]
        %v1083 = vld [vmem:[%s241 + $0x878] sm:$0xff]
        %v1084 = vld [vmem:[%s241 + $0x880] sm:$0xff]
        %v1085 = vld [vmem:[%s241 + $0x888] sm:$0xff]
        %v1086 = vld [vmem:[%s241 + $0x890] sm:$0xff]
        %v1087 = vld [vmem:[%s241 + $0x898] sm:$0xff]
        %v1088 = vld [vmem:[%s241 + $0x8a0] sm:$0xff]
        %v1089 = vld [vmem:[%s241 + $0x8a8] sm:$0xff]
        %v1090 = vld [vmem:[%s241 + $0x8b0] sm:$0xff]
        %v1091 = vld [vmem:[%s241 + $0x8b8] sm:$0xff]
        %v1092 = vld [vmem:[%s241 + $0x8c0] sm:$0xff]
        %v1093 = vld [vmem:[%s241 + $0x8c8] sm:$0xff]
        %v1094 = vld [vmem:[%s241 + $0x8d0] sm:$0xff]
        %v1095 = vld [vmem:[%s241 + $0x8d8] sm:$0xff]
        %v1096 = vld [vmem:[%s241 + $0x8e0] sm:$0xff]
        %v1097 = vld [vmem:[%s241 + $0x8e8] sm:$0xff]
        %v1098 = vld [vmem:[%s241 + $0x8f0] sm:$0xff]
        %v1099 = vld [vmem:[%s241 + $0x8f8] sm:$0xff]
        %v1100 = vld [vmem:[%s251] sm:$0x3f]
        %v1102 = vperm.slane %v1100, 0
        %v1103 = vperm.slane %v1100, 1
        %v1104 = vperm.slane %v1100, 2
        %v1105 = vperm.slane %v1100, 3
        %v1106 = vperm.slane %v1100, 4
        %v1107 = vperm.slane %v1100, 5
        %v1135 = vunpack.c.l.b16 %v791
        %v1136 = vunpack.c.h.b16 %v791
        %v1137 = vunpack.c.l.b16 %v792
        %v1138 = vunpack.c.h.b16 %v792
        %v1139 = vunpack.c.l.b16 %v793
        %v1140 = vunpack.c.h.b16 %v793
        %v1141 = vunpack.c.l.b16 %v794
        %v1142 = vunpack.c.h.b16 %v794
        %v1143 = vunpack.c.l.b16 %v795
        %v1144 = vunpack.c.h.b16 %v795
        %v1145 = vunpack.c.l.b16 %v796
        %v1146 = vunpack.c.h.b16 %v796
        %v1147 = vunpack.c.l.b16 %v797
        %v1148 = vunpack.c.h.b16 %v797
        %v1149 = vunpack.c.l.b16 %v798
        %v1150 = vunpack.c.h.b16 %v798
        %v1151 = vunpack.c.l.b16 %v799
        %v1152 = vunpack.c.h.b16 %v799
        %v1153 = vunpack.c.l.b16 %v800
        %v1154 = vunpack.c.h.b16 %v800
        %v1155 = vunpack.c.l.b16 %v801
        %v1156 = vunpack.c.h.b16 %v801
        %v1157 = vunpack.c.l.b16 %v802
        %v1158 = vunpack.c.h.b16 %v802
        %v1159 = vunpack.c.l.b16 %v803
        %v1160 = vunpack.c.h.b16 %v803
        %v1161 = vunpack.c.l.b16 %v804
        %v1162 = vunpack.c.h.b16 %v804
        %v1163 = vunpack.c.l.b16 %v805
        %v1164 = vunpack.c.h.b16 %v805
        %v1165 = vunpack.c.l.b16 %v806
        %v1166 = vunpack.c.h.b16 %v806
        %v1167 = vunpack.c.l.b16 %v807
        %v1168 = vunpack.c.h.b16 %v807
        %v1169 = vunpack.c.l.b16 %v808
        %v1170 = vunpack.c.h.b16 %v808
        %v1171 = vunpack.c.l.b16 %v809
        %v1172 = vunpack.c.h.b16 %v809
        %v1173 = vunpack.c.l.b16 %v810
        %v1174 = vunpack.c.h.b16 %v810
        %v1175 = vunpack.c.l.b16 %v811
        %v1176 = vunpack.c.h.b16 %v811
        %v1177 = vpack.c.b16 %v1141, %v1135
        %v1178 = vpack.c.b16 %v1142, %v1136
        %v1179 = vpack.c.b16 %v1143, %v1137
        %v1180 = vpack.c.b16 %v1144, %v1138
        %v1181 = vpack.c.b16 %v1145, %v1139
        %v1182 = vpack.c.b16 %v1146, %v1140
        %v1183 = vpack.c.b16 %v1153, %v1147
        %v1184 = vpack.c.b16 %v1154, %v1148
        %v1185 = vpack.c.b16 %v1155, %v1149
        %v1186 = vpack.c.b16 %v1156, %v1150
        %v1187 = vpack.c.b16 %v1157, %v1151
        %v1188 = vpack.c.b16 %v1158, %v1152
        %v1189 = vpack.c.b16 %v1165, %v1159
        %v1190 = vpack.c.b16 %v1166, %v1160
        %v1191 = vpack.c.b16 %v1167, %v1161
        %v1192 = vpack.c.b16 %v1168, %v1162
        %v1193 = vpack.c.b16 %v1169, %v1163
        %v1194 = vpack.c.b16 %v1170, %v1164
        %v1195 = vpack.c.b16 %v1171, %v1171
        %v1196 = vpack.c.b16 %v1172, %v1172
        %v1197 = vpack.c.b16 %v1173, %v1173
        %v1198 = vpack.c.b16 %v1174, %v1174
        %v1199 = vpack.c.b16 %v1175, %v1175
        %v1200 = vpack.c.b16 %v1176, %v1176
        %v1513 = vunpack.c.l.b16 %v812
        %v1514 = vunpack.c.h.b16 %v812
        %v1515 = vunpack.c.l.b16 %v813
        %v1516 = vunpack.c.h.b16 %v813
        %v1517 = vunpack.c.l.b16 %v814
        %v1518 = vunpack.c.h.b16 %v814
        %v1519 = vunpack.c.l.b16 %v815
        %v1520 = vunpack.c.h.b16 %v815
        %v1521 = vunpack.c.l.b16 %v816
        %v1522 = vunpack.c.h.b16 %v816
        %v1523 = vunpack.c.l.b16 %v817
        %v1524 = vunpack.c.h.b16 %v817
        %v1525 = vunpack.c.l.b16 %v818
        %v1526 = vunpack.c.h.b16 %v818
        %v1527 = vunpack.c.l.b16 %v819
        %v1528 = vunpack.c.h.b16 %v819
        %v1529 = vunpack.c.l.b16 %v820
        %v1530 = vunpack.c.h.b16 %v820
        %v1531 = vunpack.c.l.b16 %v821
        %v1532 = vunpack.c.h.b16 %v821
        %v1533 = vunpack.c.l.b16 %v822
        %v1534 = vunpack.c.h.b16 %v822
        %v1535 = vunpack.c.l.b16 %v823
        %v1536 = vunpack.c.h.b16 %v823
        %v1537 = vunpack.c.l.b16 %v824
        %v1538 = vunpack.c.h.b16 %v824
        %v1539 = vunpack.c.l.b16 %v825
        %v1540 = vunpack.c.h.b16 %v825
        %v1541 = vunpack.c.l.b16 %v826
        %v1542 = vunpack.c.h.b16 %v826
        %v1543 = vunpack.c.l.b16 %v827
        %v1544 = vunpack.c.h.b16 %v827
        %v1545 = vunpack.c.l.b16 %v828
        %v1546 = vunpack.c.h.b16 %v828
        %v1547 = vunpack.c.l.b16 %v829
        %v1548 = vunpack.c.h.b16 %v829
        %v1549 = vunpack.c.l.b16 %v830
        %v1550 = vunpack.c.h.b16 %v830
        %v1551 = vunpack.c.l.b16 %v831
        %v1552 = vunpack.c.h.b16 %v831
        %v1553 = vunpack.c.l.b16 %v832
        %v1554 = vunpack.c.h.b16 %v832
        %v1555 = vunpack.c.l.b16 %v833
        %v1556 = vunpack.c.h.b16 %v833
        %v1557 = vunpack.c.l.b16 %v834
        %v1558 = vunpack.c.h.b16 %v834
        %v1559 = vunpack.c.l.b16 %v835
        %v1560 = vunpack.c.h.b16 %v835
        %v1561 = vunpack.c.l.b16 %v836
        %v1562 = vunpack.c.h.b16 %v836
        %v1563 = vunpack.c.l.b16 %v837
        %v1564 = vunpack.c.h.b16 %v837
        %v1565 = vunpack.c.l.b16 %v838
        %v1566 = vunpack.c.h.b16 %v838
        %v1567 = vunpack.c.l.b16 %v839
        %v1568 = vunpack.c.h.b16 %v839
        %v1569 = vunpack.c.l.b16 %v840
        %v1570 = vunpack.c.h.b16 %v840
        %v1571 = vunpack.c.l.b16 %v841
        %v1572 = vunpack.c.h.b16 %v841
        %v1573 = vunpack.c.l.b16 %v842
        %v1574 = vunpack.c.h.b16 %v842
        %v1575 = vunpack.c.l.b16 %v843
        %v1576 = vunpack.c.h.b16 %v843
        %v1577 = vunpack.c.l.b16 %v844
        %v1578 = vunpack.c.h.b16 %v844
        %v1579 = vunpack.c.l.b16 %v845
        %v1580 = vunpack.c.h.b16 %v845
        %v1581 = vunpack.c.l.b16 %v846
        %v1582 = vunpack.c.h.b16 %v846
        %v1583 = vunpack.c.l.b16 %v847
        %v1584 = vunpack.c.h.b16 %v847
        %v1585 = vunpack.c.l.b16 %v848
        %v1586 = vunpack.c.h.b16 %v848
        %v1587 = vunpack.c.l.b16 %v849
        %v1588 = vunpack.c.h.b16 %v849
        %v1589 = vunpack.c.l.b16 %v850
        %v1590 = vunpack.c.h.b16 %v850
        %v1591 = vunpack.c.l.b16 %v851
        %v1592 = vunpack.c.h.b16 %v851
        %v1593 = vunpack.c.l.b16 %v852
        %v1594 = vunpack.c.h.b16 %v852
        %v1595 = vunpack.c.l.b16 %v853
        %v1596 = vunpack.c.h.b16 %v853
        %v1597 = vunpack.c.l.b16 %v854
        %v1598 = vunpack.c.h.b16 %v854
        %v1599 = vunpack.c.l.b16 %v855
        %v1600 = vunpack.c.h.b16 %v855
        %v1601 = vunpack.c.l.b16 %v856
        %v1602 = vunpack.c.h.b16 %v856
        %v1603 = vunpack.c.l.b16 %v857
        %v1604 = vunpack.c.h.b16 %v857
        %v1605 = vunpack.c.l.b16 %v858
        %v1606 = vunpack.c.h.b16 %v858
        %v1607 = vunpack.c.l.b16 %v859
        %v1608 = vunpack.c.h.b16 %v859
        %v1609 = vunpack.c.l.b16 %v860
        %v1610 = vunpack.c.h.b16 %v860
        %v1611 = vunpack.c.l.b16 %v861
        %v1612 = vunpack.c.h.b16 %v861
        %v1613 = vunpack.c.l.b16 %v862
        %v1614 = vunpack.c.h.b16 %v862
        %v1615 = vunpack.c.l.b16 %v863
        %v1616 = vunpack.c.h.b16 %v863
        %v1617 = vunpack.c.l.b16 %v864
        %v1618 = vunpack.c.h.b16 %v864
        %v1619 = vunpack.c.l.b16 %v865
        %v1620 = vunpack.c.h.b16 %v865
        %v1621 = vunpack.c.l.b16 %v866
        %v1622 = vunpack.c.h.b16 %v866
        %v1623 = vunpack.c.l.b16 %v867
        %v1624 = vunpack.c.h.b16 %v867
        %v1625 = vunpack.c.l.b16 %v868
        %v1626 = vunpack.c.h.b16 %v868
        %v1627 = vunpack.c.l.b16 %v869
        %v1628 = vunpack.c.h.b16 %v869
        %v1629 = vunpack.c.l.b16 %v870
        %v1630 = vunpack.c.h.b16 %v870
        %v1631 = vunpack.c.l.b16 %v871
        %v1632 = vunpack.c.h.b16 %v871
        %v1633 = vunpack.c.l.b16 %v872
        %v1634 = vunpack.c.h.b16 %v872
        %v1635 = vunpack.c.l.b16 %v873
        %v1636 = vunpack.c.h.b16 %v873
        %v1637 = vunpack.c.l.b16 %v874
        %v1638 = vunpack.c.h.b16 %v874
        %v1639 = vunpack.c.l.b16 %v875
        %v1640 = vunpack.c.h.b16 %v875
        %v1641 = vunpack.c.l.b16 %v876
        %v1642 = vunpack.c.h.b16 %v876
        %v1643 = vunpack.c.l.b16 %v877
        %v1644 = vunpack.c.h.b16 %v877
        %v1645 = vunpack.c.l.b16 %v878
        %v1646 = vunpack.c.h.b16 %v878
        %v1647 = vunpack.c.l.b16 %v879
        %v1648 = vunpack.c.h.b16 %v879
        %v1649 = vunpack.c.l.b16 %v880
        %v1650 = vunpack.c.h.b16 %v880
        %v1651 = vunpack.c.l.b16 %v881
        %v1652 = vunpack.c.h.b16 %v881
        %v1653 = vunpack.c.l.b16 %v882
        %v1654 = vunpack.c.h.b16 %v882
        %v1655 = vunpack.c.l.b16 %v883
        %v1656 = vunpack.c.h.b16 %v883
        %v1657 = vunpack.c.l.b16 %v884
        %v1658 = vunpack.c.h.b16 %v884
        %v1659 = vunpack.c.l.b16 %v885
        %v1660 = vunpack.c.h.b16 %v885
        %v1661 = vunpack.c.l.b16 %v886
        %v1662 = vunpack.c.h.b16 %v886
        %v1663 = vunpack.c.l.b16 %v887
        %v1664 = vunpack.c.h.b16 %v887
        %v1665 = vunpack.c.l.b16 %v888
        %v1666 = vunpack.c.h.b16 %v888
        %v1667 = vunpack.c.l.b16 %v889
        %v1668 = vunpack.c.h.b16 %v889
        %v1669 = vunpack.c.l.b16 %v890
        %v1670 = vunpack.c.h.b16 %v890
        %v1671 = vunpack.c.l.b16 %v891
        %v1672 = vunpack.c.h.b16 %v891
        %v1673 = vunpack.c.l.b16 %v892
        %v1674 = vunpack.c.h.b16 %v892
        %v1675 = vunpack.c.l.b16 %v893
        %v1676 = vunpack.c.h.b16 %v893
        %v1677 = vunpack.c.l.b16 %v894
        %v1678 = vunpack.c.h.b16 %v894
        %v1679 = vunpack.c.l.b16 %v895
        %v1680 = vunpack.c.h.b16 %v895
        %v1681 = vunpack.c.l.b16 %v896
        %v1682 = vunpack.c.h.b16 %v896
        %v1683 = vunpack.c.l.b16 %v897
        %v1684 = vunpack.c.h.b16 %v897
        %v1685 = vunpack.c.l.b16 %v898
        %v1686 = vunpack.c.h.b16 %v898
        %v1687 = vunpack.c.l.b16 %v899
        %v1688 = vunpack.c.h.b16 %v899
        %v1689 = vunpack.c.l.b16 %v900
        %v1690 = vunpack.c.h.b16 %v900
        %v1691 = vunpack.c.l.b16 %v901
        %v1692 = vunpack.c.h.b16 %v901
        %v1693 = vunpack.c.l.b16 %v902
        %v1694 = vunpack.c.h.b16 %v902
        %v1695 = vunpack.c.l.b16 %v903
        %v1696 = vunpack.c.h.b16 %v903
        %v1697 = vunpack.c.l.b16 %v904
        %v1698 = vunpack.c.h.b16 %v904
        %v1699 = vunpack.c.l.b16 %v905
        %v1700 = vunpack.c.h.b16 %v905
        %v1701 = vunpack.c.l.b16 %v906
        %v1702 = vunpack.c.h.b16 %v906
        %v1703 = vunpack.c.l.b16 %v907
        %v1704 = vunpack.c.h.b16 %v907
        %v1705 = vunpack.c.l.b16 %v908
        %v1706 = vunpack.c.h.b16 %v908
        %v1707 = vunpack.c.l.b16 %v909
        %v1708 = vunpack.c.h.b16 %v909
        %v1709 = vunpack.c.l.b16 %v910
        %v1710 = vunpack.c.h.b16 %v910
        %v1711 = vunpack.c.l.b16 %v911
        %v1712 = vunpack.c.h.b16 %v911
        %v1713 = vunpack.c.l.b16 %v912
        %v1714 = vunpack.c.h.b16 %v912
        %v1715 = vunpack.c.l.b16 %v913
        %v1716 = vunpack.c.h.b16 %v913
        %v1717 = vunpack.c.l.b16 %v914
        %v1718 = vunpack.c.h.b16 %v914
        %v1719 = vunpack.c.l.b16 %v915
        %v1720 = vunpack.c.h.b16 %v915
        %v1721 = vunpack.c.l.b16 %v916
        %v1722 = vunpack.c.h.b16 %v916
        %v1723 = vunpack.c.l.b16 %v917
        %v1724 = vunpack.c.h.b16 %v917
        %v1725 = vunpack.c.l.b16 %v918
        %v1726 = vunpack.c.h.b16 %v918
        %v1727 = vunpack.c.l.b16 %v919
        %v1728 = vunpack.c.h.b16 %v919
        %v1729 = vunpack.c.l.b16 %v920
        %v1730 = vunpack.c.h.b16 %v920
        %v1731 = vunpack.c.l.b16 %v921
        %v1732 = vunpack.c.h.b16 %v921
        %v1733 = vunpack.c.l.b16 %v922
        %v1734 = vunpack.c.h.b16 %v922
        %v1735 = vunpack.c.l.b16 %v923
        %v1736 = vunpack.c.h.b16 %v923
        %v1737 = vunpack.c.l.b16 %v924
        %v1738 = vunpack.c.h.b16 %v924
        %v1739 = vunpack.c.l.b16 %v925
        %v1740 = vunpack.c.h.b16 %v925
        %v1741 = vunpack.c.l.b16 %v926
        %v1742 = vunpack.c.h.b16 %v926
        %v1743 = vunpack.c.l.b16 %v927
        %v1744 = vunpack.c.h.b16 %v927
        %v1745 = vunpack.c.l.b16 %v928
        %v1746 = vunpack.c.h.b16 %v928
        %v1747 = vunpack.c.l.b16 %v929
        %v1748 = vunpack.c.h.b16 %v929
        %v1749 = vunpack.c.l.b16 %v930
        %v1750 = vunpack.c.h.b16 %v930
        %v1751 = vunpack.c.l.b16 %v931
        %v1752 = vunpack.c.h.b16 %v931
        %v1753 = vunpack.c.l.b16 %v932
        %v1754 = vunpack.c.h.b16 %v932
        %v1755 = vunpack.c.l.b16 %v933
        %v1756 = vunpack.c.h.b16 %v933
        %v1757 = vunpack.c.l.b16 %v934
        %v1758 = vunpack.c.h.b16 %v934
        %v1759 = vunpack.c.l.b16 %v935
        %v1760 = vunpack.c.h.b16 %v935
        %v1761 = vunpack.c.l.b16 %v936
        %v1762 = vunpack.c.h.b16 %v936
        %v1763 = vunpack.c.l.b16 %v937
        %v1764 = vunpack.c.h.b16 %v937
        %v1765 = vunpack.c.l.b16 %v938
        %v1766 = vunpack.c.h.b16 %v938
        %v1767 = vunpack.c.l.b16 %v939
        %v1768 = vunpack.c.h.b16 %v939
        %v1769 = vunpack.c.l.b16 %v940
        %v1770 = vunpack.c.h.b16 %v940
        %v1771 = vunpack.c.l.b16 %v941
        %v1772 = vunpack.c.h.b16 %v941
        %v1773 = vunpack.c.l.b16 %v942
        %v1774 = vunpack.c.h.b16 %v942
        %v1775 = vunpack.c.l.b16 %v943
        %v1776 = vunpack.c.h.b16 %v943
        %v1777 = vunpack.c.l.b16 %v944
        %v1778 = vunpack.c.h.b16 %v944
        %v1779 = vunpack.c.l.b16 %v945
        %v1780 = vunpack.c.h.b16 %v945
        %v1781 = vunpack.c.l.b16 %v946
        %v1782 = vunpack.c.h.b16 %v946
        %v1783 = vunpack.c.l.b16 %v947
        %v1784 = vunpack.c.h.b16 %v947
        %v1785 = vunpack.c.l.b16 %v948
        %v1786 = vunpack.c.h.b16 %v948
        %v1787 = vunpack.c.l.b16 %v949
        %v1788 = vunpack.c.h.b16 %v949
        %v1789 = vunpack.c.l.b16 %v950
        %v1790 = vunpack.c.h.b16 %v950
        %v1791 = vunpack.c.l.b16 %v951
        %v1792 = vunpack.c.h.b16 %v951
        %v1793 = vunpack.c.l.b16 %v952
        %v1794 = vunpack.c.h.b16 %v952
        %v1795 = vunpack.c.l.b16 %v953
        %v1796 = vunpack.c.h.b16 %v953
        %v1797 = vunpack.c.l.b16 %v954
        %v1798 = vunpack.c.h.b16 %v954
        %v1799 = vunpack.c.l.b16 %v955
        %v1800 = vunpack.c.h.b16 %v955
        %v1801 = vunpack.c.l.b16 %v956
        %v1802 = vunpack.c.h.b16 %v956
        %v1803 = vunpack.c.l.b16 %v957
        %v1804 = vunpack.c.h.b16 %v957
        %v1805 = vunpack.c.l.b16 %v958
        %v1806 = vunpack.c.h.b16 %v958
        %v1807 = vunpack.c.l.b16 %v959
        %v1808 = vunpack.c.h.b16 %v959
        %v1809 = vunpack.c.l.b16 %v960
        %v1810 = vunpack.c.h.b16 %v960
        %v1811 = vunpack.c.l.b16 %v961
        %v1812 = vunpack.c.h.b16 %v961
        %v1813 = vunpack.c.l.b16 %v962
        %v1814 = vunpack.c.h.b16 %v962
        %v1815 = vunpack.c.l.b16 %v963
        %v1816 = vunpack.c.h.b16 %v963
        %v1817 = vunpack.c.l.b16 %v964
        %v1818 = vunpack.c.h.b16 %v964
        %v1819 = vunpack.c.l.b16 %v965
        %v1820 = vunpack.c.h.b16 %v965
        %v1821 = vunpack.c.l.b16 %v966
        %v1822 = vunpack.c.h.b16 %v966
        %v1823 = vunpack.c.l.b16 %v967
        %v1824 = vunpack.c.h.b16 %v967
        %v1825 = vunpack.c.l.b16 %v968
        %v1826 = vunpack.c.h.b16 %v968
        %v1827 = vunpack.c.l.b16 %v969
        %v1828 = vunpack.c.h.b16 %v969
        %v1829 = vunpack.c.l.b16 %v970
        %v1830 = vunpack.c.h.b16 %v970
        %v1831 = vunpack.c.l.b16 %v971
        %v1832 = vunpack.c.h.b16 %v971
        %v1833 = vunpack.c.l.b16 %v972
        %v1834 = vunpack.c.h.b16 %v972
        %v1835 = vunpack.c.l.b16 %v973
        %v1836 = vunpack.c.h.b16 %v973
        %v1837 = vunpack.c.l.b16 %v974
        %v1838 = vunpack.c.h.b16 %v974
        %v1839 = vunpack.c.l.b16 %v975
        %v1840 = vunpack.c.h.b16 %v975
        %v1841 = vunpack.c.l.b16 %v976
        %v1842 = vunpack.c.h.b16 %v976
        %v1843 = vunpack.c.l.b16 %v977
        %v1844 = vunpack.c.h.b16 %v977
        %v1845 = vunpack.c.l.b16 %v978
        %v1846 = vunpack.c.h.b16 %v978
        %v1847 = vunpack.c.l.b16 %v979
        %v1848 = vunpack.c.h.b16 %v979
        %v1849 = vunpack.c.l.b16 %v980
        %v1850 = vunpack.c.h.b16 %v980
        %v1851 = vunpack.c.l.b16 %v981
        %v1852 = vunpack.c.h.b16 %v981
        %v1853 = vunpack.c.l.b16 %v982
        %v1854 = vunpack.c.h.b16 %v982
        %v1855 = vunpack.c.l.b16 %v983
        %v1856 = vunpack.c.h.b16 %v983
        %v1857 = vunpack.c.l.b16 %v984
        %v1858 = vunpack.c.h.b16 %v984
        %v1859 = vunpack.c.l.b16 %v985
        %v1860 = vunpack.c.h.b16 %v985
        %v1861 = vunpack.c.l.b16 %v986
        %v1862 = vunpack.c.h.b16 %v986
        %v1863 = vunpack.c.l.b16 %v987
        %v1864 = vunpack.c.h.b16 %v987
        %v1865 = vunpack.c.l.b16 %v988
        %v1866 = vunpack.c.h.b16 %v988
        %v1867 = vunpack.c.l.b16 %v989
        %v1868 = vunpack.c.h.b16 %v989
        %v1869 = vunpack.c.l.b16 %v990
        %v1870 = vunpack.c.h.b16 %v990
        %v1871 = vunpack.c.l.b16 %v991
        %v1872 = vunpack.c.h.b16 %v991
        %v1873 = vunpack.c.l.b16 %v992
        %v1874 = vunpack.c.h.b16 %v992
        %v1875 = vunpack.c.l.b16 %v993
        %v1876 = vunpack.c.h.b16 %v993
        %v1877 = vunpack.c.l.b16 %v994
        %v1878 = vunpack.c.h.b16 %v994
        %v1879 = vunpack.c.l.b16 %v995
        %v1880 = vunpack.c.h.b16 %v995
        %v1881 = vunpack.c.l.b16 %v996
        %v1882 = vunpack.c.h.b16 %v996
        %v1883 = vunpack.c.l.b16 %v997
        %v1884 = vunpack.c.h.b16 %v997
        %v1885 = vunpack.c.l.b16 %v998
        %v1886 = vunpack.c.h.b16 %v998
        %v1887 = vunpack.c.l.b16 %v999
        %v1888 = vunpack.c.h.b16 %v999
        %v1889 = vunpack.c.l.b16 %v1000
        %v1890 = vunpack.c.h.b16 %v1000
        %v1891 = vunpack.c.l.b16 %v1001
        %v1892 = vunpack.c.h.b16 %v1001
        %v1893 = vunpack.c.l.b16 %v1002
        %v1894 = vunpack.c.h.b16 %v1002
        %v1895 = vunpack.c.l.b16 %v1003
        %v1896 = vunpack.c.h.b16 %v1003
        %v1897 = vunpack.c.l.b16 %v1004
        %v1898 = vunpack.c.h.b16 %v1004
        %v1899 = vunpack.c.l.b16 %v1005
        %v1900 = vunpack.c.h.b16 %v1005
        %v1901 = vunpack.c.l.b16 %v1006
        %v1902 = vunpack.c.h.b16 %v1006
        %v1903 = vunpack.c.l.b16 %v1007
        %v1904 = vunpack.c.h.b16 %v1007
        %v1905 = vunpack.c.l.b16 %v1008
        %v1906 = vunpack.c.h.b16 %v1008
        %v1907 = vunpack.c.l.b16 %v1009
        %v1908 = vunpack.c.h.b16 %v1009
        %v1909 = vunpack.c.l.b16 %v1010
        %v1910 = vunpack.c.h.b16 %v1010
        %v1911 = vunpack.c.l.b16 %v1011
        %v1912 = vunpack.c.h.b16 %v1011
        %v1913 = vunpack.c.l.b16 %v1012
        %v1914 = vunpack.c.h.b16 %v1012
        %v1915 = vunpack.c.l.b16 %v1013
        %v1916 = vunpack.c.h.b16 %v1013
        %v1917 = vunpack.c.l.b16 %v1014
        %v1918 = vunpack.c.h.b16 %v1014
        %v1919 = vunpack.c.l.b16 %v1015
        %v1920 = vunpack.c.h.b16 %v1015
        %v1921 = vunpack.c.l.b16 %v1016
        %v1922 = vunpack.c.h.b16 %v1016
        %v1923 = vunpack.c.l.b16 %v1017
        %v1924 = vunpack.c.h.b16 %v1017
        %v1925 = vunpack.c.l.b16 %v1018
        %v1926 = vunpack.c.h.b16 %v1018
        %v1927 = vunpack.c.l.b16 %v1019
        %v1928 = vunpack.c.h.b16 %v1019
        %v1929 = vunpack.c.l.b16 %v1020
        %v1930 = vunpack.c.h.b16 %v1020
        %v1931 = vunpack.c.l.b16 %v1021
        %v1932 = vunpack.c.h.b16 %v1021
        %v1933 = vunpack.c.l.b16 %v1022
        %v1934 = vunpack.c.h.b16 %v1022
        %v1935 = vunpack.c.l.b16 %v1023
        %v1936 = vunpack.c.h.b16 %v1023
        %v1937 = vunpack.c.l.b16 %v1024
        %v1938 = vunpack.c.h.b16 %v1024
        %v1939 = vunpack.c.l.b16 %v1025
        %v1940 = vunpack.c.h.b16 %v1025
        %v1941 = vunpack.c.l.b16 %v1026
        %v1942 = vunpack.c.h.b16 %v1026
        %v1943 = vunpack.c.l.b16 %v1027
        %v1944 = vunpack.c.h.b16 %v1027
        %v1945 = vunpack.c.l.b16 %v1028
        %v1946 = vunpack.c.h.b16 %v1028
        %v1947 = vunpack.c.l.b16 %v1029
        %v1948 = vunpack.c.h.b16 %v1029
        %v1949 = vunpack.c.l.b16 %v1030
        %v1950 = vunpack.c.h.b16 %v1030
        %v1951 = vunpack.c.l.b16 %v1031
        %v1952 = vunpack.c.h.b16 %v1031
        %v1953 = vunpack.c.l.b16 %v1032
        %v1954 = vunpack.c.h.b16 %v1032
        %v1955 = vunpack.c.l.b16 %v1033
        %v1956 = vunpack.c.h.b16 %v1033
        %v1957 = vunpack.c.l.b16 %v1034
        %v1958 = vunpack.c.h.b16 %v1034
        %v1959 = vunpack.c.l.b16 %v1035
        %v1960 = vunpack.c.h.b16 %v1035
        %v1961 = vunpack.c.l.b16 %v1036
        %v1962 = vunpack.c.h.b16 %v1036
        %v1963 = vunpack.c.l.b16 %v1037
        %v1964 = vunpack.c.h.b16 %v1037
        %v1965 = vunpack.c.l.b16 %v1038
        %v1966 = vunpack.c.h.b16 %v1038
        %v1967 = vunpack.c.l.b16 %v1039
        %v1968 = vunpack.c.h.b16 %v1039
        %v1969 = vunpack.c.l.b16 %v1040
        %v1970 = vunpack.c.h.b16 %v1040
        %v1971 = vunpack.c.l.b16 %v1041
        %v1972 = vunpack.c.h.b16 %v1041
        %v1973 = vunpack.c.l.b16 %v1042
        %v1974 = vunpack.c.h.b16 %v1042
        %v1975 = vunpack.c.l.b16 %v1043
        %v1976 = vunpack.c.h.b16 %v1043
        %v1977 = vunpack.c.l.b16 %v1044
        %v1978 = vunpack.c.h.b16 %v1044
        %v1979 = vunpack.c.l.b16 %v1045
        %v1980 = vunpack.c.h.b16 %v1045
        %v1981 = vunpack.c.l.b16 %v1046
        %v1982 = vunpack.c.h.b16 %v1046
        %v1983 = vunpack.c.l.b16 %v1047
        %v1984 = vunpack.c.h.b16 %v1047
        %v1985 = vunpack.c.l.b16 %v1048
        %v1986 = vunpack.c.h.b16 %v1048
        %v1987 = vunpack.c.l.b16 %v1049
        %v1988 = vunpack.c.h.b16 %v1049
        %v1989 = vunpack.c.l.b16 %v1050
        %v1990 = vunpack.c.h.b16 %v1050
        %v1991 = vunpack.c.l.b16 %v1051
        %v1992 = vunpack.c.h.b16 %v1051
        %v1993 = vunpack.c.l.b16 %v1052
        %v1994 = vunpack.c.h.b16 %v1052
        %v1995 = vunpack.c.l.b16 %v1053
        %v1996 = vunpack.c.h.b16 %v1053
        %v1997 = vunpack.c.l.b16 %v1054
        %v1998 = vunpack.c.h.b16 %v1054
        %v1999 = vunpack.c.l.b16 %v1055
        %v2000 = vunpack.c.h.b16 %v1055
        %v2001 = vunpack.c.l.b16 %v1056
        %v2002 = vunpack.c.h.b16 %v1056
        %v2003 = vunpack.c.l.b16 %v1057
        %v2004 = vunpack.c.h.b16 %v1057
        %v2005 = vunpack.c.l.b16 %v1058
        %v2006 = vunpack.c.h.b16 %v1058
        %v2007 = vunpack.c.l.b16 %v1059
        %v2008 = vunpack.c.h.b16 %v1059
        %v2009 = vunpack.c.l.b16 %v1060
        %v2010 = vunpack.c.h.b16 %v1060
        %v2011 = vunpack.c.l.b16 %v1061
        %v2012 = vunpack.c.h.b16 %v1061
        %v2013 = vunpack.c.l.b16 %v1062
        %v2014 = vunpack.c.h.b16 %v1062
        %v2015 = vunpack.c.l.b16 %v1063
        %v2016 = vunpack.c.h.b16 %v1063
        %v2017 = vunpack.c.l.b16 %v1064
        %v2018 = vunpack.c.h.b16 %v1064
        %v2019 = vunpack.c.l.b16 %v1065
        %v2020 = vunpack.c.h.b16 %v1065
        %v2021 = vunpack.c.l.b16 %v1066
        %v2022 = vunpack.c.h.b16 %v1066
        %v2023 = vunpack.c.l.b16 %v1067
        %v2024 = vunpack.c.h.b16 %v1067
        %v2025 = vunpack.c.l.b16 %v1068
        %v2026 = vunpack.c.h.b16 %v1068
        %v2027 = vunpack.c.l.b16 %v1069
        %v2028 = vunpack.c.h.b16 %v1069
        %v2029 = vunpack.c.l.b16 %v1070
        %v2030 = vunpack.c.h.b16 %v1070
        %v2031 = vunpack.c.l.b16 %v1071
        %v2032 = vunpack.c.h.b16 %v1071
        %v2033 = vunpack.c.l.b16 %v1072
        %v2034 = vunpack.c.h.b16 %v1072
        %v2035 = vunpack.c.l.b16 %v1073
        %v2036 = vunpack.c.h.b16 %v1073
        %v2037 = vunpack.c.l.b16 %v1074
        %v2038 = vunpack.c.h.b16 %v1074
        %v2039 = vunpack.c.l.b16 %v1075
        %v2040 = vunpack.c.h.b16 %v1075
        %v2041 = vunpack.c.l.b16 %v1076
        %v2042 = vunpack.c.h.b16 %v1076
        %v2043 = vunpack.c.l.b16 %v1077
        %v2044 = vunpack.c.h.b16 %v1077
        %v2045 = vunpack.c.l.b16 %v1078
        %v2046 = vunpack.c.h.b16 %v1078
        %v2047 = vunpack.c.l.b16 %v1079
        %v2048 = vunpack.c.h.b16 %v1079
        %v2049 = vunpack.c.l.b16 %v1080
        %v2050 = vunpack.c.h.b16 %v1080
        %v2051 = vunpack.c.l.b16 %v1081
        %v2052 = vunpack.c.h.b16 %v1081
        %v2053 = vunpack.c.l.b16 %v1082
        %v2054 = vunpack.c.h.b16 %v1082
        %v2055 = vunpack.c.l.b16 %v1083
        %v2056 = vunpack.c.h.b16 %v1083
        %v2057 = vunpack.c.l.b16 %v1084
        %v2058 = vunpack.c.h.b16 %v1084
        %v2059 = vunpack.c.l.b16 %v1085
        %v2060 = vunpack.c.h.b16 %v1085
        %v2061 = vunpack.c.l.b16 %v1086
        %v2062 = vunpack.c.h.b16 %v1086
        %v2063 = vunpack.c.l.b16 %v1087
        %v2064 = vunpack.c.h.b16 %v1087
        %v2065 = vunpack.c.l.b16 %v1088
        %v2066 = vunpack.c.h.b16 %v1088
        %v2067 = vunpack.c.l.b16 %v1089
        %v2068 = vunpack.c.h.b16 %v1089
        %v2069 = vunpack.c.l.b16 %v1090
        %v2070 = vunpack.c.h.b16 %v1090
        %v2071 = vunpack.c.l.b16 %v1091
        %v2072 = vunpack.c.h.b16 %v1091
        %v2073 = vunpack.c.l.b16 %v1092
        %v2074 = vunpack.c.h.b16 %v1092
        %v2075 = vunpack.c.l.b16 %v1093
        %v2076 = vunpack.c.h.b16 %v1093
        %v2077 = vunpack.c.l.b16 %v1094
        %v2078 = vunpack.c.h.b16 %v1094
        %v2079 = vunpack.c.l.b16 %v1095
        %v2080 = vunpack.c.h.b16 %v1095
        %v2081 = vunpack.c.l.b16 %v1096
        %v2082 = vunpack.c.h.b16 %v1096
        %v2083 = vunpack.c.l.b16 %v1097
        %v2084 = vunpack.c.h.b16 %v1097
        %v2085 = vunpack.c.l.b16 %v1098
        %v2086 = vunpack.c.h.b16 %v1098
        %v2087 = vunpack.c.l.b16 %v1099
        %v2088 = vunpack.c.h.b16 %v1099
        %v2089 = vpack.c.b16 %v1519, %v1513
        %v2090 = vpack.c.b16 %v1520, %v1514
        %v2091 = vpack.c.b16 %v1521, %v1515
        %v2092 = vpack.c.b16 %v1522, %v1516
        %v2093 = vpack.c.b16 %v1523, %v1517
        %v2094 = vpack.c.b16 %v1524, %v1518
        %v2095 = vpack.c.b16 %v1531, %v1525
        %v2096 = vpack.c.b16 %v1532, %v1526
        %v2097 = vpack.c.b16 %v1533, %v1527
        %v2098 = vpack.c.b16 %v1534, %v1528
        %v2099 = vpack.c.b16 %v1535, %v1529
        %v2100 = vpack.c.b16 %v1536, %v1530
        %v2101 = vpack.c.b16 %v1543, %v1537
        %v2102 = vpack.c.b16 %v1544, %v1538
        %v2103 = vpack.c.b16 %v1545, %v1539
        %v2104 = vpack.c.b16 %v1546, %v1540
        %v2105 = vpack.c.b16 %v1547, %v1541
        %v2106 = vpack.c.b16 %v1548, %v1542
        %v2107 = vpack.c.b16 %v1555, %v1549
        %v2108 = vpack.c.b16 %v1556, %v1550
        %v2109 = vpack.c.b16 %v1557, %v1551
        %v2110 = vpack.c.b16 %v1558, %v1552
        %v2111 = vpack.c.b16 %v1559, %v1553
        %v2112 = vpack.c.b16 %v1560, %v1554
        %v2113 = vpack.c.b16 %v1567, %v1561
        %v2114 = vpack.c.b16 %v1568, %v1562
        %v2115 = vpack.c.b16 %v1569, %v1563
        %v2116 = vpack.c.b16 %v1570, %v1564
        %v2117 = vpack.c.b16 %v1571, %v1565
        %v2118 = vpack.c.b16 %v1572, %v1566
        %v2119 = vpack.c.b16 %v1579, %v1573
        %v2120 = vpack.c.b16 %v1580, %v1574
        %v2121 = vpack.c.b16 %v1581, %v1575
        %v2122 = vpack.c.b16 %v1582, %v1576
        %v2123 = vpack.c.b16 %v1583, %v1577
        %v2124 = vpack.c.b16 %v1584, %v1578
        %v2125 = vpack.c.b16 %v1591, %v1585
        %v2126 = vpack.c.b16 %v1592, %v1586
        %v2127 = vpack.c.b16 %v1593, %v1587
        %v2128 = vpack.c.b16 %v1594, %v1588
        %v2129 = vpack.c.b16 %v1595, %v1589
        %v2130 = vpack.c.b16 %v1596, %v1590
        %v2131 = vpack.c.b16 %v1603, %v1597
        %v2132 = vpack.c.b16 %v1604, %v1598
        %v2133 = vpack.c.b16 %v1605, %v1599
        %v2134 = vpack.c.b16 %v1606, %v1600
        %v2135 = vpack.c.b16 %v1607, %v1601
        %v2136 = vpack.c.b16 %v1608, %v1602
        %v2137 = vpack.c.b16 %v1615, %v1609
        %v2138 = vpack.c.b16 %v1616, %v1610
        %v2139 = vpack.c.b16 %v1617, %v1611
        %v2140 = vpack.c.b16 %v1618, %v1612
        %v2141 = vpack.c.b16 %v1619, %v1613
        %v2142 = vpack.c.b16 %v1620, %v1614
        %v2143 = vpack.c.b16 %v1627, %v1621
        %v2144 = vpack.c.b16 %v1628, %v1622
        %v2145 = vpack.c.b16 %v1629, %v1623
        %v2146 = vpack.c.b16 %v1630, %v1624
        %v2147 = vpack.c.b16 %v1631, %v1625
        %v2148 = vpack.c.b16 %v1632, %v1626
        %v2149 = vpack.c.b16 %v1639, %v1633
        %v2150 = vpack.c.b16 %v1640, %v1634
        %v2151 = vpack.c.b16 %v1641, %v1635
        %v2152 = vpack.c.b16 %v1642, %v1636
        %v2153 = vpack.c.b16 %v1643, %v1637
        %v2154 = vpack.c.b16 %v1644, %v1638
        %v2155 = vpack.c.b16 %v1651, %v1645
        %v2156 = vpack.c.b16 %v1652, %v1646
        %v2157 = vpack.c.b16 %v1653, %v1647
        %v2158 = vpack.c.b16 %v1654, %v1648
        %v2159 = vpack.c.b16 %v1655, %v1649
        %v2160 = vpack.c.b16 %v1656, %v1650
        %v2161 = vpack.c.b16 %v1663, %v1657
        %v2162 = vpack.c.b16 %v1664, %v1658
        %v2163 = vpack.c.b16 %v1665, %v1659
        %v2164 = vpack.c.b16 %v1666, %v1660
        %v2165 = vpack.c.b16 %v1667, %v1661
        %v2166 = vpack.c.b16 %v1668, %v1662
        %v2167 = vpack.c.b16 %v1675, %v1669
        %v2168 = vpack.c.b16 %v1676, %v1670
        %v2169 = vpack.c.b16 %v1677, %v1671
        %v2170 = vpack.c.b16 %v1678, %v1672
        %v2171 = vpack.c.b16 %v1679, %v1673
        %v2172 = vpack.c.b16 %v1680, %v1674
        %v2173 = vpack.c.b16 %v1687, %v1681
        %v2174 = vpack.c.b16 %v1688, %v1682
        %v2175 = vpack.c.b16 %v1689, %v1683
        %v2176 = vpack.c.b16 %v1690, %v1684
        %v2177 = vpack.c.b16 %v1691, %v1685
        %v2178 = vpack.c.b16 %v1692, %v1686
        %v2179 = vpack.c.b16 %v1699, %v1693
        %v2180 = vpack.c.b16 %v1700, %v1694
        %v2181 = vpack.c.b16 %v1701, %v1695
        %v2182 = vpack.c.b16 %v1702, %v1696
        %v2183 = vpack.c.b16 %v1703, %v1697
        %v2184 = vpack.c.b16 %v1704, %v1698
        %v2185 = vpack.c.b16 %v1711, %v1705
        %v2186 = vpack.c.b16 %v1712, %v1706
        %v2187 = vpack.c.b16 %v1713, %v1707
        %v2188 = vpack.c.b16 %v1714, %v1708
        %v2189 = vpack.c.b16 %v1715, %v1709
        %v2190 = vpack.c.b16 %v1716, %v1710
        %v2191 = vpack.c.b16 %v1723, %v1717
        %v2192 = vpack.c.b16 %v1724, %v1718
        %v2193 = vpack.c.b16 %v1725, %v1719
        %v2194 = vpack.c.b16 %v1726, %v1720
        %v2195 = vpack.c.b16 %v1727, %v1721
        %v2196 = vpack.c.b16 %v1728, %v1722
        %v2197 = vpack.c.b16 %v1735, %v1729
        %v2198 = vpack.c.b16 %v1736, %v1730
        %v2199 = vpack.c.b16 %v1737, %v1731
        %v2200 = vpack.c.b16 %v1738, %v1732
        %v2201 = vpack.c.b16 %v1739, %v1733
        %v2202 = vpack.c.b16 %v1740, %v1734
        %v2203 = vpack.c.b16 %v1747, %v1741
        %v2204 = vpack.c.b16 %v1748, %v1742
        %v2205 = vpack.c.b16 %v1749, %v1743
        %v2206 = vpack.c.b16 %v1750, %v1744
        %v2207 = vpack.c.b16 %v1751, %v1745
        %v2208 = vpack.c.b16 %v1752, %v1746
        %v2209 = vpack.c.b16 %v1759, %v1753
        %v2210 = vpack.c.b16 %v1760, %v1754
        %v2211 = vpack.c.b16 %v1761, %v1755
        %v2212 = vpack.c.b16 %v1762, %v1756
        %v2213 = vpack.c.b16 %v1763, %v1757
        %v2214 = vpack.c.b16 %v1764, %v1758
        %v2215 = vpack.c.b16 %v1771, %v1765
        %v2216 = vpack.c.b16 %v1772, %v1766
        %v2217 = vpack.c.b16 %v1773, %v1767
        %v2218 = vpack.c.b16 %v1774, %v1768
        %v2219 = vpack.c.b16 %v1775, %v1769
        %v2220 = vpack.c.b16 %v1776, %v1770
        %v2221 = vpack.c.b16 %v1783, %v1777
        %v2222 = vpack.c.b16 %v1784, %v1778
        %v2223 = vpack.c.b16 %v1785, %v1779
        %v2224 = vpack.c.b16 %v1786, %v1780
        %v2225 = vpack.c.b16 %v1787, %v1781
        %v2226 = vpack.c.b16 %v1788, %v1782
        %v2227 = vpack.c.b16 %v1795, %v1789
        %v2228 = vpack.c.b16 %v1796, %v1790
        %v2229 = vpack.c.b16 %v1797, %v1791
        %v2230 = vpack.c.b16 %v1798, %v1792
        %v2231 = vpack.c.b16 %v1799, %v1793
        %v2232 = vpack.c.b16 %v1800, %v1794
        %v2233 = vpack.c.b16 %v1807, %v1801
        %v2234 = vpack.c.b16 %v1808, %v1802
        %v2235 = vpack.c.b16 %v1809, %v1803
        %v2236 = vpack.c.b16 %v1810, %v1804
        %v2237 = vpack.c.b16 %v1811, %v1805
        %v2238 = vpack.c.b16 %v1812, %v1806
        %v2239 = vpack.c.b16 %v1819, %v1813
        %v2240 = vpack.c.b16 %v1820, %v1814
        %v2241 = vpack.c.b16 %v1821, %v1815
        %v2242 = vpack.c.b16 %v1822, %v1816
        %v2243 = vpack.c.b16 %v1823, %v1817
        %v2244 = vpack.c.b16 %v1824, %v1818
        %v2245 = vpack.c.b16 %v1831, %v1825
        %v2246 = vpack.c.b16 %v1832, %v1826
        %v2247 = vpack.c.b16 %v1833, %v1827
        %v2248 = vpack.c.b16 %v1834, %v1828
        %v2249 = vpack.c.b16 %v1835, %v1829
        %v2250 = vpack.c.b16 %v1836, %v1830
        %v2251 = vpack.c.b16 %v1843, %v1837
        %v2252 = vpack.c.b16 %v1844, %v1838
        %v2253 = vpack.c.b16 %v1845, %v1839
        %v2254 = vpack.c.b16 %v1846, %v1840
        %v2255 = vpack.c.b16 %v1847, %v1841
        %v2256 = vpack.c.b16 %v1848, %v1842
        %v2257 = vpack.c.b16 %v1855, %v1849
        %v2258 = vpack.c.b16 %v1856, %v1850
        %v2259 = vpack.c.b16 %v1857, %v1851
        %v2260 = vpack.c.b16 %v1858, %v1852
        %v2261 = vpack.c.b16 %v1859, %v1853
        %v2262 = vpack.c.b16 %v1860, %v1854
        %v2263 = vpack.c.b16 %v1867, %v1861
        %v2264 = vpack.c.b16 %v1868, %v1862
        %v2265 = vpack.c.b16 %v1869, %v1863
        %v2266 = vpack.c.b16 %v1870, %v1864
        %v2267 = vpack.c.b16 %v1871, %v1865
        %v2268 = vpack.c.b16 %v1872, %v1866
        %v2269 = vpack.c.b16 %v1879, %v1873
        %v2270 = vpack.c.b16 %v1880, %v1874
        %v2271 = vpack.c.b16 %v1881, %v1875
        %v2272 = vpack.c.b16 %v1882, %v1876
        %v2273 = vpack.c.b16 %v1883, %v1877
        %v2274 = vpack.c.b16 %v1884, %v1878
        %v2275 = vpack.c.b16 %v1891, %v1885
        %v2276 = vpack.c.b16 %v1892, %v1886
        %v2277 = vpack.c.b16 %v1893, %v1887
        %v2278 = vpack.c.b16 %v1894, %v1888
        %v2279 = vpack.c.b16 %v1895, %v1889
        %v2280 = vpack.c.b16 %v1896, %v1890
        %v2281 = vpack.c.b16 %v1903, %v1897
        %v2282 = vpack.c.b16 %v1904, %v1898
        %v2283 = vpack.c.b16 %v1905, %v1899
        %v2284 = vpack.c.b16 %v1906, %v1900
        %v2285 = vpack.c.b16 %v1907, %v1901
        %v2286 = vpack.c.b16 %v1908, %v1902
        %v2287 = vpack.c.b16 %v1915, %v1909
        %v2288 = vpack.c.b16 %v1916, %v1910
        %v2289 = vpack.c.b16 %v1917, %v1911
        %v2290 = vpack.c.b16 %v1918, %v1912
        %v2291 = vpack.c.b16 %v1919, %v1913
        %v2292 = vpack.c.b16 %v1920, %v1914
        %v2293 = vpack.c.b16 %v1927, %v1921
        %v2294 = vpack.c.b16 %v1928, %v1922
        %v2295 = vpack.c.b16 %v1929, %v1923
        %v2296 = vpack.c.b16 %v1930, %v1924
        %v2297 = vpack.c.b16 %v1931, %v1925
        %v2298 = vpack.c.b16 %v1932, %v1926
        %v2299 = vpack.c.b16 %v1939, %v1933
        %v2300 = vpack.c.b16 %v1940, %v1934
        %v2301 = vpack.c.b16 %v1941, %v1935
        %v2302 = vpack.c.b16 %v1942, %v1936
        %v2303 = vpack.c.b16 %v1943, %v1937
        %v2304 = vpack.c.b16 %v1944, %v1938
        %v2305 = vpack.c.b16 %v1951, %v1945
        %v2306 = vpack.c.b16 %v1952, %v1946
        %v2307 = vpack.c.b16 %v1953, %v1947
        %v2308 = vpack.c.b16 %v1954, %v1948
        %v2309 = vpack.c.b16 %v1955, %v1949
        %v2310 = vpack.c.b16 %v1956, %v1950
        %v2311 = vpack.c.b16 %v1963, %v1957
        %v2312 = vpack.c.b16 %v1964, %v1958
        %v2313 = vpack.c.b16 %v1965, %v1959
        %v2314 = vpack.c.b16 %v1966, %v1960
        %v2315 = vpack.c.b16 %v1967, %v1961
        %v2316 = vpack.c.b16 %v1968, %v1962
        %v2317 = vpack.c.b16 %v1975, %v1969
        %v2318 = vpack.c.b16 %v1976, %v1970
        %v2319 = vpack.c.b16 %v1977, %v1971
        %v2320 = vpack.c.b16 %v1978, %v1972
        %v2321 = vpack.c.b16 %v1979, %v1973
        %v2322 = vpack.c.b16 %v1980, %v1974
        %v2323 = vpack.c.b16 %v1987, %v1981
        %v2324 = vpack.c.b16 %v1988, %v1982
        %v2325 = vpack.c.b16 %v1989, %v1983
        %v2326 = vpack.c.b16 %v1990, %v1984
        %v2327 = vpack.c.b16 %v1991, %v1985
        %v2328 = vpack.c.b16 %v1992, %v1986
        %v2329 = vpack.c.b16 %v1999, %v1993
        %v2330 = vpack.c.b16 %v2000, %v1994
        %v2331 = vpack.c.b16 %v2001, %v1995
        %v2332 = vpack.c.b16 %v2002, %v1996
        %v2333 = vpack.c.b16 %v2003, %v1997
        %v2334 = vpack.c.b16 %v2004, %v1998
        %v2335 = vpack.c.b16 %v2011, %v2005
        %v2336 = vpack.c.b16 %v2012, %v2006
        %v2337 = vpack.c.b16 %v2013, %v2007
        %v2338 = vpack.c.b16 %v2014, %v2008
        %v2339 = vpack.c.b16 %v2015, %v2009
        %v2340 = vpack.c.b16 %v2016, %v2010
        %v2341 = vpack.c.b16 %v2023, %v2017
        %v2342 = vpack.c.b16 %v2024, %v2018
        %v2343 = vpack.c.b16 %v2025, %v2019
        %v2344 = vpack.c.b16 %v2026, %v2020
        %v2345 = vpack.c.b16 %v2027, %v2021
        %v2346 = vpack.c.b16 %v2028, %v2022
        %v2347 = vpack.c.b16 %v2035, %v2029
        %v2348 = vpack.c.b16 %v2036, %v2030
        %v2349 = vpack.c.b16 %v2037, %v2031
        %v2350 = vpack.c.b16 %v2038, %v2032
        %v2351 = vpack.c.b16 %v2039, %v2033
        %v2352 = vpack.c.b16 %v2040, %v2034
        %v2353 = vpack.c.b16 %v2047, %v2041
        %v2354 = vpack.c.b16 %v2048, %v2042
        %v2355 = vpack.c.b16 %v2049, %v2043
        %v2356 = vpack.c.b16 %v2050, %v2044
        %v2357 = vpack.c.b16 %v2051, %v2045
        %v2358 = vpack.c.b16 %v2052, %v2046
        %v2359 = vpack.c.b16 %v2059, %v2053
        %v2360 = vpack.c.b16 %v2060, %v2054
        %v2361 = vpack.c.b16 %v2061, %v2055
        %v2362 = vpack.c.b16 %v2062, %v2056
        %v2363 = vpack.c.b16 %v2063, %v2057
        %v2364 = vpack.c.b16 %v2064, %v2058
        %v2365 = vpack.c.b16 %v2071, %v2065
        %v2366 = vpack.c.b16 %v2072, %v2066
        %v2367 = vpack.c.b16 %v2073, %v2067
        %v2368 = vpack.c.b16 %v2074, %v2068
        %v2369 = vpack.c.b16 %v2075, %v2069
        %v2370 = vpack.c.b16 %v2076, %v2070
        %v2371 = vpack.c.b16 %v2083, %v2077
        %v2372 = vpack.c.b16 %v2084, %v2078
        %v2373 = vpack.c.b16 %v2085, %v2079
        %v2374 = vpack.c.b16 %v2086, %v2080
        %v2375 = vpack.c.b16 %v2087, %v2081
        %v2376 = vpack.c.b16 %v2088, %v2082
        %2665 = vmatpush.bf16.msra.mxu0 %v2131
        %2666 = vmatpush.bf16.msra.mxu0 %v2125
        %2667 = vmatpush.bf16.msra.mxu0 %v2119
        %2668 = vmatpush.bf16.msra.mxu0 %v2113
        %2669 = vmatpush.bf16.msra.mxu0 %v2107
        %2670 = vmatpush.bf16.msra.mxu0 %v2101
        %2671 = vmatpush.bf16.msra.mxu0 %v2095
        %2672 = vmatpush.bf16.msra.mxu0 %v2089
        %2673 = vmatmul.bf16.gmra.mxu0 %v1177
        %v2674 = vpop.f32.mrf.mxu0
        %v2675 = vadd.f32 %v1102, %v2674
        %v2676 = vpop.f32.mrf.mxu0
        %v2677 = vadd.f32 %v1102, %v2676
        %2678 = vmatmul.bf16.gmra.mxu0 %v1183
        %v2679 = vpop.f32.mrf.mxu0
        %v2680 = vadd.f32 %v1102, %v2679
        %v2681 = vpop.f32.mrf.mxu0
        %v2682 = vadd.f32 %v1102, %v2681
        %2683 = vmatmul.bf16.gmra.mxu0 %v1189
        %v2684 = vpop.f32.mrf.mxu0
        %v2685 = vadd.f32 %v1102, %v2684
        %v2686 = vpop.f32.mrf.mxu0
        %v2687 = vadd.f32 %v1102, %v2686
        %2688 = vmatmul.bf16.gmra.mxu0 %v1195
        %v2689 = vpop.f32.mrf.mxu0
        %v2690 = vadd.f32 %v1102, %v2689
        %v2691 = vpop.f32.mrf.mxu0
        %2692 = vdwg.mxu0
        %2693 = vmatpush.bf16.msra.mxu0 %v2179
        %2694 = vmatpush.bf16.msra.mxu0 %v2173
        %2695 = vmatpush.bf16.msra.mxu0 %v2167
        %2696 = vmatpush.bf16.msra.mxu0 %v2161
        %2697 = vmatpush.bf16.msra.mxu0 %v2155
        %2698 = vmatpush.bf16.msra.mxu0 %v2149
        %2699 = vmatpush.bf16.msra.mxu0 %v2143
        %2700 = vmatpush.bf16.msra.mxu0 %v2137
        %2701 = vmatmul.bf16.gmra.mxu0 %v1178
        %v2702 = vpop.f32.mrf.mxu0
        %v2703 = vadd.f32 %v2675, %v2702
        %v2704 = vpop.f32.mrf.mxu0
        %v2705 = vadd.f32 %v2677, %v2704
        %2706 = vmatmul.bf16.gmra.mxu0 %v1184
        %v2707 = vpop.f32.mrf.mxu0
        %v2708 = vadd.f32 %v2680, %v2707
        %v2709 = vpop.f32.mrf.mxu0
        %v2710 = vadd.f32 %v2682, %v2709
        %2711 = vmatmul.bf16.gmra.mxu0 %v1190
        %v2712 = vpop.f32.mrf.mxu0
        %v2713 = vadd.f32 %v2685, %v2712
        %v2714 = vpop.f32.mrf.mxu0
        %v2715 = vadd.f32 %v2687, %v2714
        %2716 = vmatmul.bf16.gmra.mxu0 %v1196
        %v2717 = vpop.f32.mrf.mxu0
        %v2718 = vadd.f32 %v2690, %v2717
        %v2719 = vpop.f32.mrf.mxu0
        %2720 = vdwg.mxu0
        %2721 = vmatpush.bf16.msra.mxu0 %v2227
        %2722 = vmatpush.bf16.msra.mxu0 %v2221
        %2723 = vmatpush.bf16.msra.mxu0 %v2215
        %2724 = vmatpush.bf16.msra.mxu0 %v2209
        %2725 = vmatpush.bf16.msra.mxu0 %v2203
        %2726 = vmatpush.bf16.msra.mxu0 %v2197
        %2727 = vmatpush.bf16.msra.mxu0 %v2191
        %2728 = vmatpush.bf16.msra.mxu0 %v2185
        %2729 = vmatmul.bf16.gmra.mxu0 %v1179
        %v2730 = vpop.f32.mrf.mxu0
        %v2731 = vadd.f32 %v2703, %v2730
        %v2732 = vpop.f32.mrf.mxu0
        %v2733 = vadd.f32 %v2705, %v2732
        %2734 = vmatmul.bf16.gmra.mxu0 %v1185
        %v2735 = vpop.f32.mrf.mxu0
        %v2736 = vadd.f32 %v2708, %v2735
        %v2737 = vpop.f32.mrf.mxu0
        %v2738 = vadd.f32 %v2710, %v2737
        %2739 = vmatmul.bf16.gmra.mxu0 %v1191
        %v2740 = vpop.f32.mrf.mxu0
        %v2741 = vadd.f32 %v2713, %v2740
        %v2742 = vpop.f32.mrf.mxu0
        %v2743 = vadd.f32 %v2715, %v2742
        %2744 = vmatmul.bf16.gmra.mxu0 %v1197
        %v2745 = vpop.f32.mrf.mxu0
        %v2746 = vadd.f32 %v2718, %v2745
        %v2747 = vpop.f32.mrf.mxu0
        %2748 = vdwg.mxu0
        %2749 = vmatpush.bf16.msra.mxu0 %v2275
        %2750 = vmatpush.bf16.msra.mxu0 %v2269
        %2751 = vmatpush.bf16.msra.mxu0 %v2263
        %2752 = vmatpush.bf16.msra.mxu0 %v2257
        %2753 = vmatpush.bf16.msra.mxu0 %v2251
        %2754 = vmatpush.bf16.msra.mxu0 %v2245
        %2755 = vmatpush.bf16.msra.mxu0 %v2239
        %2756 = vmatpush.bf16.msra.mxu0 %v2233
        %2757 = vmatmul.bf16.gmra.mxu0 %v1180
        %v2758 = vpop.f32.mrf.mxu0
        %v2759 = vadd.f32 %v2731, %v2758
        %v2760 = vpop.f32.mrf.mxu0
        %v2761 = vadd.f32 %v2733, %v2760
        %2762 = vmatmul.bf16.gmra.mxu0 %v1186
        %v2763 = vpop.f32.mrf.mxu0
        %v2764 = vadd.f32 %v2736, %v2763
        %v2765 = vpop.f32.mrf.mxu0
        %v2766 = vadd.f32 %v2738, %v2765
        %2767 = vmatmul.bf16.gmra.mxu0 %v1192
        %v2768 = vpop.f32.mrf.mxu0
        %v2769 = vadd.f32 %v2741, %v2768
        %v2770 = vpop.f32.mrf.mxu0
        %v2771 = vadd.f32 %v2743, %v2770
        %2772 = vmatmul.bf16.gmra.mxu0 %v1198
        %v2773 = vpop.f32.mrf.mxu0
        %v2774 = vadd.f32 %v2746, %v2773
        %v2775 = vpop.f32.mrf.mxu0
        %2776 = vdwg.mxu0
        %2777 = vmatpush.bf16.msra.mxu0 %v2323
        %2778 = vmatpush.bf16.msra.mxu0 %v2317
        %2779 = vmatpush.bf16.msra.mxu0 %v2311
        %2780 = vmatpush.bf16.msra.mxu0 %v2305
        %2781 = vmatpush.bf16.msra.mxu0 %v2299
        %2782 = vmatpush.bf16.msra.mxu0 %v2293
        %2783 = vmatpush.bf16.msra.mxu0 %v2287
        %2784 = vmatpush.bf16.msra.mxu0 %v2281
        %2785 = vmatmul.bf16.gmra.mxu0 %v1181
        %v2786 = vpop.f32.mrf.mxu0
        %v2787 = vadd.f32 %v2759, %v2786
        %v2788 = vpop.f32.mrf.mxu0
        %v2789 = vadd.f32 %v2761, %v2788
        %2790 = vmatmul.bf16.gmra.mxu0 %v1187
        %v2791 = vpop.f32.mrf.mxu0
        %v2792 = vadd.f32 %v2764, %v2791
        %v2793 = vpop.f32.mrf.mxu0
        %v2794 = vadd.f32 %v2766, %v2793
        %2795 = vmatmul.bf16.gmra.mxu0 %v1193
        %v2796 = vpop.f32.mrf.mxu0
        %v2797 = vadd.f32 %v2769, %v2796
        %v2798 = vpop.f32.mrf.mxu0
        %v2799 = vadd.f32 %v2771, %v2798
        %2800 = vmatmul.bf16.gmra.mxu0 %v1199
        %v2801 = vpop.f32.mrf.mxu0
        %v2802 = vadd.f32 %v2774, %v2801
        %v2803 = vpop.f32.mrf.mxu0
        %2804 = vdwg.mxu0
        %2805 = vmatpush.bf16.msra.mxu0 %v2371
        %2806 = vmatpush.bf16.msra.mxu0 %v2365
        %2807 = vmatpush.bf16.msra.mxu0 %v2359
        %2808 = vmatpush.bf16.msra.mxu0 %v2353
        %2809 = vmatpush.bf16.msra.mxu0 %v2347
        %2810 = vmatpush.bf16.msra.mxu0 %v2341
        %2811 = vmatpush.bf16.msra.mxu0 %v2335
        %2812 = vmatpush.bf16.msra.mxu0 %v2329
        %2813 = vmatmul.bf16.gmra.mxu0 %v1182
        %v2814 = vpop.f32.mrf.mxu0
        %v2815 = vadd.f32 %v2787, %v2814
        %v2816 = vpop.f32.mrf.mxu0
        %v2817 = vadd.f32 %v2789, %v2816
        %2818 = vmatmul.bf16.gmra.mxu0 %v1188
        %v2819 = vpop.f32.mrf.mxu0
        %v2820 = vadd.f32 %v2792, %v2819
        %v2821 = vpop.f32.mrf.mxu0
        %v2822 = vadd.f32 %v2794, %v2821
        %2823 = vmatmul.bf16.gmra.mxu0 %v1194
        %v2824 = vpop.f32.mrf.mxu0
        %v2825 = vadd.f32 %v2797, %v2824
        %v2826 = vpop.f32.mrf.mxu0
        %v2827 = vadd.f32 %v2799, %v2826
        %2828 = vmatmul.bf16.gmra.mxu0 %v1200
        %v2829 = vpop.f32.mrf.mxu0
        %v2830 = vadd.f32 %v2802, %v2829
        %v2831 = vpop.f32.mrf.mxu0
        %2832 = vdwg.mxu0
        %2833 = vmatpush.bf16.msra.mxu0 %v2132
        %2834 = vmatpush.bf16.msra.mxu0 %v2126
        %2835 = vmatpush.bf16.msra.mxu0 %v2120
        %2836 = vmatpush.bf16.msra.mxu0 %v2114
        %2837 = vmatpush.bf16.msra.mxu0 %v2108
        %2838 = vmatpush.bf16.msra.mxu0 %v2102
        %2839 = vmatpush.bf16.msra.mxu0 %v2096
        %2840 = vmatpush.bf16.msra.mxu0 %v2090
        %2841 = vmatmul.bf16.gmra.mxu0 %v1177
        %v2842 = vpop.f32.mrf.mxu0
        %v2843 = vadd.f32 %v1103, %v2842
        %v2844 = vpop.f32.mrf.mxu0
        %v2845 = vadd.f32 %v1103, %v2844
        %2846 = vmatmul.bf16.gmra.mxu0 %v1183
        %v2847 = vpop.f32.mrf.mxu0
        %v2848 = vadd.f32 %v1103, %v2847
        %v2849 = vpop.f32.mrf.mxu0
        %v2850 = vadd.f32 %v1103, %v2849
        %2851 = vmatmul.bf16.gmra.mxu0 %v1189
        %v2852 = vpop.f32.mrf.mxu0
        %v2853 = vadd.f32 %v1103, %v2852
        %v2854 = vpop.f32.mrf.mxu0
        %v2855 = vadd.f32 %v1103, %v2854
        %2856 = vmatmul.bf16.gmra.mxu0 %v1195
        %v2857 = vpop.f32.mrf.mxu0
        %v2858 = vadd.f32 %v1103, %v2857
        %v2859 = vpop.f32.mrf.mxu0
        %2860 = vdwg.mxu0
        %2861 = vmatpush.bf16.msra.mxu0 %v2180
        %2862 = vmatpush.bf16.msra.mxu0 %v2174
        %2863 = vmatpush.bf16.msra.mxu0 %v2168
        %2864 = vmatpush.bf16.msra.mxu0 %v2162
        %2865 = vmatpush.bf16.msra.mxu0 %v2156
        %2866 = vmatpush.bf16.msra.mxu0 %v2150
        %2867 = vmatpush.bf16.msra.mxu0 %v2144
        %2868 = vmatpush.bf16.msra.mxu0 %v2138
        %2869 = vmatmul.bf16.gmra.mxu0 %v1178
        %v2870 = vpop.f32.mrf.mxu0
        %v2871 = vadd.f32 %v2843, %v2870
        %v2872 = vpop.f32.mrf.mxu0
        %v2873 = vadd.f32 %v2845, %v2872
        %2874 = vmatmul.bf16.gmra.mxu0 %v1184
        %v2875 = vpop.f32.mrf.mxu0
        %v2876 = vadd.f32 %v2848, %v2875
        %v2877 = vpop.f32.mrf.mxu0
        %v2878 = vadd.f32 %v2850, %v2877
        %2879 = vmatmul.bf16.gmra.mxu0 %v1190
        %v2880 = vpop.f32.mrf.mxu0
        %v2881 = vadd.f32 %v2853, %v2880
        %v2882 = vpop.f32.mrf.mxu0
        %v2883 = vadd.f32 %v2855, %v2882
        %2884 = vmatmul.bf16.gmra.mxu0 %v1196
        %v2885 = vpop.f32.mrf.mxu0
        %v2886 = vadd.f32 %v2858, %v2885
        %v2887 = vpop.f32.mrf.mxu0
        %2888 = vdwg.mxu0
        %2889 = vmatpush.bf16.msra.mxu0 %v2228
        %2890 = vmatpush.bf16.msra.mxu0 %v2222
        %2891 = vmatpush.bf16.msra.mxu0 %v2216
        %2892 = vmatpush.bf16.msra.mxu0 %v2210
        %2893 = vmatpush.bf16.msra.mxu0 %v2204
        %2894 = vmatpush.bf16.msra.mxu0 %v2198
        %2895 = vmatpush.bf16.msra.mxu0 %v2192
        %2896 = vmatpush.bf16.msra.mxu0 %v2186
        %2897 = vmatmul.bf16.gmra.mxu0 %v1179
        %v2898 = vpop.f32.mrf.mxu0
        %v2899 = vadd.f32 %v2871, %v2898
        %v2900 = vpop.f32.mrf.mxu0
        %v2901 = vadd.f32 %v2873, %v2900
        %2902 = vmatmul.bf16.gmra.mxu0 %v1185
        %v2903 = vpop.f32.mrf.mxu0
        %v2904 = vadd.f32 %v2876, %v2903
        %v2905 = vpop.f32.mrf.mxu0
        %v2906 = vadd.f32 %v2878, %v2905
        %2907 = vmatmul.bf16.gmra.mxu0 %v1191
        %v2908 = vpop.f32.mrf.mxu0
        %v2909 = vadd.f32 %v2881, %v2908
        %v2910 = vpop.f32.mrf.mxu0
        %v2911 = vadd.f32 %v2883, %v2910
        %2912 = vmatmul.bf16.gmra.mxu0 %v1197
        %v2913 = vpop.f32.mrf.mxu0
        %v2914 = vadd.f32 %v2886, %v2913
        %v2915 = vpop.f32.mrf.mxu0
        %2916 = vdwg.mxu0
        %2917 = vmatpush.bf16.msra.mxu0 %v2276
        %2918 = vmatpush.bf16.msra.mxu0 %v2270
        %2919 = vmatpush.bf16.msra.mxu0 %v2264
        %2920 = vmatpush.bf16.msra.mxu0 %v2258
        %2921 = vmatpush.bf16.msra.mxu0 %v2252
        %2922 = vmatpush.bf16.msra.mxu0 %v2246
        %2923 = vmatpush.bf16.msra.mxu0 %v2240
        %2924 = vmatpush.bf16.msra.mxu0 %v2234
        %2925 = vmatmul.bf16.gmra.mxu0 %v1180
        %v2926 = vpop.f32.mrf.mxu0
        %v2927 = vadd.f32 %v2899, %v2926
        %v2928 = vpop.f32.mrf.mxu0
        %v2929 = vadd.f32 %v2901, %v2928
        %2930 = vmatmul.bf16.gmra.mxu0 %v1186
        %v2931 = vpop.f32.mrf.mxu0
        %v2932 = vadd.f32 %v2904, %v2931
        %v2933 = vpop.f32.mrf.mxu0
        %v2934 = vadd.f32 %v2906, %v2933
        %2935 = vmatmul.bf16.gmra.mxu0 %v1192
        %v2936 = vpop.f32.mrf.mxu0
        %v2937 = vadd.f32 %v2909, %v2936
        %v2938 = vpop.f32.mrf.mxu0
        %v2939 = vadd.f32 %v2911, %v2938
        %2940 = vmatmul.bf16.gmra.mxu0 %v1198
        %v2941 = vpop.f32.mrf.mxu0
        %v2942 = vadd.f32 %v2914, %v2941
        %v2943 = vpop.f32.mrf.mxu0
        %2944 = vdwg.mxu0
        %2945 = vmatpush.bf16.msra.mxu0 %v2324
        %2946 = vmatpush.bf16.msra.mxu0 %v2318
        %2947 = vmatpush.bf16.msra.mxu0 %v2312
        %2948 = vmatpush.bf16.msra.mxu0 %v2306
        %2949 = vmatpush.bf16.msra.mxu0 %v2300
        %2950 = vmatpush.bf16.msra.mxu0 %v2294
        %2951 = vmatpush.bf16.msra.mxu0 %v2288
        %2952 = vmatpush.bf16.msra.mxu0 %v2282
        %2953 = vmatmul.bf16.gmra.mxu0 %v1181
        %v2954 = vpop.f32.mrf.mxu0
        %v2955 = vadd.f32 %v2927, %v2954
        %v2956 = vpop.f32.mrf.mxu0
        %v2957 = vadd.f32 %v2929, %v2956
        %2958 = vmatmul.bf16.gmra.mxu0 %v1187
        %v2959 = vpop.f32.mrf.mxu0
        %v2960 = vadd.f32 %v2932, %v2959
        %v2961 = vpop.f32.mrf.mxu0
        %v2962 = vadd.f32 %v2934, %v2961
        %2963 = vmatmul.bf16.gmra.mxu0 %v1193
        %v2964 = vpop.f32.mrf.mxu0
        %v2965 = vadd.f32 %v2937, %v2964
        %v2966 = vpop.f32.mrf.mxu0
        %v2967 = vadd.f32 %v2939, %v2966
        %2968 = vmatmul.bf16.gmra.mxu0 %v1199
        %v2969 = vpop.f32.mrf.mxu0
        %v2970 = vadd.f32 %v2942, %v2969
        %v2971 = vpop.f32.mrf.mxu0
        %2972 = vdwg.mxu0
        %2973 = vmatpush.bf16.msra.mxu0 %v2372
        %2974 = vmatpush.bf16.msra.mxu0 %v2366
        %2975 = vmatpush.bf16.msra.mxu0 %v2360
        %2976 = vmatpush.bf16.msra.mxu0 %v2354
        %2977 = vmatpush.bf16.msra.mxu0 %v2348
        %2978 = vmatpush.bf16.msra.mxu0 %v2342
        %2979 = vmatpush.bf16.msra.mxu0 %v2336
        %2980 = vmatpush.bf16.msra.mxu0 %v2330
        %2981 = vmatmul.bf16.gmra.mxu0 %v1182
        %v2982 = vpop.f32.mrf.mxu0
        %v2983 = vadd.f32 %v2955, %v2982
        %v2984 = vpop.f32.mrf.mxu0
        %v2985 = vadd.f32 %v2957, %v2984
        %2986 = vmatmul.bf16.gmra.mxu0 %v1188
        %v2987 = vpop.f32.mrf.mxu0
        %v2988 = vadd.f32 %v2960, %v2987
        %v2989 = vpop.f32.mrf.mxu0
        %v2990 = vadd.f32 %v2962, %v2989
        %2991 = vmatmul.bf16.gmra.mxu0 %v1194
        %v2992 = vpop.f32.mrf.mxu0
        %v2993 = vadd.f32 %v2965, %v2992
        %v2994 = vpop.f32.mrf.mxu0
        %v2995 = vadd.f32 %v2967, %v2994
        %2996 = vmatmul.bf16.gmra.mxu0 %v1200
        %v2997 = vpop.f32.mrf.mxu0
        %v2998 = vadd.f32 %v2970, %v2997
        %v2999 = vpop.f32.mrf.mxu0
        %3000 = vdwg.mxu0
        %3001 = vmatpush.bf16.msra.mxu0 %v2133
        %3002 = vmatpush.bf16.msra.mxu0 %v2127
        %3003 = vmatpush.bf16.msra.mxu0 %v2121
        %3004 = vmatpush.bf16.msra.mxu0 %v2115
        %3005 = vmatpush.bf16.msra.mxu0 %v2109
        %3006 = vmatpush.bf16.msra.mxu0 %v2103
        %3007 = vmatpush.bf16.msra.mxu0 %v2097
        %3008 = vmatpush.bf16.msra.mxu0 %v2091
        %3009 = vmatmul.bf16.gmra.mxu0 %v1177
        %v3010 = vpop.f32.mrf.mxu0
        %v3011 = vadd.f32 %v1104, %v3010
        %v3012 = vpop.f32.mrf.mxu0
        %v3013 = vadd.f32 %v1104, %v3012
        %3014 = vmatmul.bf16.gmra.mxu0 %v1183
        %v3015 = vpop.f32.mrf.mxu0
        %v3016 = vadd.f32 %v1104, %v3015
        %v3017 = vpop.f32.mrf.mxu0
        %v3018 = vadd.f32 %v1104, %v3017
        %3019 = vmatmul.bf16.gmra.mxu0 %v1189
        %v3020 = vpop.f32.mrf.mxu0
        %v3021 = vadd.f32 %v1104, %v3020
        %v3022 = vpop.f32.mrf.mxu0
        %v3023 = vadd.f32 %v1104, %v3022
        %3024 = vmatmul.bf16.gmra.mxu0 %v1195
        %v3025 = vpop.f32.mrf.mxu0
        %v3026 = vadd.f32 %v1104, %v3025
        %v3027 = vpop.f32.mrf.mxu0
        %3028 = vdwg.mxu0
        %3029 = vmatpush.bf16.msra.mxu0 %v2181
        %3030 = vmatpush.bf16.msra.mxu0 %v2175
        %3031 = vmatpush.bf16.msra.mxu0 %v2169
        %3032 = vmatpush.bf16.msra.mxu0 %v2163
        %3033 = vmatpush.bf16.msra.mxu0 %v2157
        %3034 = vmatpush.bf16.msra.mxu0 %v2151
        %3035 = vmatpush.bf16.msra.mxu0 %v2145
        %3036 = vmatpush.bf16.msra.mxu0 %v2139
        %3037 = vmatmul.bf16.gmra.mxu0 %v1178
        %v3038 = vpop.f32.mrf.mxu0
        %v3039 = vadd.f32 %v3011, %v3038
        %v3040 = vpop.f32.mrf.mxu0
        %v3041 = vadd.f32 %v3013, %v3040
        %3042 = vmatmul.bf16.gmra.mxu0 %v1184
        %v3043 = vpop.f32.mrf.mxu0
        %v3044 = vadd.f32 %v3016, %v3043
        %v3045 = vpop.f32.mrf.mxu0
        %v3046 = vadd.f32 %v3018, %v3045
        %3047 = vmatmul.bf16.gmra.mxu0 %v1190
        %v3048 = vpop.f32.mrf.mxu0
        %v3049 = vadd.f32 %v3021, %v3048
        %v3050 = vpop.f32.mrf.mxu0
        %v3051 = vadd.f32 %v3023, %v3050
        %3052 = vmatmul.bf16.gmra.mxu0 %v1196
        %v3053 = vpop.f32.mrf.mxu0
        %v3054 = vadd.f32 %v3026, %v3053
        %v3055 = vpop.f32.mrf.mxu0
        %3056 = vdwg.mxu0
        %3057 = vmatpush.bf16.msra.mxu0 %v2229
        %3058 = vmatpush.bf16.msra.mxu0 %v2223
        %3059 = vmatpush.bf16.msra.mxu0 %v2217
        %3060 = vmatpush.bf16.msra.mxu0 %v2211
        %3061 = vmatpush.bf16.msra.mxu0 %v2205
        %3062 = vmatpush.bf16.msra.mxu0 %v2199
        %3063 = vmatpush.bf16.msra.mxu0 %v2193
        %3064 = vmatpush.bf16.msra.mxu0 %v2187
        %3065 = vmatmul.bf16.gmra.mxu0 %v1179
        %v3066 = vpop.f32.mrf.mxu0
        %v3067 = vadd.f32 %v3039, %v3066
        %v3068 = vpop.f32.mrf.mxu0
        %v3069 = vadd.f32 %v3041, %v3068
        %3070 = vmatmul.bf16.gmra.mxu0 %v1185
        %v3071 = vpop.f32.mrf.mxu0
        %v3072 = vadd.f32 %v3044, %v3071
        %v3073 = vpop.f32.mrf.mxu0
        %v3074 = vadd.f32 %v3046, %v3073
        %3075 = vmatmul.bf16.gmra.mxu0 %v1191
        %v3076 = vpop.f32.mrf.mxu0
        %v3077 = vadd.f32 %v3049, %v3076
        %v3078 = vpop.f32.mrf.mxu0
        %v3079 = vadd.f32 %v3051, %v3078
        %3080 = vmatmul.bf16.gmra.mxu0 %v1197
        %v3081 = vpop.f32.mrf.mxu0
        %v3082 = vadd.f32 %v3054, %v3081
        %v3083 = vpop.f32.mrf.mxu0
        %3084 = vdwg.mxu0
        %3085 = vmatpush.bf16.msra.mxu0 %v2277
        %3086 = vmatpush.bf16.msra.mxu0 %v2271
        %3087 = vmatpush.bf16.msra.mxu0 %v2265
        %3088 = vmatpush.bf16.msra.mxu0 %v2259
        %3089 = vmatpush.bf16.msra.mxu0 %v2253
        %3090 = vmatpush.bf16.msra.mxu0 %v2247
        %3091 = vmatpush.bf16.msra.mxu0 %v2241
        %3092 = vmatpush.bf16.msra.mxu0 %v2235
        %3093 = vmatmul.bf16.gmra.mxu0 %v1180
        %v3094 = vpop.f32.mrf.mxu0
        %v3095 = vadd.f32 %v3067, %v3094
        %v3096 = vpop.f32.mrf.mxu0
        %v3097 = vadd.f32 %v3069, %v3096
        %3098 = vmatmul.bf16.gmra.mxu0 %v1186
        %v3099 = vpop.f32.mrf.mxu0
        %v3100 = vadd.f32 %v3072, %v3099
        %v3101 = vpop.f32.mrf.mxu0
        %v3102 = vadd.f32 %v3074, %v3101
        %3103 = vmatmul.bf16.gmra.mxu0 %v1192
        %v3104 = vpop.f32.mrf.mxu0
        %v3105 = vadd.f32 %v3077, %v3104
        %v3106 = vpop.f32.mrf.mxu0
        %v3107 = vadd.f32 %v3079, %v3106
        %3108 = vmatmul.bf16.gmra.mxu0 %v1198
        %v3109 = vpop.f32.mrf.mxu0
        %v3110 = vadd.f32 %v3082, %v3109
        %v3111 = vpop.f32.mrf.mxu0
        %3112 = vdwg.mxu0
        %3113 = vmatpush.bf16.msra.mxu0 %v2325
        %3114 = vmatpush.bf16.msra.mxu0 %v2319
        %3115 = vmatpush.bf16.msra.mxu0 %v2313
        %3116 = vmatpush.bf16.msra.mxu0 %v2307
        %3117 = vmatpush.bf16.msra.mxu0 %v2301
        %3118 = vmatpush.bf16.msra.mxu0 %v2295
        %3119 = vmatpush.bf16.msra.mxu0 %v2289
        %3120 = vmatpush.bf16.msra.mxu0 %v2283
        %3121 = vmatmul.bf16.gmra.mxu0 %v1181
        %v3122 = vpop.f32.mrf.mxu0
        %v3123 = vadd.f32 %v3095, %v3122
        %v3124 = vpop.f32.mrf.mxu0
        %v3125 = vadd.f32 %v3097, %v3124
        %3126 = vmatmul.bf16.gmra.mxu0 %v1187
        %v3127 = vpop.f32.mrf.mxu0
        %v3128 = vadd.f32 %v3100, %v3127
        %v3129 = vpop.f32.mrf.mxu0
        %v3130 = vadd.f32 %v3102, %v3129
        %3131 = vmatmul.bf16.gmra.mxu0 %v1193
        %v3132 = vpop.f32.mrf.mxu0
        %v3133 = vadd.f32 %v3105, %v3132
        %v3134 = vpop.f32.mrf.mxu0
        %v3135 = vadd.f32 %v3107, %v3134
        %3136 = vmatmul.bf16.gmra.mxu0 %v1199
        %v3137 = vpop.f32.mrf.mxu0
        %v3138 = vadd.f32 %v3110, %v3137
        %v3139 = vpop.f32.mrf.mxu0
        %3140 = vdwg.mxu0
        %3141 = vmatpush.bf16.msra.mxu0 %v2373
        %3142 = vmatpush.bf16.msra.mxu0 %v2367
        %3143 = vmatpush.bf16.msra.mxu0 %v2361
        %3144 = vmatpush.bf16.msra.mxu0 %v2355
        %3145 = vmatpush.bf16.msra.mxu0 %v2349
        %3146 = vmatpush.bf16.msra.mxu0 %v2343
        %3147 = vmatpush.bf16.msra.mxu0 %v2337
        %3148 = vmatpush.bf16.msra.mxu0 %v2331
        %3149 = vmatmul.bf16.gmra.mxu0 %v1182
        %v3150 = vpop.f32.mrf.mxu0
        %v3151 = vadd.f32 %v3123, %v3150
        %v3152 = vpop.f32.mrf.mxu0
        %v3153 = vadd.f32 %v3125, %v3152
        %3154 = vmatmul.bf16.gmra.mxu0 %v1188
        %v3155 = vpop.f32.mrf.mxu0
        %v3156 = vadd.f32 %v3128, %v3155
        %v3157 = vpop.f32.mrf.mxu0
        %v3158 = vadd.f32 %v3130, %v3157
        %3159 = vmatmul.bf16.gmra.mxu0 %v1194
        %v3160 = vpop.f32.mrf.mxu0
        %v3161 = vadd.f32 %v3133, %v3160
        %v3162 = vpop.f32.mrf.mxu0
        %v3163 = vadd.f32 %v3135, %v3162
        %3164 = vmatmul.bf16.gmra.mxu0 %v1200
        %v3165 = vpop.f32.mrf.mxu0
        %v3166 = vadd.f32 %v3138, %v3165
        %v3167 = vpop.f32.mrf.mxu0
        %3168 = vdwg.mxu0
        %3169 = vmatpush.bf16.msra.mxu0 %v2134
        %3170 = vmatpush.bf16.msra.mxu0 %v2128
        %3171 = vmatpush.bf16.msra.mxu0 %v2122
        %3172 = vmatpush.bf16.msra.mxu0 %v2116
        %3173 = vmatpush.bf16.msra.mxu0 %v2110
        %3174 = vmatpush.bf16.msra.mxu0 %v2104
        %3175 = vmatpush.bf16.msra.mxu0 %v2098
        %3176 = vmatpush.bf16.msra.mxu0 %v2092
        %3177 = vmatmul.bf16.gmra.mxu0 %v1177
        %v3178 = vpop.f32.mrf.mxu0
        %v3179 = vadd.f32 %v1105, %v3178
        %v3180 = vpop.f32.mrf.mxu0
        %v3181 = vadd.f32 %v1105, %v3180
        %3182 = vmatmul.bf16.gmra.mxu0 %v1183
        %v3183 = vpop.f32.mrf.mxu0
        %v3184 = vadd.f32 %v1105, %v3183
        %v3185 = vpop.f32.mrf.mxu0
        %v3186 = vadd.f32 %v1105, %v3185
        %3187 = vmatmul.bf16.gmra.mxu0 %v1189
        %v3188 = vpop.f32.mrf.mxu0
        %v3189 = vadd.f32 %v1105, %v3188
        %v3190 = vpop.f32.mrf.mxu0
        %v3191 = vadd.f32 %v1105, %v3190
        %3192 = vmatmul.bf16.gmra.mxu0 %v1195
        %v3193 = vpop.f32.mrf.mxu0
        %v3194 = vadd.f32 %v1105, %v3193
        %v3195 = vpop.f32.mrf.mxu0
        %3196 = vdwg.mxu0
        %3197 = vmatpush.bf16.msra.mxu0 %v2182
        %3198 = vmatpush.bf16.msra.mxu0 %v2176
        %3199 = vmatpush.bf16.msra.mxu0 %v2170
        %3200 = vmatpush.bf16.msra.mxu0 %v2164
        %3201 = vmatpush.bf16.msra.mxu0 %v2158
        %3202 = vmatpush.bf16.msra.mxu0 %v2152
        %3203 = vmatpush.bf16.msra.mxu0 %v2146
        %3204 = vmatpush.bf16.msra.mxu0 %v2140
        %3205 = vmatmul.bf16.gmra.mxu0 %v1178
        %v3206 = vpop.f32.mrf.mxu0
        %v3207 = vadd.f32 %v3179, %v3206
        %v3208 = vpop.f32.mrf.mxu0
        %v3209 = vadd.f32 %v3181, %v3208
        %3210 = vmatmul.bf16.gmra.mxu0 %v1184
        %v3211 = vpop.f32.mrf.mxu0
        %v3212 = vadd.f32 %v3184, %v3211
        %v3213 = vpop.f32.mrf.mxu0
        %v3214 = vadd.f32 %v3186, %v3213
        %3215 = vmatmul.bf16.gmra.mxu0 %v1190
        %v3216 = vpop.f32.mrf.mxu0
        %v3217 = vadd.f32 %v3189, %v3216
        %v3218 = vpop.f32.mrf.mxu0
        %v3219 = vadd.f32 %v3191, %v3218
        %3220 = vmatmul.bf16.gmra.mxu0 %v1196
        %v3221 = vpop.f32.mrf.mxu0
        %v3222 = vadd.f32 %v3194, %v3221
        %v3223 = vpop.f32.mrf.mxu0
        %3224 = vdwg.mxu0
        %3225 = vmatpush.bf16.msra.mxu0 %v2230
        %3226 = vmatpush.bf16.msra.mxu0 %v2224
        %3227 = vmatpush.bf16.msra.mxu0 %v2218
        %3228 = vmatpush.bf16.msra.mxu0 %v2212
        %3229 = vmatpush.bf16.msra.mxu0 %v2206
        %3230 = vmatpush.bf16.msra.mxu0 %v2200
        %3231 = vmatpush.bf16.msra.mxu0 %v2194
        %3232 = vmatpush.bf16.msra.mxu0 %v2188
        %3233 = vmatmul.bf16.gmra.mxu0 %v1179
        %v3234 = vpop.f32.mrf.mxu0
        %v3235 = vadd.f32 %v3207, %v3234
        %v3236 = vpop.f32.mrf.mxu0
        %v3237 = vadd.f32 %v3209, %v3236
        %3238 = vmatmul.bf16.gmra.mxu0 %v1185
        %v3239 = vpop.f32.mrf.mxu0
        %v3240 = vadd.f32 %v3212, %v3239
        %v3241 = vpop.f32.mrf.mxu0
        %v3242 = vadd.f32 %v3214, %v3241
        %3243 = vmatmul.bf16.gmra.mxu0 %v1191
        %v3244 = vpop.f32.mrf.mxu0
        %v3245 = vadd.f32 %v3217, %v3244
        %v3246 = vpop.f32.mrf.mxu0
        %v3247 = vadd.f32 %v3219, %v3246
        %3248 = vmatmul.bf16.gmra.mxu0 %v1197
        %v3249 = vpop.f32.mrf.mxu0
        %v3250 = vadd.f32 %v3222, %v3249
        %v3251 = vpop.f32.mrf.mxu0
        %3252 = vdwg.mxu0
        %3253 = vmatpush.bf16.msra.mxu0 %v2278
        %3254 = vmatpush.bf16.msra.mxu0 %v2272
        %3255 = vmatpush.bf16.msra.mxu0 %v2266
        %3256 = vmatpush.bf16.msra.mxu0 %v2260
        %3257 = vmatpush.bf16.msra.mxu0 %v2254
        %3258 = vmatpush.bf16.msra.mxu0 %v2248
        %3259 = vmatpush.bf16.msra.mxu0 %v2242
        %3260 = vmatpush.bf16.msra.mxu0 %v2236
        %3261 = vmatmul.bf16.gmra.mxu0 %v1180
        %v3262 = vpop.f32.mrf.mxu0
        %v3263 = vadd.f32 %v3235, %v3262
        %v3264 = vpop.f32.mrf.mxu0
        %v3265 = vadd.f32 %v3237, %v3264
        %3266 = vmatmul.bf16.gmra.mxu0 %v1186
        %v3267 = vpop.f32.mrf.mxu0
        %v3268 = vadd.f32 %v3240, %v3267
        %v3269 = vpop.f32.mrf.mxu0
        %v3270 = vadd.f32 %v3242, %v3269
        %3271 = vmatmul.bf16.gmra.mxu0 %v1192
        %v3272 = vpop.f32.mrf.mxu0
        %v3273 = vadd.f32 %v3245, %v3272
        %v3274 = vpop.f32.mrf.mxu0
        %v3275 = vadd.f32 %v3247, %v3274
        %3276 = vmatmul.bf16.gmra.mxu0 %v1198
        %v3277 = vpop.f32.mrf.mxu0
        %v3278 = vadd.f32 %v3250, %v3277
        %v3279 = vpop.f32.mrf.mxu0
        %3280 = vdwg.mxu0
        %3281 = vmatpush.bf16.msra.mxu0 %v2326
        %3282 = vmatpush.bf16.msra.mxu0 %v2320
        %3283 = vmatpush.bf16.msra.mxu0 %v2314
        %3284 = vmatpush.bf16.msra.mxu0 %v2308
        %3285 = vmatpush.bf16.msra.mxu0 %v2302
        %3286 = vmatpush.bf16.msra.mxu0 %v2296
        %3287 = vmatpush.bf16.msra.mxu0 %v2290
        %3288 = vmatpush.bf16.msra.mxu0 %v2284
        %3289 = vmatmul.bf16.gmra.mxu0 %v1181
        %v3290 = vpop.f32.mrf.mxu0
        %v3291 = vadd.f32 %v3263, %v3290
        %v3292 = vpop.f32.mrf.mxu0
        %v3293 = vadd.f32 %v3265, %v3292
        %3294 = vmatmul.bf16.gmra.mxu0 %v1187
        %v3295 = vpop.f32.mrf.mxu0
        %v3296 = vadd.f32 %v3268, %v3295
        %v3297 = vpop.f32.mrf.mxu0
        %v3298 = vadd.f32 %v3270, %v3297
        %3299 = vmatmul.bf16.gmra.mxu0 %v1193
        %v3300 = vpop.f32.mrf.mxu0
        %v3301 = vadd.f32 %v3273, %v3300
        %v3302 = vpop.f32.mrf.mxu0
        %v3303 = vadd.f32 %v3275, %v3302
        %3304 = vmatmul.bf16.gmra.mxu0 %v1199
        %v3305 = vpop.f32.mrf.mxu0
        %v3306 = vadd.f32 %v3278, %v3305
        %v3307 = vpop.f32.mrf.mxu0
        %3308 = vdwg.mxu0
        %3309 = vmatpush.bf16.msra.mxu0 %v2374
        %3310 = vmatpush.bf16.msra.mxu0 %v2368
        %3311 = vmatpush.bf16.msra.mxu0 %v2362
        %3312 = vmatpush.bf16.msra.mxu0 %v2356
        %3313 = vmatpush.bf16.msra.mxu0 %v2350
        %3314 = vmatpush.bf16.msra.mxu0 %v2344
        %3315 = vmatpush.bf16.msra.mxu0 %v2338
        %3316 = vmatpush.bf16.msra.mxu0 %v2332
        %3317 = vmatmul.bf16.gmra.mxu0 %v1182
        %v3318 = vpop.f32.mrf.mxu0
        %v3319 = vadd.f32 %v3291, %v3318
        %v3320 = vpop.f32.mrf.mxu0
        %v3321 = vadd.f32 %v3293, %v3320
        %3322 = vmatmul.bf16.gmra.mxu0 %v1188
        %v3323 = vpop.f32.mrf.mxu0
        %v3324 = vadd.f32 %v3296, %v3323
        %v3325 = vpop.f32.mrf.mxu0
        %v3326 = vadd.f32 %v3298, %v3325
        %3327 = vmatmul.bf16.gmra.mxu0 %v1194
        %v3328 = vpop.f32.mrf.mxu0
        %v3329 = vadd.f32 %v3301, %v3328
        %v3330 = vpop.f32.mrf.mxu0
        %v3331 = vadd.f32 %v3303, %v3330
        %3332 = vmatmul.bf16.gmra.mxu0 %v1200
        %v3333 = vpop.f32.mrf.mxu0
        %v3334 = vadd.f32 %v3306, %v3333
        %v3335 = vpop.f32.mrf.mxu0
        %3336 = vdwg.mxu0
        %3337 = vmatpush.bf16.msra.mxu0 %v2135
        %3338 = vmatpush.bf16.msra.mxu0 %v2129
        %3339 = vmatpush.bf16.msra.mxu0 %v2123
        %3340 = vmatpush.bf16.msra.mxu0 %v2117
        %3341 = vmatpush.bf16.msra.mxu0 %v2111
        %3342 = vmatpush.bf16.msra.mxu0 %v2105
        %3343 = vmatpush.bf16.msra.mxu0 %v2099
        %3344 = vmatpush.bf16.msra.mxu0 %v2093
        %3345 = vmatmul.bf16.gmra.mxu0 %v1177
        %v3346 = vpop.f32.mrf.mxu0
        %v3347 = vadd.f32 %v1106, %v3346
        %v3348 = vpop.f32.mrf.mxu0
        %v3349 = vadd.f32 %v1106, %v3348
        %3350 = vmatmul.bf16.gmra.mxu0 %v1183
        %v3351 = vpop.f32.mrf.mxu0
        %v3352 = vadd.f32 %v1106, %v3351
        %v3353 = vpop.f32.mrf.mxu0
        %v3354 = vadd.f32 %v1106, %v3353
        %3355 = vmatmul.bf16.gmra.mxu0 %v1189
        %v3356 = vpop.f32.mrf.mxu0
        %v3357 = vadd.f32 %v1106, %v3356
        %v3358 = vpop.f32.mrf.mxu0
        %v3359 = vadd.f32 %v1106, %v3358
        %3360 = vmatmul.bf16.gmra.mxu0 %v1195
        %v3361 = vpop.f32.mrf.mxu0
        %v3362 = vadd.f32 %v1106, %v3361
        %v3363 = vpop.f32.mrf.mxu0
        %3364 = vdwg.mxu0
        %3365 = vmatpush.bf16.msra.mxu0 %v2183
        %3366 = vmatpush.bf16.msra.mxu0 %v2177
        %3367 = vmatpush.bf16.msra.mxu0 %v2171
        %3368 = vmatpush.bf16.msra.mxu0 %v2165
        %3369 = vmatpush.bf16.msra.mxu0 %v2159
        %3370 = vmatpush.bf16.msra.mxu0 %v2153
        %3371 = vmatpush.bf16.msra.mxu0 %v2147
        %3372 = vmatpush.bf16.msra.mxu0 %v2141
        %3373 = vmatmul.bf16.gmra.mxu0 %v1178
        %v3374 = vpop.f32.mrf.mxu0
        %v3375 = vadd.f32 %v3347, %v3374
        %v3376 = vpop.f32.mrf.mxu0
        %v3377 = vadd.f32 %v3349, %v3376
        %3378 = vmatmul.bf16.gmra.mxu0 %v1184
        %v3379 = vpop.f32.mrf.mxu0
        %v3380 = vadd.f32 %v3352, %v3379
        %v3381 = vpop.f32.mrf.mxu0
        %v3382 = vadd.f32 %v3354, %v3381
        %3383 = vmatmul.bf16.gmra.mxu0 %v1190
        %v3384 = vpop.f32.mrf.mxu0
        %v3385 = vadd.f32 %v3357, %v3384
        %v3386 = vpop.f32.mrf.mxu0
        %v3387 = vadd.f32 %v3359, %v3386
        %3388 = vmatmul.bf16.gmra.mxu0 %v1196
        %v3389 = vpop.f32.mrf.mxu0
        %v3390 = vadd.f32 %v3362, %v3389
        %v3391 = vpop.f32.mrf.mxu0
        %3392 = vdwg.mxu0
        %3393 = vmatpush.bf16.msra.mxu0 %v2231
        %3394 = vmatpush.bf16.msra.mxu0 %v2225
        %3395 = vmatpush.bf16.msra.mxu0 %v2219
        %3396 = vmatpush.bf16.msra.mxu0 %v2213
        %3397 = vmatpush.bf16.msra.mxu0 %v2207
        %3398 = vmatpush.bf16.msra.mxu0 %v2201
        %3399 = vmatpush.bf16.msra.mxu0 %v2195
        %3400 = vmatpush.bf16.msra.mxu0 %v2189
        %3401 = vmatmul.bf16.gmra.mxu0 %v1179
        %v3402 = vpop.f32.mrf.mxu0
        %v3403 = vadd.f32 %v3375, %v3402
        %v3404 = vpop.f32.mrf.mxu0
        %v3405 = vadd.f32 %v3377, %v3404
        %3406 = vmatmul.bf16.gmra.mxu0 %v1185
        %v3407 = vpop.f32.mrf.mxu0
        %v3408 = vadd.f32 %v3380, %v3407
        %v3409 = vpop.f32.mrf.mxu0
        %v3410 = vadd.f32 %v3382, %v3409
        %3411 = vmatmul.bf16.gmra.mxu0 %v1191
        %v3412 = vpop.f32.mrf.mxu0
        %v3413 = vadd.f32 %v3385, %v3412
        %v3414 = vpop.f32.mrf.mxu0
        %v3415 = vadd.f32 %v3387, %v3414
        %3416 = vmatmul.bf16.gmra.mxu0 %v1197
        %v3417 = vpop.f32.mrf.mxu0
        %v3418 = vadd.f32 %v3390, %v3417
        %v3419 = vpop.f32.mrf.mxu0
        %3420 = vdwg.mxu0
        %3421 = vmatpush.bf16.msra.mxu0 %v2279
        %3422 = vmatpush.bf16.msra.mxu0 %v2273
        %3423 = vmatpush.bf16.msra.mxu0 %v2267
        %3424 = vmatpush.bf16.msra.mxu0 %v2261
        %3425 = vmatpush.bf16.msra.mxu0 %v2255
        %3426 = vmatpush.bf16.msra.mxu0 %v2249
        %3427 = vmatpush.bf16.msra.mxu0 %v2243
        %3428 = vmatpush.bf16.msra.mxu0 %v2237
        %3429 = vmatmul.bf16.gmra.mxu0 %v1180
        %v3430 = vpop.f32.mrf.mxu0
        %v3431 = vadd.f32 %v3403, %v3430
        %v3432 = vpop.f32.mrf.mxu0
        %v3433 = vadd.f32 %v3405, %v3432
        %3434 = vmatmul.bf16.gmra.mxu0 %v1186
        %v3435 = vpop.f32.mrf.mxu0
        %v3436 = vadd.f32 %v3408, %v3435
        %v3437 = vpop.f32.mrf.mxu0
        %v3438 = vadd.f32 %v3410, %v3437
        %3439 = vmatmul.bf16.gmra.mxu0 %v1192
        %v3440 = vpop.f32.mrf.mxu0
        %v3441 = vadd.f32 %v3413, %v3440
        %v3442 = vpop.f32.mrf.mxu0
        %v3443 = vadd.f32 %v3415, %v3442
        %3444 = vmatmul.bf16.gmra.mxu0 %v1198
        %v3445 = vpop.f32.mrf.mxu0
        %v3446 = vadd.f32 %v3418, %v3445
        %v3447 = vpop.f32.mrf.mxu0
        %3448 = vdwg.mxu0
        %3449 = vmatpush.bf16.msra.mxu0 %v2327
        %3450 = vmatpush.bf16.msra.mxu0 %v2321
        %3451 = vmatpush.bf16.msra.mxu0 %v2315
        %3452 = vmatpush.bf16.msra.mxu0 %v2309
        %3453 = vmatpush.bf16.msra.mxu0 %v2303
        %3454 = vmatpush.bf16.msra.mxu0 %v2297
        %3455 = vmatpush.bf16.msra.mxu0 %v2291
        %3456 = vmatpush.bf16.msra.mxu0 %v2285
        %3457 = vmatmul.bf16.gmra.mxu0 %v1181
        %v3458 = vpop.f32.mrf.mxu0
        %v3459 = vadd.f32 %v3431, %v3458
        %v3460 = vpop.f32.mrf.mxu0
        %v3461 = vadd.f32 %v3433, %v3460
        %3462 = vmatmul.bf16.gmra.mxu0 %v1187
        %v3463 = vpop.f32.mrf.mxu0
        %v3464 = vadd.f32 %v3436, %v3463
        %v3465 = vpop.f32.mrf.mxu0
        %v3466 = vadd.f32 %v3438, %v3465
        %3467 = vmatmul.bf16.gmra.mxu0 %v1193
        %v3468 = vpop.f32.mrf.mxu0
        %v3469 = vadd.f32 %v3441, %v3468
        %v3470 = vpop.f32.mrf.mxu0
        %v3471 = vadd.f32 %v3443, %v3470
        %3472 = vmatmul.bf16.gmra.mxu0 %v1199
        %v3473 = vpop.f32.mrf.mxu0
        %v3474 = vadd.f32 %v3446, %v3473
        %v3475 = vpop.f32.mrf.mxu0
        %3476 = vdwg.mxu0
        %3477 = vmatpush.bf16.msra.mxu0 %v2375
        %3478 = vmatpush.bf16.msra.mxu0 %v2369
        %3479 = vmatpush.bf16.msra.mxu0 %v2363
        %3480 = vmatpush.bf16.msra.mxu0 %v2357
        %3481 = vmatpush.bf16.msra.mxu0 %v2351
        %3482 = vmatpush.bf16.msra.mxu0 %v2345
        %3483 = vmatpush.bf16.msra.mxu0 %v2339
        %3484 = vmatpush.bf16.msra.mxu0 %v2333
        %3485 = vmatmul.bf16.gmra.mxu0 %v1182
        %v3486 = vpop.f32.mrf.mxu0
        %v3487 = vadd.f32 %v3459, %v3486
        %v3488 = vpop.f32.mrf.mxu0
        %v3489 = vadd.f32 %v3461, %v3488
        %3490 = vmatmul.bf16.gmra.mxu0 %v1188
        %v3491 = vpop.f32.mrf.mxu0
        %v3492 = vadd.f32 %v3464, %v3491
        %v3493 = vpop.f32.mrf.mxu0
        %v3494 = vadd.f32 %v3466, %v3493
        %3495 = vmatmul.bf16.gmra.mxu0 %v1194
        %v3496 = vpop.f32.mrf.mxu0
        %v3497 = vadd.f32 %v3469, %v3496
        %v3498 = vpop.f32.mrf.mxu0
        %v3499 = vadd.f32 %v3471, %v3498
        %3500 = vmatmul.bf16.gmra.mxu0 %v1200
        %v3501 = vpop.f32.mrf.mxu0
        %v3502 = vadd.f32 %v3474, %v3501
        %v3503 = vpop.f32.mrf.mxu0
        %3504 = vdwg.mxu0
        %3505 = vmatpush.bf16.msra.mxu0 %v2136
        %3506 = vmatpush.bf16.msra.mxu0 %v2130
        %3507 = vmatpush.bf16.msra.mxu0 %v2124
        %3508 = vmatpush.bf16.msra.mxu0 %v2118
        %3509 = vmatpush.bf16.msra.mxu0 %v2112
        %3510 = vmatpush.bf16.msra.mxu0 %v2106
        %3511 = vmatpush.bf16.msra.mxu0 %v2100
        %3512 = vmatpush.bf16.msra.mxu0 %v2094
        %3513 = vmatmul.bf16.gmra.mxu0 %v1177
        %v3514 = vpop.f32.mrf.mxu0
        %v3515 = vadd.f32 %v1107, %v3514
        %v3516 = vpop.f32.mrf.mxu0
        %v3517 = vadd.f32 %v1107, %v3516
        %3518 = vmatmul.bf16.gmra.mxu0 %v1183
        %v3519 = vpop.f32.mrf.mxu0
        %v3520 = vadd.f32 %v1107, %v3519
        %v3521 = vpop.f32.mrf.mxu0
        %v3522 = vadd.f32 %v1107, %v3521
        %3523 = vmatmul.bf16.gmra.mxu0 %v1189
        %v3524 = vpop.f32.mrf.mxu0
        %v3525 = vadd.f32 %v1107, %v3524
        %v3526 = vpop.f32.mrf.mxu0
        %v3527 = vadd.f32 %v1107, %v3526
        %3528 = vmatmul.bf16.gmra.mxu0 %v1195
        %v3529 = vpop.f32.mrf.mxu0
        %v3530 = vadd.f32 %v1107, %v3529
        %v3531 = vpop.f32.mrf.mxu0
        %3532 = vdwg.mxu0
        %3533 = vmatpush.bf16.msra.mxu0 %v2184
        %3534 = vmatpush.bf16.msra.mxu0 %v2178
        %3535 = vmatpush.bf16.msra.mxu0 %v2172
        %3536 = vmatpush.bf16.msra.mxu0 %v2166
        %3537 = vmatpush.bf16.msra.mxu0 %v2160
        %3538 = vmatpush.bf16.msra.mxu0 %v2154
        %3539 = vmatpush.bf16.msra.mxu0 %v2148
        %3540 = vmatpush.bf16.msra.mxu0 %v2142
        %3541 = vmatmul.bf16.gmra.mxu0 %v1178
        %v3542 = vpop.f32.mrf.mxu0
        %v3543 = vadd.f32 %v3515, %v3542
        %v3544 = vpop.f32.mrf.mxu0
        %v3545 = vadd.f32 %v3517, %v3544
        %3546 = vmatmul.bf16.gmra.mxu0 %v1184
        %v3547 = vpop.f32.mrf.mxu0
        %v3548 = vadd.f32 %v3520, %v3547
        %v3549 = vpop.f32.mrf.mxu0
        %v3550 = vadd.f32 %v3522, %v3549
        %3551 = vmatmul.bf16.gmra.mxu0 %v1190
        %v3552 = vpop.f32.mrf.mxu0
        %v3553 = vadd.f32 %v3525, %v3552
        %v3554 = vpop.f32.mrf.mxu0
        %v3555 = vadd.f32 %v3527, %v3554
        %3556 = vmatmul.bf16.gmra.mxu0 %v1196
        %v3557 = vpop.f32.mrf.mxu0
        %v3558 = vadd.f32 %v3530, %v3557
        %v3559 = vpop.f32.mrf.mxu0
        %3560 = vdwg.mxu0
        %3561 = vmatpush.bf16.msra.mxu0 %v2232
        %3562 = vmatpush.bf16.msra.mxu0 %v2226
        %3563 = vmatpush.bf16.msra.mxu0 %v2220
        %3564 = vmatpush.bf16.msra.mxu0 %v2214
        %3565 = vmatpush.bf16.msra.mxu0 %v2208
        %3566 = vmatpush.bf16.msra.mxu0 %v2202
        %3567 = vmatpush.bf16.msra.mxu0 %v2196
        %3568 = vmatpush.bf16.msra.mxu0 %v2190
        %3569 = vmatmul.bf16.gmra.mxu0 %v1179
        %v3570 = vpop.f32.mrf.mxu0
        %v3571 = vadd.f32 %v3543, %v3570
        %v3572 = vpop.f32.mrf.mxu0
        %v3573 = vadd.f32 %v3545, %v3572
        %3574 = vmatmul.bf16.gmra.mxu0 %v1185
        %v3575 = vpop.f32.mrf.mxu0
        %v3576 = vadd.f32 %v3548, %v3575
        %v3577 = vpop.f32.mrf.mxu0
        %v3578 = vadd.f32 %v3550, %v3577
        %3579 = vmatmul.bf16.gmra.mxu0 %v1191
        %v3580 = vpop.f32.mrf.mxu0
        %v3581 = vadd.f32 %v3553, %v3580
        %v3582 = vpop.f32.mrf.mxu0
        %v3583 = vadd.f32 %v3555, %v3582
        %3584 = vmatmul.bf16.gmra.mxu0 %v1197
        %v3585 = vpop.f32.mrf.mxu0
        %v3586 = vadd.f32 %v3558, %v3585
        %v3587 = vpop.f32.mrf.mxu0
        %3588 = vdwg.mxu0
        %3589 = vmatpush.bf16.msra.mxu0 %v2280
        %3590 = vmatpush.bf16.msra.mxu0 %v2274
        %3591 = vmatpush.bf16.msra.mxu0 %v2268
        %3592 = vmatpush.bf16.msra.mxu0 %v2262
        %3593 = vmatpush.bf16.msra.mxu0 %v2256
        %3594 = vmatpush.bf16.msra.mxu0 %v2250
        %3595 = vmatpush.bf16.msra.mxu0 %v2244
        %3596 = vmatpush.bf16.msra.mxu0 %v2238
        %3597 = vmatmul.bf16.gmra.mxu0 %v1180
        %v3598 = vpop.f32.mrf.mxu0
        %v3599 = vadd.f32 %v3571, %v3598
        %v3600 = vpop.f32.mrf.mxu0
        %v3601 = vadd.f32 %v3573, %v3600
        %3602 = vmatmul.bf16.gmra.mxu0 %v1186
        %v3603 = vpop.f32.mrf.mxu0
        %v3604 = vadd.f32 %v3576, %v3603
        %v3605 = vpop.f32.mrf.mxu0
        %v3606 = vadd.f32 %v3578, %v3605
        %3607 = vmatmul.bf16.gmra.mxu0 %v1192
        %v3608 = vpop.f32.mrf.mxu0
        %v3609 = vadd.f32 %v3581, %v3608
        %v3610 = vpop.f32.mrf.mxu0
        %v3611 = vadd.f32 %v3583, %v3610
        %3612 = vmatmul.bf16.gmra.mxu0 %v1198
        %v3613 = vpop.f32.mrf.mxu0
        %v3614 = vadd.f32 %v3586, %v3613
        %v3615 = vpop.f32.mrf.mxu0
        %3616 = vdwg.mxu0
        %3617 = vmatpush.bf16.msra.mxu0 %v2328
        %3618 = vmatpush.bf16.msra.mxu0 %v2322
        %3619 = vmatpush.bf16.msra.mxu0 %v2316
        %3620 = vmatpush.bf16.msra.mxu0 %v2310
        %3621 = vmatpush.bf16.msra.mxu0 %v2304
        %3622 = vmatpush.bf16.msra.mxu0 %v2298
        %3623 = vmatpush.bf16.msra.mxu0 %v2292
        %3624 = vmatpush.bf16.msra.mxu0 %v2286
        %3625 = vmatmul.bf16.gmra.mxu0 %v1181
        %v3626 = vpop.f32.mrf.mxu0
        %v3627 = vadd.f32 %v3599, %v3626
        %v3628 = vpop.f32.mrf.mxu0
        %v3629 = vadd.f32 %v3601, %v3628
        %3630 = vmatmul.bf16.gmra.mxu0 %v1187
        %v3631 = vpop.f32.mrf.mxu0
        %v3632 = vadd.f32 %v3604, %v3631
        %v3633 = vpop.f32.mrf.mxu0
        %v3634 = vadd.f32 %v3606, %v3633
        %3635 = vmatmul.bf16.gmra.mxu0 %v1193
        %v3636 = vpop.f32.mrf.mxu0
        %v3637 = vadd.f32 %v3609, %v3636
        %v3638 = vpop.f32.mrf.mxu0
        %v3639 = vadd.f32 %v3611, %v3638
        %3640 = vmatmul.bf16.gmra.mxu0 %v1199
        %v3641 = vpop.f32.mrf.mxu0
        %v3642 = vadd.f32 %v3614, %v3641
        %v3643 = vpop.f32.mrf.mxu0
        %3644 = vdwg.mxu0
        %3645 = vmatpush.bf16.msra.mxu0 %v2376
        %3646 = vmatpush.bf16.msra.mxu0 %v2370
        %3647 = vmatpush.bf16.msra.mxu0 %v2364
        %3648 = vmatpush.bf16.msra.mxu0 %v2358
        %3649 = vmatpush.bf16.msra.mxu0 %v2352
        %3650 = vmatpush.bf16.msra.mxu0 %v2346
        %3651 = vmatpush.bf16.msra.mxu0 %v2340
        %3652 = vmatpush.bf16.msra.mxu0 %v2334
        %3653 = vmatmul.bf16.gmra.mxu0 %v1182
        %v3654 = vpop.f32.mrf.mxu0
        %v3655 = vadd.f32 %v3627, %v3654
        %v3656 = vpop.f32.mrf.mxu0
        %v3657 = vadd.f32 %v3629, %v3656
        %3658 = vmatmul.bf16.gmra.mxu0 %v1188
        %v3659 = vpop.f32.mrf.mxu0
        %v3660 = vadd.f32 %v3632, %v3659
        %v3661 = vpop.f32.mrf.mxu0
        %v3662 = vadd.f32 %v3634, %v3661
        %3663 = vmatmul.bf16.gmra.mxu0 %v1194
        %v3664 = vpop.f32.mrf.mxu0
        %v3665 = vadd.f32 %v3637, %v3664
        %v3666 = vpop.f32.mrf.mxu0
        %v3667 = vadd.f32 %v3639, %v3666
        %3668 = vmatmul.bf16.gmra.mxu0 %v1200
        %v3669 = vpop.f32.mrf.mxu0
        %v3670 = vadd.f32 %v3642, %v3669
        %v3671 = vpop.f32.mrf.mxu0
        %3672 = vdwg.mxu0
        %v3673 = vmul.f32 %v2815, 0.5
        %v3674 = vmul.f32 %v2983, 0.5
        %v3675 = vmul.f32 %v3151, 0.5
        %v3676 = vmul.f32 %v3319, 0.5
        %v3677 = vmul.f32 %v3487, 0.5
        %v3678 = vmul.f32 %v3655, 0.5
        %v3679 = vmul.f32 %v2817, 0.5
        %v3680 = vmul.f32 %v2985, 0.5
        %v3681 = vmul.f32 %v3153, 0.5
        %v3682 = vmul.f32 %v3321, 0.5
        %v3683 = vmul.f32 %v3489, 0.5
        %v3684 = vmul.f32 %v3657, 0.5
        %v3685 = vmul.f32 %v2820, 0.5
        %v3686 = vmul.f32 %v2988, 0.5
        %v3687 = vmul.f32 %v3156, 0.5
        %v3688 = vmul.f32 %v3324, 0.5
        %v3689 = vmul.f32 %v3492, 0.5
        %v3690 = vmul.f32 %v3660, 0.5
        %v3691 = vmul.f32 %v2822, 0.5
        %v3692 = vmul.f32 %v2990, 0.5
        %v3693 = vmul.f32 %v3158, 0.5
        %v3694 = vmul.f32 %v3326, 0.5
        %v3695 = vmul.f32 %v3494, 0.5
        %v3696 = vmul.f32 %v3662, 0.5
        %v3697 = vmul.f32 %v2825, 0.5
        %v3698 = vmul.f32 %v2993, 0.5
        %v3699 = vmul.f32 %v3161, 0.5
        %v3700 = vmul.f32 %v3329, 0.5
        %v3701 = vmul.f32 %v3497, 0.5
        %v3702 = vmul.f32 %v3665, 0.5
        %v3703 = vmul.f32 %v2827, 0.5
        %v3704 = vmul.f32 %v2995, 0.5
        %v3705 = vmul.f32 %v3163, 0.5
        %v3706 = vmul.f32 %v3331, 0.5
        %v3707 = vmul.f32 %v3499, 0.5
        %v3708 = vmul.f32 %v3667, 0.5
        %v3709 = vmul.f32 %v2830, 0.5
        %v3710 = vmul.f32 %v2998, 0.5
        %v3711 = vmul.f32 %v3166, 0.5
        %v3712 = vmul.f32 %v3334, 0.5
        %v3713 = vmul.f32 %v3502, 0.5
        %v3714 = vmul.f32 %v3670, 0.5
        %v3715 = vmul.f32 %v2815, 0.70710677
        %v3716 = vmul.f32 %v2983, 0.70710677
        %v3717 = vmul.f32 %v3151, 0.70710677
        %v3718 = vmul.f32 %v3319, 0.70710677
        %v3719 = vmul.f32 %v3487, 0.70710677
        %v3720 = vmul.f32 %v3655, 0.70710677
        %v3721 = vmul.f32 %v2817, 0.70710677
        %v3722 = vmul.f32 %v2985, 0.70710677
        %v3723 = vmul.f32 %v3153, 0.70710677
        %v3724 = vmul.f32 %v3321, 0.70710677
        %v3725 = vmul.f32 %v3489, 0.70710677
        %v3726 = vmul.f32 %v3657, 0.70710677
        %v3727 = vmul.f32 %v2820, 0.70710677
        %v3728 = vmul.f32 %v2988, 0.70710677
        %v3729 = vmul.f32 %v3156, 0.70710677
        %v3730 = vmul.f32 %v3324, 0.70710677
        %v3731 = vmul.f32 %v3492, 0.70710677
        %v3732 = vmul.f32 %v3660, 0.70710677
        %v3733 = vmul.f32 %v2822, 0.70710677
        %v3734 = vmul.f32 %v2990, 0.70710677
        %v3735 = vmul.f32 %v3158, 0.70710677
        %v3736 = vmul.f32 %v3326, 0.70710677
        %v3737 = vmul.f32 %v3494, 0.70710677
        %v3738 = vmul.f32 %v3662, 0.70710677
        %v3739 = vmul.f32 %v2825, 0.70710677
        %v3740 = vmul.f32 %v2993, 0.70710677
        %v3741 = vmul.f32 %v3161, 0.70710677
        %v3742 = vmul.f32 %v3329, 0.70710677
        %v3743 = vmul.f32 %v3497, 0.70710677
        %v3744 = vmul.f32 %v3665, 0.70710677
        %v3745 = vmul.f32 %v2827, 0.70710677
        %v3746 = vmul.f32 %v2995, 0.70710677
        %v3747 = vmul.f32 %v3163, 0.70710677
        %v3748 = vmul.f32 %v3331, 0.70710677
        %v3749 = vmul.f32 %v3499, 0.70710677
        %v3750 = vmul.f32 %v3667, 0.70710677
        %v3751 = vmul.f32 %v2830, 0.70710677
        %v3752 = vmul.f32 %v2998, 0.70710677
        %v3753 = vmul.f32 %v3166, 0.70710677
        %v3754 = vmul.f32 %v3334, 0.70710677
        %v3755 = vmul.f32 %v3502, 0.70710677
        %v3756 = vmul.f32 %v3670, 0.70710677
        %v3757 = vmul.f32 %v3715, %v3715
        %v3758 = vmin.f32 16.0, %v3757
        %v3759 = vmul.f32 %v3758, 2.1237322e-06
        %v3760 = vadd.f32 %v3759, 0.00028619796
        %v3761 = vmul.f32 %v3758, %v3760
        %v3762 = vadd.f32 %v3761, 0.0036580483
        %v3763 = vmul.f32 %v3758, %v3762
        %v3764 = vadd.f32 %v3763, 0.05243302
        %v3765 = vmul.f32 %v3758, %v3764
        %v3766 = vadd.f32 %v3765, 0.18741608
        %v3767 = vmul.f32 %v3758, %v3766
        %v3768 = vadd.f32 %v3767, 1.1283791
        %v3769 = vmul.f32 %v3715, %v3768
        %v3770 = vmul.f32 %v3758, 3.8918573e-05
        %v3771 = vadd.f32 %v3770, 0.001143296
        %v3772 = vmul.f32 %v3758, %v3771
        %v3773 = vadd.f32 %v3772, 0.014752088
        %v3774 = vmul.f32 %v3758, %v3773
        %v3775 = vadd.f32 %v3774, 0.112945676
        %v3776 = vmul.f32 %v3758, %v3775
        %v3777 = vadd.f32 %v3776, 0.4994258
        %v3778 = vmul.f32 %v3758, %v3777
        %v3779 = vadd.f32 %v3778, 1.0
        %v3780 = vrcp.pop %v3779
        %v3781 = vmul.f32 %v3779, %v3780
        %v3782 = vsub.f32 1.0, %v3781
        %v3783 = vmul.f32 %v3780, %v3782
        %v3784 = vadd.f32 %v3780, %v3783
        %vm3785 = vweird.f32 %v3779
        %vm3786 = vweird.f32 %v3780
        %vm3787 = vmor %vm3785, %vm3786
        %v3788 = vsel %vm3787, %v3780, %v3784
        %v3789 = vand.u32 2147483647, %v3779
        %vm3790 = vcmp.eq.f32.partialorder %v3789, 8.507059e+37
        %v3791 = vand.u32 %v3779, 2147483648
        %v3792 = vor.u32 1.1754944e-38, %v3791
        %v3793 = vsel %vm3790, %v3792, %v3788
        %v3794 = vmul.f32 %v3769, %v3793
        %v3795 = vmin.f32 %v3794, 1.0
        %v3796 = vmax.f32 %v3795, -1.0
        %v3797 = vmul.f32 %v3716, %v3716
        %v3798 = vmin.f32 16.0, %v3797
        %v3799 = vmul.f32 %v3798, 2.1237322e-06
        %v3800 = vadd.f32 %v3799, 0.00028619796
        %v3801 = vmul.f32 %v3798, %v3800
        %v3802 = vadd.f32 %v3801, 0.0036580483
        %v3803 = vmul.f32 %v3798, %v3802
        %v3804 = vadd.f32 %v3803, 0.05243302
        %v3805 = vmul.f32 %v3798, %v3804
        %v3806 = vadd.f32 %v3805, 0.18741608
        %v3807 = vmul.f32 %v3798, %v3806
        %v3808 = vadd.f32 %v3807, 1.1283791
        %v3809 = vmul.f32 %v3716, %v3808
        %v3810 = vmul.f32 %v3798, 3.8918573e-05
        %v3811 = vadd.f32 %v3810, 0.001143296
        %v3812 = vmul.f32 %v3798, %v3811
        %v3813 = vadd.f32 %v3812, 0.014752088
        %v3814 = vmul.f32 %v3798, %v3813
        %v3815 = vadd.f32 %v3814, 0.112945676
        %v3816 = vmul.f32 %v3798, %v3815
        %v3817 = vadd.f32 %v3816, 0.4994258
        %v3818 = vmul.f32 %v3798, %v3817
        %v3819 = vadd.f32 %v3818, 1.0
        %v3820 = vrcp.pop %v3819
        %v3821 = vmul.f32 %v3819, %v3820
        %v3822 = vsub.f32 1.0, %v3821
        %v3823 = vmul.f32 %v3820, %v3822
        %v3824 = vadd.f32 %v3820, %v3823
        %vm3825 = vweird.f32 %v3819
        %vm3826 = vweird.f32 %v3820
        %vm3827 = vmor %vm3825, %vm3826
        %v3828 = vsel %vm3827, %v3820, %v3824
        %v3829 = vand.u32 2147483647, %v3819
        %vm3830 = vcmp.eq.f32.partialorder %v3829, 8.507059e+37
        %v3831 = vand.u32 %v3819, 2147483648
        %v3832 = vor.u32 1.1754944e-38, %v3831
        %v3833 = vsel %vm3830, %v3832, %v3828
        %v3834 = vmul.f32 %v3809, %v3833
        %v3835 = vmin.f32 %v3834, 1.0
        %v3836 = vmax.f32 %v3835, -1.0
        %v3837 = vmul.f32 %v3717, %v3717
        %v3838 = vmin.f32 16.0, %v3837
        %v3839 = vmul.f32 %v3838, 2.1237322e-06
        %v3840 = vadd.f32 %v3839, 0.00028619796
        %v3841 = vmul.f32 %v3838, %v3840
        %v3842 = vadd.f32 %v3841, 0.0036580483
        %v3843 = vmul.f32 %v3838, %v3842
        %v3844 = vadd.f32 %v3843, 0.05243302
        %v3845 = vmul.f32 %v3838, %v3844
        %v3846 = vadd.f32 %v3845, 0.18741608
        %v3847 = vmul.f32 %v3838, %v3846
        %v3848 = vadd.f32 %v3847, 1.1283791
        %v3849 = vmul.f32 %v3717, %v3848
        %v3850 = vmul.f32 %v3838, 3.8918573e-05
        %v3851 = vadd.f32 %v3850, 0.001143296
        %v3852 = vmul.f32 %v3838, %v3851
        %v3853 = vadd.f32 %v3852, 0.014752088
        %v3854 = vmul.f32 %v3838, %v3853
        %v3855 = vadd.f32 %v3854, 0.112945676
        %v3856 = vmul.f32 %v3838, %v3855
        %v3857 = vadd.f32 %v3856, 0.4994258
        %v3858 = vmul.f32 %v3838, %v3857
        %v3859 = vadd.f32 %v3858, 1.0
        %v3860 = vrcp.pop %v3859
        %v3861 = vmul.f32 %v3859, %v3860
        %v3862 = vsub.f32 1.0, %v3861
        %v3863 = vmul.f32 %v3860, %v3862
        %v3864 = vadd.f32 %v3860, %v3863
        %vm3865 = vweird.f32 %v3859
        %vm3866 = vweird.f32 %v3860
        %vm3867 = vmor %vm3865, %vm3866
        %v3868 = vsel %vm3867, %v3860, %v3864
        %v3869 = vand.u32 2147483647, %v3859
        %vm3870 = vcmp.eq.f32.partialorder %v3869, 8.507059e+37
        %v3871 = vand.u32 %v3859, 2147483648
        %v3872 = vor.u32 1.1754944e-38, %v3871
        %v3873 = vsel %vm3870, %v3872, %v3868
        %v3874 = vmul.f32 %v3849, %v3873
        %v3875 = vmin.f32 %v3874, 1.0
        %v3876 = vmax.f32 %v3875, -1.0
        %v3877 = vmul.f32 %v3718, %v3718
        %v3878 = vmin.f32 16.0, %v3877
        %v3879 = vmul.f32 %v3878, 2.1237322e-06
        %v3880 = vadd.f32 %v3879, 0.00028619796
        %v3881 = vmul.f32 %v3878, %v3880
        %v3882 = vadd.f32 %v3881, 0.0036580483
        %v3883 = vmul.f32 %v3878, %v3882
        %v3884 = vadd.f32 %v3883, 0.05243302
        %v3885 = vmul.f32 %v3878, %v3884
        %v3886 = vadd.f32 %v3885, 0.18741608
        %v3887 = vmul.f32 %v3878, %v3886
        %v3888 = vadd.f32 %v3887, 1.1283791
        %v3889 = vmul.f32 %v3718, %v3888
        %v3890 = vmul.f32 %v3878, 3.8918573e-05
        %v3891 = vadd.f32 %v3890, 0.001143296
        %v3892 = vmul.f32 %v3878, %v3891
        %v3893 = vadd.f32 %v3892, 0.014752088
        %v3894 = vmul.f32 %v3878, %v3893
        %v3895 = vadd.f32 %v3894, 0.112945676
        %v3896 = vmul.f32 %v3878, %v3895
        %v3897 = vadd.f32 %v3896, 0.4994258
        %v3898 = vmul.f32 %v3878, %v3897
        %v3899 = vadd.f32 %v3898, 1.0
        %v3900 = vrcp.pop %v3899
        %v3901 = vmul.f32 %v3899, %v3900
        %v3902 = vsub.f32 1.0, %v3901
        %v3903 = vmul.f32 %v3900, %v3902
        %v3904 = vadd.f32 %v3900, %v3903
        %vm3905 = vweird.f32 %v3899
        %vm3906 = vweird.f32 %v3900
        %vm3907 = vmor %vm3905, %vm3906
        %v3908 = vsel %vm3907, %v3900, %v3904
        %v3909 = vand.u32 2147483647, %v3899
        %vm3910 = vcmp.eq.f32.partialorder %v3909, 8.507059e+37
        %v3911 = vand.u32 %v3899, 2147483648
        %v3912 = vor.u32 1.1754944e-38, %v3911
        %v3913 = vsel %vm3910, %v3912, %v3908
        %v3914 = vmul.f32 %v3889, %v3913
        %v3915 = vmin.f32 %v3914, 1.0
        %v3916 = vmax.f32 %v3915, -1.0
        %v3917 = vmul.f32 %v3719, %v3719
        %v3918 = vmin.f32 16.0, %v3917
        %v3919 = vmul.f32 %v3918, 2.1237322e-06
        %v3920 = vadd.f32 %v3919, 0.00028619796
        %v3921 = vmul.f32 %v3918, %v3920
        %v3922 = vadd.f32 %v3921, 0.0036580483
        %v3923 = vmul.f32 %v3918, %v3922
        %v3924 = vadd.f32 %v3923, 0.05243302
        %v3925 = vmul.f32 %v3918, %v3924
        %v3926 = vadd.f32 %v3925, 0.18741608
        %v3927 = vmul.f32 %v3918, %v3926
        %v3928 = vadd.f32 %v3927, 1.1283791
        %v3929 = vmul.f32 %v3719, %v3928
        %v3930 = vmul.f32 %v3918, 3.8918573e-05
        %v3931 = vadd.f32 %v3930, 0.001143296
        %v3932 = vmul.f32 %v3918, %v3931
        %v3933 = vadd.f32 %v3932, 0.014752088
        %v3934 = vmul.f32 %v3918, %v3933
        %v3935 = vadd.f32 %v3934, 0.112945676
        %v3936 = vmul.f32 %v3918, %v3935
        %v3937 = vadd.f32 %v3936, 0.4994258
        %v3938 = vmul.f32 %v3918, %v3937
        %v3939 = vadd.f32 %v3938, 1.0
        %v3940 = vrcp.pop %v3939
        %v3941 = vmul.f32 %v3939, %v3940
        %v3942 = vsub.f32 1.0, %v3941
        %v3943 = vmul.f32 %v3940, %v3942
        %v3944 = vadd.f32 %v3940, %v3943
        %vm3945 = vweird.f32 %v3939
        %vm3946 = vweird.f32 %v3940
        %vm3947 = vmor %vm3945, %vm3946
        %v3948 = vsel %vm3947, %v3940, %v3944
        %v3949 = vand.u32 2147483647, %v3939
        %vm3950 = vcmp.eq.f32.partialorder %v3949, 8.507059e+37
        %v3951 = vand.u32 %v3939, 2147483648
        %v3952 = vor.u32 1.1754944e-38, %v3951
        %v3953 = vsel %vm3950, %v3952, %v3948
        %v3954 = vmul.f32 %v3929, %v3953
        %v3955 = vmin.f32 %v3954, 1.0
        %v3956 = vmax.f32 %v3955, -1.0
        %v3957 = vmul.f32 %v3720, %v3720
        %v3958 = vmin.f32 16.0, %v3957
        %v3959 = vmul.f32 %v3958, 2.1237322e-06
        %v3960 = vadd.f32 %v3959, 0.00028619796
        %v3961 = vmul.f32 %v3958, %v3960
        %v3962 = vadd.f32 %v3961, 0.0036580483
        %v3963 = vmul.f32 %v3958, %v3962
        %v3964 = vadd.f32 %v3963, 0.05243302
        %v3965 = vmul.f32 %v3958, %v3964
        %v3966 = vadd.f32 %v3965, 0.18741608
        %v3967 = vmul.f32 %v3958, %v3966
        %v3968 = vadd.f32 %v3967, 1.1283791
        %v3969 = vmul.f32 %v3720, %v3968
        %v3970 = vmul.f32 %v3958, 3.8918573e-05
        %v3971 = vadd.f32 %v3970, 0.001143296
        %v3972 = vmul.f32 %v3958, %v3971
        %v3973 = vadd.f32 %v3972, 0.014752088
        %v3974 = vmul.f32 %v3958, %v3973
        %v3975 = vadd.f32 %v3974, 0.112945676
        %v3976 = vmul.f32 %v3958, %v3975
        %v3977 = vadd.f32 %v3976, 0.4994258
        %v3978 = vmul.f32 %v3958, %v3977
        %v3979 = vadd.f32 %v3978, 1.0
        %v3980 = vrcp.pop %v3979
        %v3981 = vmul.f32 %v3979, %v3980
        %v3982 = vsub.f32 1.0, %v3981
        %v3983 = vmul.f32 %v3980, %v3982
        %v3984 = vadd.f32 %v3980, %v3983
        %vm3985 = vweird.f32 %v3979
        %vm3986 = vweird.f32 %v3980
        %vm3987 = vmor %vm3985, %vm3986
        %v3988 = vsel %vm3987, %v3980, %v3984
        %v3989 = vand.u32 2147483647, %v3979
        %vm3990 = vcmp.eq.f32.partialorder %v3989, 8.507059e+37
        %v3991 = vand.u32 %v3979, 2147483648
        %v3992 = vor.u32 1.1754944e-38, %v3991
        %v3993 = vsel %vm3990, %v3992, %v3988
        %v3994 = vmul.f32 %v3969, %v3993
        %v3995 = vmin.f32 %v3994, 1.0
        %v3996 = vmax.f32 %v3995, -1.0
        %v3997 = vmul.f32 %v3721, %v3721
        %v3998 = vmin.f32 16.0, %v3997
        %v3999 = vmul.f32 %v3998, 2.1237322e-06
        %v4000 = vadd.f32 %v3999, 0.00028619796
        %v4001 = vmul.f32 %v3998, %v4000
        %v4002 = vadd.f32 %v4001, 0.0036580483
        %v4003 = vmul.f32 %v3998, %v4002
        %v4004 = vadd.f32 %v4003, 0.05243302
        %v4005 = vmul.f32 %v3998, %v4004
        %v4006 = vadd.f32 %v4005, 0.18741608
        %v4007 = vmul.f32 %v3998, %v4006
        %v4008 = vadd.f32 %v4007, 1.1283791
        %v4009 = vmul.f32 %v3721, %v4008
        %v4010 = vmul.f32 %v3998, 3.8918573e-05
        %v4011 = vadd.f32 %v4010, 0.001143296
        %v4012 = vmul.f32 %v3998, %v4011
        %v4013 = vadd.f32 %v4012, 0.014752088
        %v4014 = vmul.f32 %v3998, %v4013
        %v4015 = vadd.f32 %v4014, 0.112945676
        %v4016 = vmul.f32 %v3998, %v4015
        %v4017 = vadd.f32 %v4016, 0.4994258
        %v4018 = vmul.f32 %v3998, %v4017
        %v4019 = vadd.f32 %v4018, 1.0
        %v4020 = vrcp.pop %v4019
        %v4021 = vmul.f32 %v4019, %v4020
        %v4022 = vsub.f32 1.0, %v4021
        %v4023 = vmul.f32 %v4020, %v4022
        %v4024 = vadd.f32 %v4020, %v4023
        %vm4025 = vweird.f32 %v4019
        %vm4026 = vweird.f32 %v4020
        %vm4027 = vmor %vm4025, %vm4026
        %v4028 = vsel %vm4027, %v4020, %v4024
        %v4029 = vand.u32 2147483647, %v4019
        %vm4030 = vcmp.eq.f32.partialorder %v4029, 8.507059e+37
        %v4031 = vand.u32 %v4019, 2147483648
        %v4032 = vor.u32 1.1754944e-38, %v4031
        %v4033 = vsel %vm4030, %v4032, %v4028
        %v4034 = vmul.f32 %v4009, %v4033
        %v4035 = vmin.f32 %v4034, 1.0
        %v4036 = vmax.f32 %v4035, -1.0
        %v4037 = vmul.f32 %v3722, %v3722
        %v4038 = vmin.f32 16.0, %v4037
        %v4039 = vmul.f32 %v4038, 2.1237322e-06
        %v4040 = vadd.f32 %v4039, 0.00028619796
        %v4041 = vmul.f32 %v4038, %v4040
        %v4042 = vadd.f32 %v4041, 0.0036580483
        %v4043 = vmul.f32 %v4038, %v4042
        %v4044 = vadd.f32 %v4043, 0.05243302
        %v4045 = vmul.f32 %v4038, %v4044
        %v4046 = vadd.f32 %v4045, 0.18741608
        %v4047 = vmul.f32 %v4038, %v4046
        %v4048 = vadd.f32 %v4047, 1.1283791
        %v4049 = vmul.f32 %v3722, %v4048
        %v4050 = vmul.f32 %v4038, 3.8918573e-05
        %v4051 = vadd.f32 %v4050, 0.001143296
        %v4052 = vmul.f32 %v4038, %v4051
        %v4053 = vadd.f32 %v4052, 0.014752088
        %v4054 = vmul.f32 %v4038, %v4053
        %v4055 = vadd.f32 %v4054, 0.112945676
        %v4056 = vmul.f32 %v4038, %v4055
        %v4057 = vadd.f32 %v4056, 0.4994258
        %v4058 = vmul.f32 %v4038, %v4057
        %v4059 = vadd.f32 %v4058, 1.0
        %v4060 = vrcp.pop %v4059
        %v4061 = vmul.f32 %v4059, %v4060
        %v4062 = vsub.f32 1.0, %v4061
        %v4063 = vmul.f32 %v4060, %v4062
        %v4064 = vadd.f32 %v4060, %v4063
        %vm4065 = vweird.f32 %v4059
        %vm4066 = vweird.f32 %v4060
        %vm4067 = vmor %vm4065, %vm4066
        %v4068 = vsel %vm4067, %v4060, %v4064
        %v4069 = vand.u32 2147483647, %v4059
        %vm4070 = vcmp.eq.f32.partialorder %v4069, 8.507059e+37
        %v4071 = vand.u32 %v4059, 2147483648
        %v4072 = vor.u32 1.1754944e-38, %v4071
        %v4073 = vsel %vm4070, %v4072, %v4068
        %v4074 = vmul.f32 %v4049, %v4073
        %v4075 = vmin.f32 %v4074, 1.0
        %v4076 = vmax.f32 %v4075, -1.0
        %v4077 = vmul.f32 %v3723, %v3723
        %v4078 = vmin.f32 16.0, %v4077
        %v4079 = vmul.f32 %v4078, 2.1237322e-06
        %v4080 = vadd.f32 %v4079, 0.00028619796
        %v4081 = vmul.f32 %v4078, %v4080
        %v4082 = vadd.f32 %v4081, 0.0036580483
        %v4083 = vmul.f32 %v4078, %v4082
        %v4084 = vadd.f32 %v4083, 0.05243302
        %v4085 = vmul.f32 %v4078, %v4084
        %v4086 = vadd.f32 %v4085, 0.18741608
        %v4087 = vmul.f32 %v4078, %v4086
        %v4088 = vadd.f32 %v4087, 1.1283791
        %v4089 = vmul.f32 %v3723, %v4088
        %v4090 = vmul.f32 %v4078, 3.8918573e-05
        %v4091 = vadd.f32 %v4090, 0.001143296
        %v4092 = vmul.f32 %v4078, %v4091
        %v4093 = vadd.f32 %v4092, 0.014752088
        %v4094 = vmul.f32 %v4078, %v4093
        %v4095 = vadd.f32 %v4094, 0.112945676
        %v4096 = vmul.f32 %v4078, %v4095
        %v4097 = vadd.f32 %v4096, 0.4994258
        %v4098 = vmul.f32 %v4078, %v4097
        %v4099 = vadd.f32 %v4098, 1.0
        %v4100 = vrcp.pop %v4099
        %v4101 = vmul.f32 %v4099, %v4100
        %v4102 = vsub.f32 1.0, %v4101
        %v4103 = vmul.f32 %v4100, %v4102
        %v4104 = vadd.f32 %v4100, %v4103
        %vm4105 = vweird.f32 %v4099
        %vm4106 = vweird.f32 %v4100
        %vm4107 = vmor %vm4105, %vm4106
        %v4108 = vsel %vm4107, %v4100, %v4104
        %v4109 = vand.u32 2147483647, %v4099
        %vm4110 = vcmp.eq.f32.partialorder %v4109, 8.507059e+37
        %v4111 = vand.u32 %v4099, 2147483648
        %v4112 = vor.u32 1.1754944e-38, %v4111
        %v4113 = vsel %vm4110, %v4112, %v4108
        %v4114 = vmul.f32 %v4089, %v4113
        %v4115 = vmin.f32 %v4114, 1.0
        %v4116 = vmax.f32 %v4115, -1.0
        %v4117 = vmul.f32 %v3724, %v3724
        %v4118 = vmin.f32 16.0, %v4117
        %v4119 = vmul.f32 %v4118, 2.1237322e-06
        %v4120 = vadd.f32 %v4119, 0.00028619796
        %v4121 = vmul.f32 %v4118, %v4120
        %v4122 = vadd.f32 %v4121, 0.0036580483
        %v4123 = vmul.f32 %v4118, %v4122
        %v4124 = vadd.f32 %v4123, 0.05243302
        %v4125 = vmul.f32 %v4118, %v4124
        %v4126 = vadd.f32 %v4125, 0.18741608
        %v4127 = vmul.f32 %v4118, %v4126
        %v4128 = vadd.f32 %v4127, 1.1283791
        %v4129 = vmul.f32 %v3724, %v4128
        %v4130 = vmul.f32 %v4118, 3.8918573e-05
        %v4131 = vadd.f32 %v4130, 0.001143296
        %v4132 = vmul.f32 %v4118, %v4131
        %v4133 = vadd.f32 %v4132, 0.014752088
        %v4134 = vmul.f32 %v4118, %v4133
        %v4135 = vadd.f32 %v4134, 0.112945676
        %v4136 = vmul.f32 %v4118, %v4135
        %v4137 = vadd.f32 %v4136, 0.4994258
        %v4138 = vmul.f32 %v4118, %v4137
        %v4139 = vadd.f32 %v4138, 1.0
        %v4140 = vrcp.pop %v4139
        %v4141 = vmul.f32 %v4139, %v4140
        %v4142 = vsub.f32 1.0, %v4141
        %v4143 = vmul.f32 %v4140, %v4142
        %v4144 = vadd.f32 %v4140, %v4143
        %vm4145 = vweird.f32 %v4139
        %vm4146 = vweird.f32 %v4140
        %vm4147 = vmor %vm4145, %vm4146
        %v4148 = vsel %vm4147, %v4140, %v4144
        %v4149 = vand.u32 2147483647, %v4139
        %vm4150 = vcmp.eq.f32.partialorder %v4149, 8.507059e+37
        %v4151 = vand.u32 %v4139, 2147483648
        %v4152 = vor.u32 1.1754944e-38, %v4151
        %v4153 = vsel %vm4150, %v4152, %v4148
        %v4154 = vmul.f32 %v4129, %v4153
        %v4155 = vmin.f32 %v4154, 1.0
        %v4156 = vmax.f32 %v4155, -1.0
        %v4157 = vmul.f32 %v3725, %v3725
        %v4158 = vmin.f32 16.0, %v4157
        %v4159 = vmul.f32 %v4158, 2.1237322e-06
        %v4160 = vadd.f32 %v4159, 0.00028619796
        %v4161 = vmul.f32 %v4158, %v4160
        %v4162 = vadd.f32 %v4161, 0.0036580483
        %v4163 = vmul.f32 %v4158, %v4162
        %v4164 = vadd.f32 %v4163, 0.05243302
        %v4165 = vmul.f32 %v4158, %v4164
        %v4166 = vadd.f32 %v4165, 0.18741608
        %v4167 = vmul.f32 %v4158, %v4166
        %v4168 = vadd.f32 %v4167, 1.1283791
        %v4169 = vmul.f32 %v3725, %v4168
        %v4170 = vmul.f32 %v4158, 3.8918573e-05
        %v4171 = vadd.f32 %v4170, 0.001143296
        %v4172 = vmul.f32 %v4158, %v4171
        %v4173 = vadd.f32 %v4172, 0.014752088
        %v4174 = vmul.f32 %v4158, %v4173
        %v4175 = vadd.f32 %v4174, 0.112945676
        %v4176 = vmul.f32 %v4158, %v4175
        %v4177 = vadd.f32 %v4176, 0.4994258
        %v4178 = vmul.f32 %v4158, %v4177
        %v4179 = vadd.f32 %v4178, 1.0
        %v4180 = vrcp.pop %v4179
        %v4181 = vmul.f32 %v4179, %v4180
        %v4182 = vsub.f32 1.0, %v4181
        %v4183 = vmul.f32 %v4180, %v4182
        %v4184 = vadd.f32 %v4180, %v4183
        %vm4185 = vweird.f32 %v4179
        %vm4186 = vweird.f32 %v4180
        %vm4187 = vmor %vm4185, %vm4186
        %v4188 = vsel %vm4187, %v4180, %v4184
        %v4189 = vand.u32 2147483647, %v4179
        %vm4190 = vcmp.eq.f32.partialorder %v4189, 8.507059e+37
        %v4191 = vand.u32 %v4179, 2147483648
        %v4192 = vor.u32 1.1754944e-38, %v4191
        %v4193 = vsel %vm4190, %v4192, %v4188
        %v4194 = vmul.f32 %v4169, %v4193
        %v4195 = vmin.f32 %v4194, 1.0
        %v4196 = vmax.f32 %v4195, -1.0
        %v4197 = vmul.f32 %v3726, %v3726
        %v4198 = vmin.f32 16.0, %v4197
        %v4199 = vmul.f32 %v4198, 2.1237322e-06
        %v4200 = vadd.f32 %v4199, 0.00028619796
        %v4201 = vmul.f32 %v4198, %v4200
        %v4202 = vadd.f32 %v4201, 0.0036580483
        %v4203 = vmul.f32 %v4198, %v4202
        %v4204 = vadd.f32 %v4203, 0.05243302
        %v4205 = vmul.f32 %v4198, %v4204
        %v4206 = vadd.f32 %v4205, 0.18741608
        %v4207 = vmul.f32 %v4198, %v4206
        %v4208 = vadd.f32 %v4207, 1.1283791
        %v4209 = vmul.f32 %v3726, %v4208
        %v4210 = vmul.f32 %v4198, 3.8918573e-05
        %v4211 = vadd.f32 %v4210, 0.001143296
        %v4212 = vmul.f32 %v4198, %v4211
        %v4213 = vadd.f32 %v4212, 0.014752088
        %v4214 = vmul.f32 %v4198, %v4213
        %v4215 = vadd.f32 %v4214, 0.112945676
        %v4216 = vmul.f32 %v4198, %v4215
        %v4217 = vadd.f32 %v4216, 0.4994258
        %v4218 = vmul.f32 %v4198, %v4217
        %v4219 = vadd.f32 %v4218, 1.0
        %v4220 = vrcp.pop %v4219
        %v4221 = vmul.f32 %v4219, %v4220
        %v4222 = vsub.f32 1.0, %v4221
        %v4223 = vmul.f32 %v4220, %v4222
        %v4224 = vadd.f32 %v4220, %v4223
        %vm4225 = vweird.f32 %v4219
        %vm4226 = vweird.f32 %v4220
        %vm4227 = vmor %vm4225, %vm4226
        %v4228 = vsel %vm4227, %v4220, %v4224
        %v4229 = vand.u32 2147483647, %v4219
        %vm4230 = vcmp.eq.f32.partialorder %v4229, 8.507059e+37
        %v4231 = vand.u32 %v4219, 2147483648
        %v4232 = vor.u32 1.1754944e-38, %v4231
        %v4233 = vsel %vm4230, %v4232, %v4228
        %v4234 = vmul.f32 %v4209, %v4233
        %v4235 = vmin.f32 %v4234, 1.0
        %v4236 = vmax.f32 %v4235, -1.0
        %v4237 = vmul.f32 %v3727, %v3727
        %v4238 = vmin.f32 16.0, %v4237
        %v4239 = vmul.f32 %v4238, 2.1237322e-06
        %v4240 = vadd.f32 %v4239, 0.00028619796
        %v4241 = vmul.f32 %v4238, %v4240
        %v4242 = vadd.f32 %v4241, 0.0036580483
        %v4243 = vmul.f32 %v4238, %v4242
        %v4244 = vadd.f32 %v4243, 0.05243302
        %v4245 = vmul.f32 %v4238, %v4244
        %v4246 = vadd.f32 %v4245, 0.18741608
        %v4247 = vmul.f32 %v4238, %v4246
        %v4248 = vadd.f32 %v4247, 1.1283791
        %v4249 = vmul.f32 %v3727, %v4248
        %v4250 = vmul.f32 %v4238, 3.8918573e-05
        %v4251 = vadd.f32 %v4250, 0.001143296
        %v4252 = vmul.f32 %v4238, %v4251
        %v4253 = vadd.f32 %v4252, 0.014752088
        %v4254 = vmul.f32 %v4238, %v4253
        %v4255 = vadd.f32 %v4254, 0.112945676
        %v4256 = vmul.f32 %v4238, %v4255
        %v4257 = vadd.f32 %v4256, 0.4994258
        %v4258 = vmul.f32 %v4238, %v4257
        %v4259 = vadd.f32 %v4258, 1.0
        %v4260 = vrcp.pop %v4259
        %v4261 = vmul.f32 %v4259, %v4260
        %v4262 = vsub.f32 1.0, %v4261
        %v4263 = vmul.f32 %v4260, %v4262
        %v4264 = vadd.f32 %v4260, %v4263
        %vm4265 = vweird.f32 %v4259
        %vm4266 = vweird.f32 %v4260
        %vm4267 = vmor %vm4265, %vm4266
        %v4268 = vsel %vm4267, %v4260, %v4264
        %v4269 = vand.u32 2147483647, %v4259
        %vm4270 = vcmp.eq.f32.partialorder %v4269, 8.507059e+37
        %v4271 = vand.u32 %v4259, 2147483648
        %v4272 = vor.u32 1.1754944e-38, %v4271
        %v4273 = vsel %vm4270, %v4272, %v4268
        %v4274 = vmul.f32 %v4249, %v4273
        %v4275 = vmin.f32 %v4274, 1.0
        %v4276 = vmax.f32 %v4275, -1.0
        %v4277 = vmul.f32 %v3728, %v3728
        %v4278 = vmin.f32 16.0, %v4277
        %v4279 = vmul.f32 %v4278, 2.1237322e-06
        %v4280 = vadd.f32 %v4279, 0.00028619796
        %v4281 = vmul.f32 %v4278, %v4280
        %v4282 = vadd.f32 %v4281, 0.0036580483
        %v4283 = vmul.f32 %v4278, %v4282
        %v4284 = vadd.f32 %v4283, 0.05243302
        %v4285 = vmul.f32 %v4278, %v4284
        %v4286 = vadd.f32 %v4285, 0.18741608
        %v4287 = vmul.f32 %v4278, %v4286
        %v4288 = vadd.f32 %v4287, 1.1283791
        %v4289 = vmul.f32 %v3728, %v4288
        %v4290 = vmul.f32 %v4278, 3.8918573e-05
        %v4291 = vadd.f32 %v4290, 0.001143296
        %v4292 = vmul.f32 %v4278, %v4291
        %v4293 = vadd.f32 %v4292, 0.014752088
        %v4294 = vmul.f32 %v4278, %v4293
        %v4295 = vadd.f32 %v4294, 0.112945676
        %v4296 = vmul.f32 %v4278, %v4295
        %v4297 = vadd.f32 %v4296, 0.4994258
        %v4298 = vmul.f32 %v4278, %v4297
        %v4299 = vadd.f32 %v4298, 1.0
        %v4300 = vrcp.pop %v4299
        %v4301 = vmul.f32 %v4299, %v4300
        %v4302 = vsub.f32 1.0, %v4301
        %v4303 = vmul.f32 %v4300, %v4302
        %v4304 = vadd.f32 %v4300, %v4303
        %vm4305 = vweird.f32 %v4299
        %vm4306 = vweird.f32 %v4300
        %vm4307 = vmor %vm4305, %vm4306
        %v4308 = vsel %vm4307, %v4300, %v4304
        %v4309 = vand.u32 2147483647, %v4299
        %vm4310 = vcmp.eq.f32.partialorder %v4309, 8.507059e+37
        %v4311 = vand.u32 %v4299, 2147483648
        %v4312 = vor.u32 1.1754944e-38, %v4311
        %v4313 = vsel %vm4310, %v4312, %v4308
        %v4314 = vmul.f32 %v4289, %v4313
        %v4315 = vmin.f32 %v4314, 1.0
        %v4316 = vmax.f32 %v4315, -1.0
        %v4317 = vmul.f32 %v3729, %v3729
        %v4318 = vmin.f32 16.0, %v4317
        %v4319 = vmul.f32 %v4318, 2.1237322e-06
        %v4320 = vadd.f32 %v4319, 0.00028619796
        %v4321 = vmul.f32 %v4318, %v4320
        %v4322 = vadd.f32 %v4321, 0.0036580483
        %v4323 = vmul.f32 %v4318, %v4322
        %v4324 = vadd.f32 %v4323, 0.05243302
        %v4325 = vmul.f32 %v4318, %v4324
        %v4326 = vadd.f32 %v4325, 0.18741608
        %v4327 = vmul.f32 %v4318, %v4326
        %v4328 = vadd.f32 %v4327, 1.1283791
        %v4329 = vmul.f32 %v3729, %v4328
        %v4330 = vmul.f32 %v4318, 3.8918573e-05
        %v4331 = vadd.f32 %v4330, 0.001143296
        %v4332 = vmul.f32 %v4318, %v4331
        %v4333 = vadd.f32 %v4332, 0.014752088
        %v4334 = vmul.f32 %v4318, %v4333
        %v4335 = vadd.f32 %v4334, 0.112945676
        %v4336 = vmul.f32 %v4318, %v4335
        %v4337 = vadd.f32 %v4336, 0.4994258
        %v4338 = vmul.f32 %v4318, %v4337
        %v4339 = vadd.f32 %v4338, 1.0
        %v4340 = vrcp.pop %v4339
        %v4341 = vmul.f32 %v4339, %v4340
        %v4342 = vsub.f32 1.0, %v4341
        %v4343 = vmul.f32 %v4340, %v4342
        %v4344 = vadd.f32 %v4340, %v4343
        %vm4345 = vweird.f32 %v4339
        %vm4346 = vweird.f32 %v4340
        %vm4347 = vmor %vm4345, %vm4346
        %v4348 = vsel %vm4347, %v4340, %v4344
        %v4349 = vand.u32 2147483647, %v4339
        %vm4350 = vcmp.eq.f32.partialorder %v4349, 8.507059e+37
        %v4351 = vand.u32 %v4339, 2147483648
        %v4352 = vor.u32 1.1754944e-38, %v4351
        %v4353 = vsel %vm4350, %v4352, %v4348
        %v4354 = vmul.f32 %v4329, %v4353
        %v4355 = vmin.f32 %v4354, 1.0
        %v4356 = vmax.f32 %v4355, -1.0
        %v4357 = vmul.f32 %v3730, %v3730
        %v4358 = vmin.f32 16.0, %v4357
        %v4359 = vmul.f32 %v4358, 2.1237322e-06
        %v4360 = vadd.f32 %v4359, 0.00028619796
        %v4361 = vmul.f32 %v4358, %v4360
        %v4362 = vadd.f32 %v4361, 0.0036580483
        %v4363 = vmul.f32 %v4358, %v4362
        %v4364 = vadd.f32 %v4363, 0.05243302
        %v4365 = vmul.f32 %v4358, %v4364
        %v4366 = vadd.f32 %v4365, 0.18741608
        %v4367 = vmul.f32 %v4358, %v4366
        %v4368 = vadd.f32 %v4367, 1.1283791
        %v4369 = vmul.f32 %v3730, %v4368
        %v4370 = vmul.f32 %v4358, 3.8918573e-05
        %v4371 = vadd.f32 %v4370, 0.001143296
        %v4372 = vmul.f32 %v4358, %v4371
        %v4373 = vadd.f32 %v4372, 0.014752088
        %v4374 = vmul.f32 %v4358, %v4373
        %v4375 = vadd.f32 %v4374, 0.112945676
        %v4376 = vmul.f32 %v4358, %v4375
        %v4377 = vadd.f32 %v4376, 0.4994258
        %v4378 = vmul.f32 %v4358, %v4377
        %v4379 = vadd.f32 %v4378, 1.0
        %v4380 = vrcp.pop %v4379
        %v4381 = vmul.f32 %v4379, %v4380
        %v4382 = vsub.f32 1.0, %v4381
        %v4383 = vmul.f32 %v4380, %v4382
        %v4384 = vadd.f32 %v4380, %v4383
        %vm4385 = vweird.f32 %v4379
        %vm4386 = vweird.f32 %v4380
        %vm4387 = vmor %vm4385, %vm4386
        %v4388 = vsel %vm4387, %v4380, %v4384
        %v4389 = vand.u32 2147483647, %v4379
        %vm4390 = vcmp.eq.f32.partialorder %v4389, 8.507059e+37
        %v4391 = vand.u32 %v4379, 2147483648
        %v4392 = vor.u32 1.1754944e-38, %v4391
        %v4393 = vsel %vm4390, %v4392, %v4388
        %v4394 = vmul.f32 %v4369, %v4393
        %v4395 = vmin.f32 %v4394, 1.0
        %v4396 = vmax.f32 %v4395, -1.0
        %v4397 = vmul.f32 %v3731, %v3731
        %v4398 = vmin.f32 16.0, %v4397
        %v4399 = vmul.f32 %v4398, 2.1237322e-06
        %v4400 = vadd.f32 %v4399, 0.00028619796
        %v4401 = vmul.f32 %v4398, %v4400
        %v4402 = vadd.f32 %v4401, 0.0036580483
        %v4403 = vmul.f32 %v4398, %v4402
        %v4404 = vadd.f32 %v4403, 0.05243302
        %v4405 = vmul.f32 %v4398, %v4404
        %v4406 = vadd.f32 %v4405, 0.18741608
        %v4407 = vmul.f32 %v4398, %v4406
        %v4408 = vadd.f32 %v4407, 1.1283791
        %v4409 = vmul.f32 %v3731, %v4408
        %v4410 = vmul.f32 %v4398, 3.8918573e-05
        %v4411 = vadd.f32 %v4410, 0.001143296
        %v4412 = vmul.f32 %v4398, %v4411
        %v4413 = vadd.f32 %v4412, 0.014752088
        %v4414 = vmul.f32 %v4398, %v4413
        %v4415 = vadd.f32 %v4414, 0.112945676
        %v4416 = vmul.f32 %v4398, %v4415
        %v4417 = vadd.f32 %v4416, 0.4994258
        %v4418 = vmul.f32 %v4398, %v4417
        %v4419 = vadd.f32 %v4418, 1.0
        %v4420 = vrcp.pop %v4419
        %v4421 = vmul.f32 %v4419, %v4420
        %v4422 = vsub.f32 1.0, %v4421
        %v4423 = vmul.f32 %v4420, %v4422
        %v4424 = vadd.f32 %v4420, %v4423
        %vm4425 = vweird.f32 %v4419
        %vm4426 = vweird.f32 %v4420
        %vm4427 = vmor %vm4425, %vm4426
        %v4428 = vsel %vm4427, %v4420, %v4424
        %v4429 = vand.u32 2147483647, %v4419
        %vm4430 = vcmp.eq.f32.partialorder %v4429, 8.507059e+37
        %v4431 = vand.u32 %v4419, 2147483648
        %v4432 = vor.u32 1.1754944e-38, %v4431
        %v4433 = vsel %vm4430, %v4432, %v4428
        %v4434 = vmul.f32 %v4409, %v4433
        %v4435 = vmin.f32 %v4434, 1.0
        %v4436 = vmax.f32 %v4435, -1.0
        %v4437 = vmul.f32 %v3732, %v3732
        %v4438 = vmin.f32 16.0, %v4437
        %v4439 = vmul.f32 %v4438, 2.1237322e-06
        %v4440 = vadd.f32 %v4439, 0.00028619796
        %v4441 = vmul.f32 %v4438, %v4440
        %v4442 = vadd.f32 %v4441, 0.0036580483
        %v4443 = vmul.f32 %v4438, %v4442
        %v4444 = vadd.f32 %v4443, 0.05243302
        %v4445 = vmul.f32 %v4438, %v4444
        %v4446 = vadd.f32 %v4445, 0.18741608
        %v4447 = vmul.f32 %v4438, %v4446
        %v4448 = vadd.f32 %v4447, 1.1283791
        %v4449 = vmul.f32 %v3732, %v4448
        %v4450 = vmul.f32 %v4438, 3.8918573e-05
        %v4451 = vadd.f32 %v4450, 0.001143296
        %v4452 = vmul.f32 %v4438, %v4451
        %v4453 = vadd.f32 %v4452, 0.014752088
        %v4454 = vmul.f32 %v4438, %v4453
        %v4455 = vadd.f32 %v4454, 0.112945676
        %v4456 = vmul.f32 %v4438, %v4455
        %v4457 = vadd.f32 %v4456, 0.4994258
        %v4458 = vmul.f32 %v4438, %v4457
        %v4459 = vadd.f32 %v4458, 1.0
        %v4460 = vrcp.pop %v4459
        %v4461 = vmul.f32 %v4459, %v4460
        %v4462 = vsub.f32 1.0, %v4461
        %v4463 = vmul.f32 %v4460, %v4462
        %v4464 = vadd.f32 %v4460, %v4463
        %vm4465 = vweird.f32 %v4459
        %vm4466 = vweird.f32 %v4460
        %vm4467 = vmor %vm4465, %vm4466
        %v4468 = vsel %vm4467, %v4460, %v4464
        %v4469 = vand.u32 2147483647, %v4459
        %vm4470 = vcmp.eq.f32.partialorder %v4469, 8.507059e+37
        %v4471 = vand.u32 %v4459, 2147483648
        %v4472 = vor.u32 1.1754944e-38, %v4471
        %v4473 = vsel %vm4470, %v4472, %v4468
        %v4474 = vmul.f32 %v4449, %v4473
        %v4475 = vmin.f32 %v4474, 1.0
        %v4476 = vmax.f32 %v4475, -1.0
        %v4477 = vmul.f32 %v3733, %v3733
        %v4478 = vmin.f32 16.0, %v4477
        %v4479 = vmul.f32 %v4478, 2.1237322e-06
        %v4480 = vadd.f32 %v4479, 0.00028619796
        %v4481 = vmul.f32 %v4478, %v4480
        %v4482 = vadd.f32 %v4481, 0.0036580483
        %v4483 = vmul.f32 %v4478, %v4482
        %v4484 = vadd.f32 %v4483, 0.05243302
        %v4485 = vmul.f32 %v4478, %v4484
        %v4486 = vadd.f32 %v4485, 0.18741608
        %v4487 = vmul.f32 %v4478, %v4486
        %v4488 = vadd.f32 %v4487, 1.1283791
        %v4489 = vmul.f32 %v3733, %v4488
        %v4490 = vmul.f32 %v4478, 3.8918573e-05
        %v4491 = vadd.f32 %v4490, 0.001143296
        %v4492 = vmul.f32 %v4478, %v4491
        %v4493 = vadd.f32 %v4492, 0.014752088
        %v4494 = vmul.f32 %v4478, %v4493
        %v4495 = vadd.f32 %v4494, 0.112945676
        %v4496 = vmul.f32 %v4478, %v4495
        %v4497 = vadd.f32 %v4496, 0.4994258
        %v4498 = vmul.f32 %v4478, %v4497
        %v4499 = vadd.f32 %v4498, 1.0
        %v4500 = vrcp.pop %v4499
        %v4501 = vmul.f32 %v4499, %v4500
        %v4502 = vsub.f32 1.0, %v4501
        %v4503 = vmul.f32 %v4500, %v4502
        %v4504 = vadd.f32 %v4500, %v4503
        %vm4505 = vweird.f32 %v4499
        %vm4506 = vweird.f32 %v4500
        %vm4507 = vmor %vm4505, %vm4506
        %v4508 = vsel %vm4507, %v4500, %v4504
        %v4509 = vand.u32 2147483647, %v4499
        %vm4510 = vcmp.eq.f32.partialorder %v4509, 8.507059e+37
        %v4511 = vand.u32 %v4499, 2147483648
        %v4512 = vor.u32 1.1754944e-38, %v4511
        %v4513 = vsel %vm4510, %v4512, %v4508
        %v4514 = vmul.f32 %v4489, %v4513
        %v4515 = vmin.f32 %v4514, 1.0
        %v4516 = vmax.f32 %v4515, -1.0
        %v4517 = vmul.f32 %v3734, %v3734
        %v4518 = vmin.f32 16.0, %v4517
        %v4519 = vmul.f32 %v4518, 2.1237322e-06
        %v4520 = vadd.f32 %v4519, 0.00028619796
        %v4521 = vmul.f32 %v4518, %v4520
        %v4522 = vadd.f32 %v4521, 0.0036580483
        %v4523 = vmul.f32 %v4518, %v4522
        %v4524 = vadd.f32 %v4523, 0.05243302
        %v4525 = vmul.f32 %v4518, %v4524
        %v4526 = vadd.f32 %v4525, 0.18741608
        %v4527 = vmul.f32 %v4518, %v4526
        %v4528 = vadd.f32 %v4527, 1.1283791
        %v4529 = vmul.f32 %v3734, %v4528
        %v4530 = vmul.f32 %v4518, 3.8918573e-05
        %v4531 = vadd.f32 %v4530, 0.001143296
        %v4532 = vmul.f32 %v4518, %v4531
        %v4533 = vadd.f32 %v4532, 0.014752088
        %v4534 = vmul.f32 %v4518, %v4533
        %v4535 = vadd.f32 %v4534, 0.112945676
        %v4536 = vmul.f32 %v4518, %v4535
        %v4537 = vadd.f32 %v4536, 0.4994258
        %v4538 = vmul.f32 %v4518, %v4537
        %v4539 = vadd.f32 %v4538, 1.0
        %v4540 = vrcp.pop %v4539
        %v4541 = vmul.f32 %v4539, %v4540
        %v4542 = vsub.f32 1.0, %v4541
        %v4543 = vmul.f32 %v4540, %v4542
        %v4544 = vadd.f32 %v4540, %v4543
        %vm4545 = vweird.f32 %v4539
        %vm4546 = vweird.f32 %v4540
        %vm4547 = vmor %vm4545, %vm4546
        %v4548 = vsel %vm4547, %v4540, %v4544
        %v4549 = vand.u32 2147483647, %v4539
        %vm4550 = vcmp.eq.f32.partialorder %v4549, 8.507059e+37
        %v4551 = vand.u32 %v4539, 2147483648
        %v4552 = vor.u32 1.1754944e-38, %v4551
        %v4553 = vsel %vm4550, %v4552, %v4548
        %v4554 = vmul.f32 %v4529, %v4553
        %v4555 = vmin.f32 %v4554, 1.0
        %v4556 = vmax.f32 %v4555, -1.0
        %v4557 = vmul.f32 %v3735, %v3735
        %v4558 = vmin.f32 16.0, %v4557
        %v4559 = vmul.f32 %v4558, 2.1237322e-06
        %v4560 = vadd.f32 %v4559, 0.00028619796
        %v4561 = vmul.f32 %v4558, %v4560
        %v4562 = vadd.f32 %v4561, 0.0036580483
        %v4563 = vmul.f32 %v4558, %v4562
        %v4564 = vadd.f32 %v4563, 0.05243302
        %v4565 = vmul.f32 %v4558, %v4564
        %v4566 = vadd.f32 %v4565, 0.18741608
        %v4567 = vmul.f32 %v4558, %v4566
        %v4568 = vadd.f32 %v4567, 1.1283791
        %v4569 = vmul.f32 %v3735, %v4568
        %v4570 = vmul.f32 %v4558, 3.8918573e-05
        %v4571 = vadd.f32 %v4570, 0.001143296
        %v4572 = vmul.f32 %v4558, %v4571
        %v4573 = vadd.f32 %v4572, 0.014752088
        %v4574 = vmul.f32 %v4558, %v4573
        %v4575 = vadd.f32 %v4574, 0.112945676
        %v4576 = vmul.f32 %v4558, %v4575
        %v4577 = vadd.f32 %v4576, 0.4994258
        %v4578 = vmul.f32 %v4558, %v4577
        %v4579 = vadd.f32 %v4578, 1.0
        %v4580 = vrcp.pop %v4579
        %v4581 = vmul.f32 %v4579, %v4580
        %v4582 = vsub.f32 1.0, %v4581
        %v4583 = vmul.f32 %v4580, %v4582
        %v4584 = vadd.f32 %v4580, %v4583
        %vm4585 = vweird.f32 %v4579
        %vm4586 = vweird.f32 %v4580
        %vm4587 = vmor %vm4585, %vm4586
        %v4588 = vsel %vm4587, %v4580, %v4584
        %v4589 = vand.u32 2147483647, %v4579
        %vm4590 = vcmp.eq.f32.partialorder %v4589, 8.507059e+37
        %v4591 = vand.u32 %v4579, 2147483648
        %v4592 = vor.u32 1.1754944e-38, %v4591
        %v4593 = vsel %vm4590, %v4592, %v4588
        %v4594 = vmul.f32 %v4569, %v4593
        %v4595 = vmin.f32 %v4594, 1.0
        %v4596 = vmax.f32 %v4595, -1.0
        %v4597 = vmul.f32 %v3736, %v3736
        %v4598 = vmin.f32 16.0, %v4597
        %v4599 = vmul.f32 %v4598, 2.1237322e-06
        %v4600 = vadd.f32 %v4599, 0.00028619796
        %v4601 = vmul.f32 %v4598, %v4600
        %v4602 = vadd.f32 %v4601, 0.0036580483
        %v4603 = vmul.f32 %v4598, %v4602
        %v4604 = vadd.f32 %v4603, 0.05243302
        %v4605 = vmul.f32 %v4598, %v4604
        %v4606 = vadd.f32 %v4605, 0.18741608
        %v4607 = vmul.f32 %v4598, %v4606
        %v4608 = vadd.f32 %v4607, 1.1283791
        %v4609 = vmul.f32 %v3736, %v4608
        %v4610 = vmul.f32 %v4598, 3.8918573e-05
        %v4611 = vadd.f32 %v4610, 0.001143296
        %v4612 = vmul.f32 %v4598, %v4611
        %v4613 = vadd.f32 %v4612, 0.014752088
        %v4614 = vmul.f32 %v4598, %v4613
        %v4615 = vadd.f32 %v4614, 0.112945676
        %v4616 = vmul.f32 %v4598, %v4615
        %v4617 = vadd.f32 %v4616, 0.4994258
        %v4618 = vmul.f32 %v4598, %v4617
        %v4619 = vadd.f32 %v4618, 1.0
        %v4620 = vrcp.pop %v4619
        %v4621 = vmul.f32 %v4619, %v4620
        %v4622 = vsub.f32 1.0, %v4621
        %v4623 = vmul.f32 %v4620, %v4622
        %v4624 = vadd.f32 %v4620, %v4623
        %vm4625 = vweird.f32 %v4619
        %vm4626 = vweird.f32 %v4620
        %vm4627 = vmor %vm4625, %vm4626
        %v4628 = vsel %vm4627, %v4620, %v4624
        %v4629 = vand.u32 2147483647, %v4619
        %vm4630 = vcmp.eq.f32.partialorder %v4629, 8.507059e+37
        %v4631 = vand.u32 %v4619, 2147483648
        %v4632 = vor.u32 1.1754944e-38, %v4631
        %v4633 = vsel %vm4630, %v4632, %v4628
        %v4634 = vmul.f32 %v4609, %v4633
        %v4635 = vmin.f32 %v4634, 1.0
        %v4636 = vmax.f32 %v4635, -1.0
        %v4637 = vmul.f32 %v3737, %v3737
        %v4638 = vmin.f32 16.0, %v4637
        %v4639 = vmul.f32 %v4638, 2.1237322e-06
        %v4640 = vadd.f32 %v4639, 0.00028619796
        %v4641 = vmul.f32 %v4638, %v4640
        %v4642 = vadd.f32 %v4641, 0.0036580483
        %v4643 = vmul.f32 %v4638, %v4642
        %v4644 = vadd.f32 %v4643, 0.05243302
        %v4645 = vmul.f32 %v4638, %v4644
        %v4646 = vadd.f32 %v4645, 0.18741608
        %v4647 = vmul.f32 %v4638, %v4646
        %v4648 = vadd.f32 %v4647, 1.1283791
        %v4649 = vmul.f32 %v3737, %v4648
        %v4650 = vmul.f32 %v4638, 3.8918573e-05
        %v4651 = vadd.f32 %v4650, 0.001143296
        %v4652 = vmul.f32 %v4638, %v4651
        %v4653 = vadd.f32 %v4652, 0.014752088
        %v4654 = vmul.f32 %v4638, %v4653
        %v4655 = vadd.f32 %v4654, 0.112945676
        %v4656 = vmul.f32 %v4638, %v4655
        %v4657 = vadd.f32 %v4656, 0.4994258
        %v4658 = vmul.f32 %v4638, %v4657
        %v4659 = vadd.f32 %v4658, 1.0
        %v4660 = vrcp.pop %v4659
        %v4661 = vmul.f32 %v4659, %v4660
        %v4662 = vsub.f32 1.0, %v4661
        %v4663 = vmul.f32 %v4660, %v4662
        %v4664 = vadd.f32 %v4660, %v4663
        %vm4665 = vweird.f32 %v4659
        %vm4666 = vweird.f32 %v4660
        %vm4667 = vmor %vm4665, %vm4666
        %v4668 = vsel %vm4667, %v4660, %v4664
        %v4669 = vand.u32 2147483647, %v4659
        %vm4670 = vcmp.eq.f32.partialorder %v4669, 8.507059e+37
        %v4671 = vand.u32 %v4659, 2147483648
        %v4672 = vor.u32 1.1754944e-38, %v4671
        %v4673 = vsel %vm4670, %v4672, %v4668
        %v4674 = vmul.f32 %v4649, %v4673
        %v4675 = vmin.f32 %v4674, 1.0
        %v4676 = vmax.f32 %v4675, -1.0
        %v4677 = vmul.f32 %v3738, %v3738
        %v4678 = vmin.f32 16.0, %v4677
        %v4679 = vmul.f32 %v4678, 2.1237322e-06
        %v4680 = vadd.f32 %v4679, 0.00028619796
        %v4681 = vmul.f32 %v4678, %v4680
        %v4682 = vadd.f32 %v4681, 0.0036580483
        %v4683 = vmul.f32 %v4678, %v4682
        %v4684 = vadd.f32 %v4683, 0.05243302
        %v4685 = vmul.f32 %v4678, %v4684
        %v4686 = vadd.f32 %v4685, 0.18741608
        %v4687 = vmul.f32 %v4678, %v4686
        %v4688 = vadd.f32 %v4687, 1.1283791
        %v4689 = vmul.f32 %v3738, %v4688
        %v4690 = vmul.f32 %v4678, 3.8918573e-05
        %v4691 = vadd.f32 %v4690, 0.001143296
        %v4692 = vmul.f32 %v4678, %v4691
        %v4693 = vadd.f32 %v4692, 0.014752088
        %v4694 = vmul.f32 %v4678, %v4693
        %v4695 = vadd.f32 %v4694, 0.112945676
        %v4696 = vmul.f32 %v4678, %v4695
        %v4697 = vadd.f32 %v4696, 0.4994258
        %v4698 = vmul.f32 %v4678, %v4697
        %v4699 = vadd.f32 %v4698, 1.0
        %v4700 = vrcp.pop %v4699
        %v4701 = vmul.f32 %v4699, %v4700
        %v4702 = vsub.f32 1.0, %v4701
        %v4703 = vmul.f32 %v4700, %v4702
        %v4704 = vadd.f32 %v4700, %v4703
        %vm4705 = vweird.f32 %v4699
        %vm4706 = vweird.f32 %v4700
        %vm4707 = vmor %vm4705, %vm4706
        %v4708 = vsel %vm4707, %v4700, %v4704
        %v4709 = vand.u32 2147483647, %v4699
        %vm4710 = vcmp.eq.f32.partialorder %v4709, 8.507059e+37
        %v4711 = vand.u32 %v4699, 2147483648
        %v4712 = vor.u32 1.1754944e-38, %v4711
        %v4713 = vsel %vm4710, %v4712, %v4708
        %v4714 = vmul.f32 %v4689, %v4713
        %v4715 = vmin.f32 %v4714, 1.0
        %v4716 = vmax.f32 %v4715, -1.0
        %v4717 = vmul.f32 %v3739, %v3739
        %v4718 = vmin.f32 16.0, %v4717
        %v4719 = vmul.f32 %v4718, 2.1237322e-06
        %v4720 = vadd.f32 %v4719, 0.00028619796
        %v4721 = vmul.f32 %v4718, %v4720
        %v4722 = vadd.f32 %v4721, 0.0036580483
        %v4723 = vmul.f32 %v4718, %v4722
        %v4724 = vadd.f32 %v4723, 0.05243302
        %v4725 = vmul.f32 %v4718, %v4724
        %v4726 = vadd.f32 %v4725, 0.18741608
        %v4727 = vmul.f32 %v4718, %v4726
        %v4728 = vadd.f32 %v4727, 1.1283791
        %v4729 = vmul.f32 %v3739, %v4728
        %v4730 = vmul.f32 %v4718, 3.8918573e-05
        %v4731 = vadd.f32 %v4730, 0.001143296
        %v4732 = vmul.f32 %v4718, %v4731
        %v4733 = vadd.f32 %v4732, 0.014752088
        %v4734 = vmul.f32 %v4718, %v4733
        %v4735 = vadd.f32 %v4734, 0.112945676
        %v4736 = vmul.f32 %v4718, %v4735
        %v4737 = vadd.f32 %v4736, 0.4994258
        %v4738 = vmul.f32 %v4718, %v4737
        %v4739 = vadd.f32 %v4738, 1.0
        %v4740 = vrcp.pop %v4739
        %v4741 = vmul.f32 %v4739, %v4740
        %v4742 = vsub.f32 1.0, %v4741
        %v4743 = vmul.f32 %v4740, %v4742
        %v4744 = vadd.f32 %v4740, %v4743
        %vm4745 = vweird.f32 %v4739
        %vm4746 = vweird.f32 %v4740
        %vm4747 = vmor %vm4745, %vm4746
        %v4748 = vsel %vm4747, %v4740, %v4744
        %v4749 = vand.u32 2147483647, %v4739
        %vm4750 = vcmp.eq.f32.partialorder %v4749, 8.507059e+37
        %v4751 = vand.u32 %v4739, 2147483648
        %v4752 = vor.u32 1.1754944e-38, %v4751
        %v4753 = vsel %vm4750, %v4752, %v4748
        %v4754 = vmul.f32 %v4729, %v4753
        %v4755 = vmin.f32 %v4754, 1.0
        %v4756 = vmax.f32 %v4755, -1.0
        %v4757 = vmul.f32 %v3740, %v3740
        %v4758 = vmin.f32 16.0, %v4757
        %v4759 = vmul.f32 %v4758, 2.1237322e-06
        %v4760 = vadd.f32 %v4759, 0.00028619796
        %v4761 = vmul.f32 %v4758, %v4760
        %v4762 = vadd.f32 %v4761, 0.0036580483
        %v4763 = vmul.f32 %v4758, %v4762
        %v4764 = vadd.f32 %v4763, 0.05243302
        %v4765 = vmul.f32 %v4758, %v4764
        %v4766 = vadd.f32 %v4765, 0.18741608
        %v4767 = vmul.f32 %v4758, %v4766
        %v4768 = vadd.f32 %v4767, 1.1283791
        %v4769 = vmul.f32 %v3740, %v4768
        %v4770 = vmul.f32 %v4758, 3.8918573e-05
        %v4771 = vadd.f32 %v4770, 0.001143296
        %v4772 = vmul.f32 %v4758, %v4771
        %v4773 = vadd.f32 %v4772, 0.014752088
        %v4774 = vmul.f32 %v4758, %v4773
        %v4775 = vadd.f32 %v4774, 0.112945676
        %v4776 = vmul.f32 %v4758, %v4775
        %v4777 = vadd.f32 %v4776, 0.4994258
        %v4778 = vmul.f32 %v4758, %v4777
        %v4779 = vadd.f32 %v4778, 1.0
        %v4780 = vrcp.pop %v4779
        %v4781 = vmul.f32 %v4779, %v4780
        %v4782 = vsub.f32 1.0, %v4781
        %v4783 = vmul.f32 %v4780, %v4782
        %v4784 = vadd.f32 %v4780, %v4783
        %vm4785 = vweird.f32 %v4779
        %vm4786 = vweird.f32 %v4780
        %vm4787 = vmor %vm4785, %vm4786
        %v4788 = vsel %vm4787, %v4780, %v4784
        %v4789 = vand.u32 2147483647, %v4779
        %vm4790 = vcmp.eq.f32.partialorder %v4789, 8.507059e+37
        %v4791 = vand.u32 %v4779, 2147483648
        %v4792 = vor.u32 1.1754944e-38, %v4791
        %v4793 = vsel %vm4790, %v4792, %v4788
        %v4794 = vmul.f32 %v4769, %v4793
        %v4795 = vmin.f32 %v4794, 1.0
        %v4796 = vmax.f32 %v4795, -1.0
        %v4797 = vmul.f32 %v3741, %v3741
        %v4798 = vmin.f32 16.0, %v4797
        %v4799 = vmul.f32 %v4798, 2.1237322e-06
        %v4800 = vadd.f32 %v4799, 0.00028619796
        %v4801 = vmul.f32 %v4798, %v4800
        %v4802 = vadd.f32 %v4801, 0.0036580483
        %v4803 = vmul.f32 %v4798, %v4802
        %v4804 = vadd.f32 %v4803, 0.05243302
        %v4805 = vmul.f32 %v4798, %v4804
        %v4806 = vadd.f32 %v4805, 0.18741608
        %v4807 = vmul.f32 %v4798, %v4806
        %v4808 = vadd.f32 %v4807, 1.1283791
        %v4809 = vmul.f32 %v3741, %v4808
        %v4810 = vmul.f32 %v4798, 3.8918573e-05
        %v4811 = vadd.f32 %v4810, 0.001143296
        %v4812 = vmul.f32 %v4798, %v4811
        %v4813 = vadd.f32 %v4812, 0.014752088
        %v4814 = vmul.f32 %v4798, %v4813
        %v4815 = vadd.f32 %v4814, 0.112945676
        %v4816 = vmul.f32 %v4798, %v4815
        %v4817 = vadd.f32 %v4816, 0.4994258
        %v4818 = vmul.f32 %v4798, %v4817
        %v4819 = vadd.f32 %v4818, 1.0
        %v4820 = vrcp.pop %v4819
        %v4821 = vmul.f32 %v4819, %v4820
        %v4822 = vsub.f32 1.0, %v4821
        %v4823 = vmul.f32 %v4820, %v4822
        %v4824 = vadd.f32 %v4820, %v4823
        %vm4825 = vweird.f32 %v4819
        %vm4826 = vweird.f32 %v4820
        %vm4827 = vmor %vm4825, %vm4826
        %v4828 = vsel %vm4827, %v4820, %v4824
        %v4829 = vand.u32 2147483647, %v4819
        %vm4830 = vcmp.eq.f32.partialorder %v4829, 8.507059e+37
        %v4831 = vand.u32 %v4819, 2147483648
        %v4832 = vor.u32 1.1754944e-38, %v4831
        %v4833 = vsel %vm4830, %v4832, %v4828
        %v4834 = vmul.f32 %v4809, %v4833
        %v4835 = vmin.f32 %v4834, 1.0
        %v4836 = vmax.f32 %v4835, -1.0
        %v4837 = vmul.f32 %v3742, %v3742
        %v4838 = vmin.f32 16.0, %v4837
        %v4839 = vmul.f32 %v4838, 2.1237322e-06
        %v4840 = vadd.f32 %v4839, 0.00028619796
        %v4841 = vmul.f32 %v4838, %v4840
        %v4842 = vadd.f32 %v4841, 0.0036580483
        %v4843 = vmul.f32 %v4838, %v4842
        %v4844 = vadd.f32 %v4843, 0.05243302
        %v4845 = vmul.f32 %v4838, %v4844
        %v4846 = vadd.f32 %v4845, 0.18741608
        %v4847 = vmul.f32 %v4838, %v4846
        %v4848 = vadd.f32 %v4847, 1.1283791
        %v4849 = vmul.f32 %v3742, %v4848
        %v4850 = vmul.f32 %v4838, 3.8918573e-05
        %v4851 = vadd.f32 %v4850, 0.001143296
        %v4852 = vmul.f32 %v4838, %v4851
        %v4853 = vadd.f32 %v4852, 0.014752088
        %v4854 = vmul.f32 %v4838, %v4853
        %v4855 = vadd.f32 %v4854, 0.112945676
        %v4856 = vmul.f32 %v4838, %v4855
        %v4857 = vadd.f32 %v4856, 0.4994258
        %v4858 = vmul.f32 %v4838, %v4857
        %v4859 = vadd.f32 %v4858, 1.0
        %v4860 = vrcp.pop %v4859
        %v4861 = vmul.f32 %v4859, %v4860
        %v4862 = vsub.f32 1.0, %v4861
        %v4863 = vmul.f32 %v4860, %v4862
        %v4864 = vadd.f32 %v4860, %v4863
        %vm4865 = vweird.f32 %v4859
        %vm4866 = vweird.f32 %v4860
        %vm4867 = vmor %vm4865, %vm4866
        %v4868 = vsel %vm4867, %v4860, %v4864
        %v4869 = vand.u32 2147483647, %v4859
        %vm4870 = vcmp.eq.f32.partialorder %v4869, 8.507059e+37
        %v4871 = vand.u32 %v4859, 2147483648
        %v4872 = vor.u32 1.1754944e-38, %v4871
        %v4873 = vsel %vm4870, %v4872, %v4868
        %v4874 = vmul.f32 %v4849, %v4873
        %v4875 = vmin.f32 %v4874, 1.0
        %v4876 = vmax.f32 %v4875, -1.0
        %v4877 = vmul.f32 %v3743, %v3743
        %v4878 = vmin.f32 16.0, %v4877
        %v4879 = vmul.f32 %v4878, 2.1237322e-06
        %v4880 = vadd.f32 %v4879, 0.00028619796
        %v4881 = vmul.f32 %v4878, %v4880
        %v4882 = vadd.f32 %v4881, 0.0036580483
        %v4883 = vmul.f32 %v4878, %v4882
        %v4884 = vadd.f32 %v4883, 0.05243302
        %v4885 = vmul.f32 %v4878, %v4884
        %v4886 = vadd.f32 %v4885, 0.18741608
        %v4887 = vmul.f32 %v4878, %v4886
        %v4888 = vadd.f32 %v4887, 1.1283791
        %v4889 = vmul.f32 %v3743, %v4888
        %v4890 = vmul.f32 %v4878, 3.8918573e-05
        %v4891 = vadd.f32 %v4890, 0.001143296
        %v4892 = vmul.f32 %v4878, %v4891
        %v4893 = vadd.f32 %v4892, 0.014752088
        %v4894 = vmul.f32 %v4878, %v4893
        %v4895 = vadd.f32 %v4894, 0.112945676
        %v4896 = vmul.f32 %v4878, %v4895
        %v4897 = vadd.f32 %v4896, 0.4994258
        %v4898 = vmul.f32 %v4878, %v4897
        %v4899 = vadd.f32 %v4898, 1.0
        %v4900 = vrcp.pop %v4899
        %v4901 = vmul.f32 %v4899, %v4900
        %v4902 = vsub.f32 1.0, %v4901
        %v4903 = vmul.f32 %v4900, %v4902
        %v4904 = vadd.f32 %v4900, %v4903
        %vm4905 = vweird.f32 %v4899
        %vm4906 = vweird.f32 %v4900
        %vm4907 = vmor %vm4905, %vm4906
        %v4908 = vsel %vm4907, %v4900, %v4904
        %v4909 = vand.u32 2147483647, %v4899
        %vm4910 = vcmp.eq.f32.partialorder %v4909, 8.507059e+37
        %v4911 = vand.u32 %v4899, 2147483648
        %v4912 = vor.u32 1.1754944e-38, %v4911
        %v4913 = vsel %vm4910, %v4912, %v4908
        %v4914 = vmul.f32 %v4889, %v4913
        %v4915 = vmin.f32 %v4914, 1.0
        %v4916 = vmax.f32 %v4915, -1.0
        %v4917 = vmul.f32 %v3744, %v3744
        %v4918 = vmin.f32 16.0, %v4917
        %v4919 = vmul.f32 %v4918, 2.1237322e-06
        %v4920 = vadd.f32 %v4919, 0.00028619796
        %v4921 = vmul.f32 %v4918, %v4920
        %v4922 = vadd.f32 %v4921, 0.0036580483
        %v4923 = vmul.f32 %v4918, %v4922
        %v4924 = vadd.f32 %v4923, 0.05243302
        %v4925 = vmul.f32 %v4918, %v4924
        %v4926 = vadd.f32 %v4925, 0.18741608
        %v4927 = vmul.f32 %v4918, %v4926
        %v4928 = vadd.f32 %v4927, 1.1283791
        %v4929 = vmul.f32 %v3744, %v4928
        %v4930 = vmul.f32 %v4918, 3.8918573e-05
        %v4931 = vadd.f32 %v4930, 0.001143296
        %v4932 = vmul.f32 %v4918, %v4931
        %v4933 = vadd.f32 %v4932, 0.014752088
        %v4934 = vmul.f32 %v4918, %v4933
        %v4935 = vadd.f32 %v4934, 0.112945676
        %v4936 = vmul.f32 %v4918, %v4935
        %v4937 = vadd.f32 %v4936, 0.4994258
        %v4938 = vmul.f32 %v4918, %v4937
        %v4939 = vadd.f32 %v4938, 1.0
        %v4940 = vrcp.pop %v4939
        %v4941 = vmul.f32 %v4939, %v4940
        %v4942 = vsub.f32 1.0, %v4941
        %v4943 = vmul.f32 %v4940, %v4942
        %v4944 = vadd.f32 %v4940, %v4943
        %vm4945 = vweird.f32 %v4939
        %vm4946 = vweird.f32 %v4940
        %vm4947 = vmor %vm4945, %vm4946
        %v4948 = vsel %vm4947, %v4940, %v4944
        %v4949 = vand.u32 2147483647, %v4939
        %vm4950 = vcmp.eq.f32.partialorder %v4949, 8.507059e+37
        %v4951 = vand.u32 %v4939, 2147483648
        %v4952 = vor.u32 1.1754944e-38, %v4951
        %v4953 = vsel %vm4950, %v4952, %v4948
        %v4954 = vmul.f32 %v4929, %v4953
        %v4955 = vmin.f32 %v4954, 1.0
        %v4956 = vmax.f32 %v4955, -1.0
        %v4957 = vmul.f32 %v3745, %v3745
        %v4958 = vmin.f32 16.0, %v4957
        %v4959 = vmul.f32 %v4958, 2.1237322e-06
        %v4960 = vadd.f32 %v4959, 0.00028619796
        %v4961 = vmul.f32 %v4958, %v4960
        %v4962 = vadd.f32 %v4961, 0.0036580483
        %v4963 = vmul.f32 %v4958, %v4962
        %v4964 = vadd.f32 %v4963, 0.05243302
        %v4965 = vmul.f32 %v4958, %v4964
        %v4966 = vadd.f32 %v4965, 0.18741608
        %v4967 = vmul.f32 %v4958, %v4966
        %v4968 = vadd.f32 %v4967, 1.1283791
        %v4969 = vmul.f32 %v3745, %v4968
        %v4970 = vmul.f32 %v4958, 3.8918573e-05
        %v4971 = vadd.f32 %v4970, 0.001143296
        %v4972 = vmul.f32 %v4958, %v4971
        %v4973 = vadd.f32 %v4972, 0.014752088
        %v4974 = vmul.f32 %v4958, %v4973
        %v4975 = vadd.f32 %v4974, 0.112945676
        %v4976 = vmul.f32 %v4958, %v4975
        %v4977 = vadd.f32 %v4976, 0.4994258
        %v4978 = vmul.f32 %v4958, %v4977
        %v4979 = vadd.f32 %v4978, 1.0
        %v4980 = vrcp.pop %v4979
        %v4981 = vmul.f32 %v4979, %v4980
        %v4982 = vsub.f32 1.0, %v4981
        %v4983 = vmul.f32 %v4980, %v4982
        %v4984 = vadd.f32 %v4980, %v4983
        %vm4985 = vweird.f32 %v4979
        %vm4986 = vweird.f32 %v4980
        %vm4987 = vmor %vm4985, %vm4986
        %v4988 = vsel %vm4987, %v4980, %v4984
        %v4989 = vand.u32 2147483647, %v4979
        %vm4990 = vcmp.eq.f32.partialorder %v4989, 8.507059e+37
        %v4991 = vand.u32 %v4979, 2147483648
        %v4992 = vor.u32 1.1754944e-38, %v4991
        %v4993 = vsel %vm4990, %v4992, %v4988
        %v4994 = vmul.f32 %v4969, %v4993
        %v4995 = vmin.f32 %v4994, 1.0
        %v4996 = vmax.f32 %v4995, -1.0
        %v4997 = vmul.f32 %v3746, %v3746
        %v4998 = vmin.f32 16.0, %v4997
        %v4999 = vmul.f32 %v4998, 2.1237322e-06
        %v5000 = vadd.f32 %v4999, 0.00028619796
        %v5001 = vmul.f32 %v4998, %v5000
        %v5002 = vadd.f32 %v5001, 0.0036580483
        %v5003 = vmul.f32 %v4998, %v5002
        %v5004 = vadd.f32 %v5003, 0.05243302
        %v5005 = vmul.f32 %v4998, %v5004
        %v5006 = vadd.f32 %v5005, 0.18741608
        %v5007 = vmul.f32 %v4998, %v5006
        %v5008 = vadd.f32 %v5007, 1.1283791
        %v5009 = vmul.f32 %v3746, %v5008
        %v5010 = vmul.f32 %v4998, 3.8918573e-05
        %v5011 = vadd.f32 %v5010, 0.001143296
        %v5012 = vmul.f32 %v4998, %v5011
        %v5013 = vadd.f32 %v5012, 0.014752088
        %v5014 = vmul.f32 %v4998, %v5013
        %v5015 = vadd.f32 %v5014, 0.112945676
        %v5016 = vmul.f32 %v4998, %v5015
        %v5017 = vadd.f32 %v5016, 0.4994258
        %v5018 = vmul.f32 %v4998, %v5017
        %v5019 = vadd.f32 %v5018, 1.0
        %v5020 = vrcp.pop %v5019
        %v5021 = vmul.f32 %v5019, %v5020
        %v5022 = vsub.f32 1.0, %v5021
        %v5023 = vmul.f32 %v5020, %v5022
        %v5024 = vadd.f32 %v5020, %v5023
        %vm5025 = vweird.f32 %v5019
        %vm5026 = vweird.f32 %v5020
        %vm5027 = vmor %vm5025, %vm5026
        %v5028 = vsel %vm5027, %v5020, %v5024
        %v5029 = vand.u32 2147483647, %v5019
        %vm5030 = vcmp.eq.f32.partialorder %v5029, 8.507059e+37
        %v5031 = vand.u32 %v5019, 2147483648
        %v5032 = vor.u32 1.1754944e-38, %v5031
        %v5033 = vsel %vm5030, %v5032, %v5028
        %v5034 = vmul.f32 %v5009, %v5033
        %v5035 = vmin.f32 %v5034, 1.0
        %v5036 = vmax.f32 %v5035, -1.0
        %v5037 = vmul.f32 %v3747, %v3747
        %v5038 = vmin.f32 16.0, %v5037
        %v5039 = vmul.f32 %v5038, 2.1237322e-06
        %v5040 = vadd.f32 %v5039, 0.00028619796
        %v5041 = vmul.f32 %v5038, %v5040
        %v5042 = vadd.f32 %v5041, 0.0036580483
        %v5043 = vmul.f32 %v5038, %v5042
        %v5044 = vadd.f32 %v5043, 0.05243302
        %v5045 = vmul.f32 %v5038, %v5044
        %v5046 = vadd.f32 %v5045, 0.18741608
        %v5047 = vmul.f32 %v5038, %v5046
        %v5048 = vadd.f32 %v5047, 1.1283791
        %v5049 = vmul.f32 %v3747, %v5048
        %v5050 = vmul.f32 %v5038, 3.8918573e-05
        %v5051 = vadd.f32 %v5050, 0.001143296
        %v5052 = vmul.f32 %v5038, %v5051
        %v5053 = vadd.f32 %v5052, 0.014752088
        %v5054 = vmul.f32 %v5038, %v5053
        %v5055 = vadd.f32 %v5054, 0.112945676
        %v5056 = vmul.f32 %v5038, %v5055
        %v5057 = vadd.f32 %v5056, 0.4994258
        %v5058 = vmul.f32 %v5038, %v5057
        %v5059 = vadd.f32 %v5058, 1.0
        %v5060 = vrcp.pop %v5059
        %v5061 = vmul.f32 %v5059, %v5060
        %v5062 = vsub.f32 1.0, %v5061
        %v5063 = vmul.f32 %v5060, %v5062
        %v5064 = vadd.f32 %v5060, %v5063
        %vm5065 = vweird.f32 %v5059
        %vm5066 = vweird.f32 %v5060
        %vm5067 = vmor %vm5065, %vm5066
        %v5068 = vsel %vm5067, %v5060, %v5064
        %v5069 = vand.u32 2147483647, %v5059
        %vm5070 = vcmp.eq.f32.partialorder %v5069, 8.507059e+37
        %v5071 = vand.u32 %v5059, 2147483648
        %v5072 = vor.u32 1.1754944e-38, %v5071
        %v5073 = vsel %vm5070, %v5072, %v5068
        %v5074 = vmul.f32 %v5049, %v5073
        %v5075 = vmin.f32 %v5074, 1.0
        %v5076 = vmax.f32 %v5075, -1.0
        %v5077 = vmul.f32 %v3748, %v3748
        %v5078 = vmin.f32 16.0, %v5077
        %v5079 = vmul.f32 %v5078, 2.1237322e-06
        %v5080 = vadd.f32 %v5079, 0.00028619796
        %v5081 = vmul.f32 %v5078, %v5080
        %v5082 = vadd.f32 %v5081, 0.0036580483
        %v5083 = vmul.f32 %v5078, %v5082
        %v5084 = vadd.f32 %v5083, 0.05243302
        %v5085 = vmul.f32 %v5078, %v5084
        %v5086 = vadd.f32 %v5085, 0.18741608
        %v5087 = vmul.f32 %v5078, %v5086
        %v5088 = vadd.f32 %v5087, 1.1283791
        %v5089 = vmul.f32 %v3748, %v5088
        %v5090 = vmul.f32 %v5078, 3.8918573e-05
        %v5091 = vadd.f32 %v5090, 0.001143296
        %v5092 = vmul.f32 %v5078, %v5091
        %v5093 = vadd.f32 %v5092, 0.014752088
        %v5094 = vmul.f32 %v5078, %v5093
        %v5095 = vadd.f32 %v5094, 0.112945676
        %v5096 = vmul.f32 %v5078, %v5095
        %v5097 = vadd.f32 %v5096, 0.4994258
        %v5098 = vmul.f32 %v5078, %v5097
        %v5099 = vadd.f32 %v5098, 1.0
        %v5100 = vrcp.pop %v5099
        %v5101 = vmul.f32 %v5099, %v5100
        %v5102 = vsub.f32 1.0, %v5101
        %v5103 = vmul.f32 %v5100, %v5102
        %v5104 = vadd.f32 %v5100, %v5103
        %vm5105 = vweird.f32 %v5099
        %vm5106 = vweird.f32 %v5100
        %vm5107 = vmor %vm5105, %vm5106
        %v5108 = vsel %vm5107, %v5100, %v5104
        %v5109 = vand.u32 2147483647, %v5099
        %vm5110 = vcmp.eq.f32.partialorder %v5109, 8.507059e+37
        %v5111 = vand.u32 %v5099, 2147483648
        %v5112 = vor.u32 1.1754944e-38, %v5111
        %v5113 = vsel %vm5110, %v5112, %v5108
        %v5114 = vmul.f32 %v5089, %v5113
        %v5115 = vmin.f32 %v5114, 1.0
        %v5116 = vmax.f32 %v5115, -1.0
        %v5117 = vmul.f32 %v3749, %v3749
        %v5118 = vmin.f32 16.0, %v5117
        %v5119 = vmul.f32 %v5118, 2.1237322e-06
        %v5120 = vadd.f32 %v5119, 0.00028619796
        %v5121 = vmul.f32 %v5118, %v5120
        %v5122 = vadd.f32 %v5121, 0.0036580483
        %v5123 = vmul.f32 %v5118, %v5122
        %v5124 = vadd.f32 %v5123, 0.05243302
        %v5125 = vmul.f32 %v5118, %v5124
        %v5126 = vadd.f32 %v5125, 0.18741608
        %v5127 = vmul.f32 %v5118, %v5126
        %v5128 = vadd.f32 %v5127, 1.1283791
        %v5129 = vmul.f32 %v3749, %v5128
        %v5130 = vmul.f32 %v5118, 3.8918573e-05
        %v5131 = vadd.f32 %v5130, 0.001143296
        %v5132 = vmul.f32 %v5118, %v5131
        %v5133 = vadd.f32 %v5132, 0.014752088
        %v5134 = vmul.f32 %v5118, %v5133
        %v5135 = vadd.f32 %v5134, 0.112945676
        %v5136 = vmul.f32 %v5118, %v5135
        %v5137 = vadd.f32 %v5136, 0.4994258
        %v5138 = vmul.f32 %v5118, %v5137
        %v5139 = vadd.f32 %v5138, 1.0
        %v5140 = vrcp.pop %v5139
        %v5141 = vmul.f32 %v5139, %v5140
        %v5142 = vsub.f32 1.0, %v5141
        %v5143 = vmul.f32 %v5140, %v5142
        %v5144 = vadd.f32 %v5140, %v5143
        %vm5145 = vweird.f32 %v5139
        %vm5146 = vweird.f32 %v5140
        %vm5147 = vmor %vm5145, %vm5146
        %v5148 = vsel %vm5147, %v5140, %v5144
        %v5149 = vand.u32 2147483647, %v5139
        %vm5150 = vcmp.eq.f32.partialorder %v5149, 8.507059e+37
        %v5151 = vand.u32 %v5139, 2147483648
        %v5152 = vor.u32 1.1754944e-38, %v5151
        %v5153 = vsel %vm5150, %v5152, %v5148
        %v5154 = vmul.f32 %v5129, %v5153
        %v5155 = vmin.f32 %v5154, 1.0
        %v5156 = vmax.f32 %v5155, -1.0
        %v5157 = vmul.f32 %v3750, %v3750
        %v5158 = vmin.f32 16.0, %v5157
        %v5159 = vmul.f32 %v5158, 2.1237322e-06
        %v5160 = vadd.f32 %v5159, 0.00028619796
        %v5161 = vmul.f32 %v5158, %v5160
        %v5162 = vadd.f32 %v5161, 0.0036580483
        %v5163 = vmul.f32 %v5158, %v5162
        %v5164 = vadd.f32 %v5163, 0.05243302
        %v5165 = vmul.f32 %v5158, %v5164
        %v5166 = vadd.f32 %v5165, 0.18741608
        %v5167 = vmul.f32 %v5158, %v5166
        %v5168 = vadd.f32 %v5167, 1.1283791
        %v5169 = vmul.f32 %v3750, %v5168
        %v5170 = vmul.f32 %v5158, 3.8918573e-05
        %v5171 = vadd.f32 %v5170, 0.001143296
        %v5172 = vmul.f32 %v5158, %v5171
        %v5173 = vadd.f32 %v5172, 0.014752088
        %v5174 = vmul.f32 %v5158, %v5173
        %v5175 = vadd.f32 %v5174, 0.112945676
        %v5176 = vmul.f32 %v5158, %v5175
        %v5177 = vadd.f32 %v5176, 0.4994258
        %v5178 = vmul.f32 %v5158, %v5177
        %v5179 = vadd.f32 %v5178, 1.0
        %v5180 = vrcp.pop %v5179
        %v5181 = vmul.f32 %v5179, %v5180
        %v5182 = vsub.f32 1.0, %v5181
        %v5183 = vmul.f32 %v5180, %v5182
        %v5184 = vadd.f32 %v5180, %v5183
        %vm5185 = vweird.f32 %v5179
        %vm5186 = vweird.f32 %v5180
        %vm5187 = vmor %vm5185, %vm5186
        %v5188 = vsel %vm5187, %v5180, %v5184
        %v5189 = vand.u32 2147483647, %v5179
        %vm5190 = vcmp.eq.f32.partialorder %v5189, 8.507059e+37
        %v5191 = vand.u32 %v5179, 2147483648
        %v5192 = vor.u32 1.1754944e-38, %v5191
        %v5193 = vsel %vm5190, %v5192, %v5188
        %v5194 = vmul.f32 %v5169, %v5193
        %v5195 = vmin.f32 %v5194, 1.0
        %v5196 = vmax.f32 %v5195, -1.0
        %v5197 = vmul.f32 %v3751, %v3751
        %v5198 = vmin.f32 16.0, %v5197
        %v5199 = vmul.f32 %v5198, 2.1237322e-06
        %v5200 = vadd.f32 %v5199, 0.00028619796
        %v5201 = vmul.f32 %v5198, %v5200
        %v5202 = vadd.f32 %v5201, 0.0036580483
        %v5203 = vmul.f32 %v5198, %v5202
        %v5204 = vadd.f32 %v5203, 0.05243302
        %v5205 = vmul.f32 %v5198, %v5204
        %v5206 = vadd.f32 %v5205, 0.18741608
        %v5207 = vmul.f32 %v5198, %v5206
        %v5208 = vadd.f32 %v5207, 1.1283791
        %v5209 = vmul.f32 %v3751, %v5208
        %v5210 = vmul.f32 %v5198, 3.8918573e-05
        %v5211 = vadd.f32 %v5210, 0.001143296
        %v5212 = vmul.f32 %v5198, %v5211
        %v5213 = vadd.f32 %v5212, 0.014752088
        %v5214 = vmul.f32 %v5198, %v5213
        %v5215 = vadd.f32 %v5214, 0.112945676
        %v5216 = vmul.f32 %v5198, %v5215
        %v5217 = vadd.f32 %v5216, 0.4994258
        %v5218 = vmul.f32 %v5198, %v5217
        %v5219 = vadd.f32 %v5218, 1.0
        %v5220 = vrcp.pop %v5219
        %v5221 = vmul.f32 %v5219, %v5220
        %v5222 = vsub.f32 1.0, %v5221
        %v5223 = vmul.f32 %v5220, %v5222
        %v5224 = vadd.f32 %v5220, %v5223
        %vm5225 = vweird.f32 %v5219
        %vm5226 = vweird.f32 %v5220
        %vm5227 = vmor %vm5225, %vm5226
        %v5228 = vsel %vm5227, %v5220, %v5224
        %v5229 = vand.u32 2147483647, %v5219
        %vm5230 = vcmp.eq.f32.partialorder %v5229, 8.507059e+37
        %v5231 = vand.u32 %v5219, 2147483648
        %v5232 = vor.u32 1.1754944e-38, %v5231
        %v5233 = vsel %vm5230, %v5232, %v5228
        %v5234 = vmul.f32 %v5209, %v5233
        %v5235 = vmin.f32 %v5234, 1.0
        %v5236 = vmax.f32 %v5235, -1.0
        %v5237 = vmul.f32 %v3752, %v3752
        %v5238 = vmin.f32 16.0, %v5237
        %v5239 = vmul.f32 %v5238, 2.1237322e-06
        %v5240 = vadd.f32 %v5239, 0.00028619796
        %v5241 = vmul.f32 %v5238, %v5240
        %v5242 = vadd.f32 %v5241, 0.0036580483
        %v5243 = vmul.f32 %v5238, %v5242
        %v5244 = vadd.f32 %v5243, 0.05243302
        %v5245 = vmul.f32 %v5238, %v5244
        %v5246 = vadd.f32 %v5245, 0.18741608
        %v5247 = vmul.f32 %v5238, %v5246
        %v5248 = vadd.f32 %v5247, 1.1283791
        %v5249 = vmul.f32 %v3752, %v5248
        %v5250 = vmul.f32 %v5238, 3.8918573e-05
        %v5251 = vadd.f32 %v5250, 0.001143296
        %v5252 = vmul.f32 %v5238, %v5251
        %v5253 = vadd.f32 %v5252, 0.014752088
        %v5254 = vmul.f32 %v5238, %v5253
        %v5255 = vadd.f32 %v5254, 0.112945676
        %v5256 = vmul.f32 %v5238, %v5255
        %v5257 = vadd.f32 %v5256, 0.4994258
        %v5258 = vmul.f32 %v5238, %v5257
        %v5259 = vadd.f32 %v5258, 1.0
        %v5260 = vrcp.pop %v5259
        %v5261 = vmul.f32 %v5259, %v5260
        %v5262 = vsub.f32 1.0, %v5261
        %v5263 = vmul.f32 %v5260, %v5262
        %v5264 = vadd.f32 %v5260, %v5263
        %vm5265 = vweird.f32 %v5259
        %vm5266 = vweird.f32 %v5260
        %vm5267 = vmor %vm5265, %vm5266
        %v5268 = vsel %vm5267, %v5260, %v5264
        %v5269 = vand.u32 2147483647, %v5259
        %vm5270 = vcmp.eq.f32.partialorder %v5269, 8.507059e+37
        %v5271 = vand.u32 %v5259, 2147483648
        %v5272 = vor.u32 1.1754944e-38, %v5271
        %v5273 = vsel %vm5270, %v5272, %v5268
        %v5274 = vmul.f32 %v5249, %v5273
        %v5275 = vmin.f32 %v5274, 1.0
        %v5276 = vmax.f32 %v5275, -1.0
        %v5277 = vmul.f32 %v3753, %v3753
        %v5278 = vmin.f32 16.0, %v5277
        %v5279 = vmul.f32 %v5278, 2.1237322e-06
        %v5280 = vadd.f32 %v5279, 0.00028619796
        %v5281 = vmul.f32 %v5278, %v5280
        %v5282 = vadd.f32 %v5281, 0.0036580483
        %v5283 = vmul.f32 %v5278, %v5282
        %v5284 = vadd.f32 %v5283, 0.05243302
        %v5285 = vmul.f32 %v5278, %v5284
        %v5286 = vadd.f32 %v5285, 0.18741608
        %v5287 = vmul.f32 %v5278, %v5286
        %v5288 = vadd.f32 %v5287, 1.1283791
        %v5289 = vmul.f32 %v3753, %v5288
        %v5290 = vmul.f32 %v5278, 3.8918573e-05
        %v5291 = vadd.f32 %v5290, 0.001143296
        %v5292 = vmul.f32 %v5278, %v5291
        %v5293 = vadd.f32 %v5292, 0.014752088
        %v5294 = vmul.f32 %v5278, %v5293
        %v5295 = vadd.f32 %v5294, 0.112945676
        %v5296 = vmul.f32 %v5278, %v5295
        %v5297 = vadd.f32 %v5296, 0.4994258
        %v5298 = vmul.f32 %v5278, %v5297
        %v5299 = vadd.f32 %v5298, 1.0
        %v5300 = vrcp.pop %v5299
        %v5301 = vmul.f32 %v5299, %v5300
        %v5302 = vsub.f32 1.0, %v5301
        %v5303 = vmul.f32 %v5300, %v5302
        %v5304 = vadd.f32 %v5300, %v5303
        %vm5305 = vweird.f32 %v5299
        %vm5306 = vweird.f32 %v5300
        %vm5307 = vmor %vm5305, %vm5306
        %v5308 = vsel %vm5307, %v5300, %v5304
        %v5309 = vand.u32 2147483647, %v5299
        %vm5310 = vcmp.eq.f32.partialorder %v5309, 8.507059e+37
        %v5311 = vand.u32 %v5299, 2147483648
        %v5312 = vor.u32 1.1754944e-38, %v5311
        %v5313 = vsel %vm5310, %v5312, %v5308
        %v5314 = vmul.f32 %v5289, %v5313
        %v5315 = vmin.f32 %v5314, 1.0
        %v5316 = vmax.f32 %v5315, -1.0
        %v5317 = vmul.f32 %v3754, %v3754
        %v5318 = vmin.f32 16.0, %v5317
        %v5319 = vmul.f32 %v5318, 2.1237322e-06
        %v5320 = vadd.f32 %v5319, 0.00028619796
        %v5321 = vmul.f32 %v5318, %v5320
        %v5322 = vadd.f32 %v5321, 0.0036580483
        %v5323 = vmul.f32 %v5318, %v5322
        %v5324 = vadd.f32 %v5323, 0.05243302
        %v5325 = vmul.f32 %v5318, %v5324
        %v5326 = vadd.f32 %v5325, 0.18741608
        %v5327 = vmul.f32 %v5318, %v5326
        %v5328 = vadd.f32 %v5327, 1.1283791
        %v5329 = vmul.f32 %v3754, %v5328
        %v5330 = vmul.f32 %v5318, 3.8918573e-05
        %v5331 = vadd.f32 %v5330, 0.001143296
        %v5332 = vmul.f32 %v5318, %v5331
        %v5333 = vadd.f32 %v5332, 0.014752088
        %v5334 = vmul.f32 %v5318, %v5333
        %v5335 = vadd.f32 %v5334, 0.112945676
        %v5336 = vmul.f32 %v5318, %v5335
        %v5337 = vadd.f32 %v5336, 0.4994258
        %v5338 = vmul.f32 %v5318, %v5337
        %v5339 = vadd.f32 %v5338, 1.0
        %v5340 = vrcp.pop %v5339
        %v5341 = vmul.f32 %v5339, %v5340
        %v5342 = vsub.f32 1.0, %v5341
        %v5343 = vmul.f32 %v5340, %v5342
        %v5344 = vadd.f32 %v5340, %v5343
        %vm5345 = vweird.f32 %v5339
        %vm5346 = vweird.f32 %v5340
        %vm5347 = vmor %vm5345, %vm5346
        %v5348 = vsel %vm5347, %v5340, %v5344
        %v5349 = vand.u32 2147483647, %v5339
        %vm5350 = vcmp.eq.f32.partialorder %v5349, 8.507059e+37
        %v5351 = vand.u32 %v5339, 2147483648
        %v5352 = vor.u32 1.1754944e-38, %v5351
        %v5353 = vsel %vm5350, %v5352, %v5348
        %v5354 = vmul.f32 %v5329, %v5353
        %v5355 = vmin.f32 %v5354, 1.0
        %v5356 = vmax.f32 %v5355, -1.0
        %v5357 = vmul.f32 %v3755, %v3755
        %v5358 = vmin.f32 16.0, %v5357
        %v5359 = vmul.f32 %v5358, 2.1237322e-06
        %v5360 = vadd.f32 %v5359, 0.00028619796
        %v5361 = vmul.f32 %v5358, %v5360
        %v5362 = vadd.f32 %v5361, 0.0036580483
        %v5363 = vmul.f32 %v5358, %v5362
        %v5364 = vadd.f32 %v5363, 0.05243302
        %v5365 = vmul.f32 %v5358, %v5364
        %v5366 = vadd.f32 %v5365, 0.18741608
        %v5367 = vmul.f32 %v5358, %v5366
        %v5368 = vadd.f32 %v5367, 1.1283791
        %v5369 = vmul.f32 %v3755, %v5368
        %v5370 = vmul.f32 %v5358, 3.8918573e-05
        %v5371 = vadd.f32 %v5370, 0.001143296
        %v5372 = vmul.f32 %v5358, %v5371
        %v5373 = vadd.f32 %v5372, 0.014752088
        %v5374 = vmul.f32 %v5358, %v5373
        %v5375 = vadd.f32 %v5374, 0.112945676
        %v5376 = vmul.f32 %v5358, %v5375
        %v5377 = vadd.f32 %v5376, 0.4994258
        %v5378 = vmul.f32 %v5358, %v5377
        %v5379 = vadd.f32 %v5378, 1.0
        %v5380 = vrcp.pop %v5379
        %v5381 = vmul.f32 %v5379, %v5380
        %v5382 = vsub.f32 1.0, %v5381
        %v5383 = vmul.f32 %v5380, %v5382
        %v5384 = vadd.f32 %v5380, %v5383
        %vm5385 = vweird.f32 %v5379
        %vm5386 = vweird.f32 %v5380
        %vm5387 = vmor %vm5385, %vm5386
        %v5388 = vsel %vm5387, %v5380, %v5384
        %v5389 = vand.u32 2147483647, %v5379
        %vm5390 = vcmp.eq.f32.partialorder %v5389, 8.507059e+37
        %v5391 = vand.u32 %v5379, 2147483648
        %v5392 = vor.u32 1.1754944e-38, %v5391
        %v5393 = vsel %vm5390, %v5392, %v5388
        %v5394 = vmul.f32 %v5369, %v5393
        %v5395 = vmin.f32 %v5394, 1.0
        %v5396 = vmax.f32 %v5395, -1.0
        %v5397 = vmul.f32 %v3756, %v3756
        %v5398 = vmin.f32 16.0, %v5397
        %v5399 = vmul.f32 %v5398, 2.1237322e-06
        %v5400 = vadd.f32 %v5399, 0.00028619796
        %v5401 = vmul.f32 %v5398, %v5400
        %v5402 = vadd.f32 %v5401, 0.0036580483
        %v5403 = vmul.f32 %v5398, %v5402
        %v5404 = vadd.f32 %v5403, 0.05243302
        %v5405 = vmul.f32 %v5398, %v5404
        %v5406 = vadd.f32 %v5405, 0.18741608
        %v5407 = vmul.f32 %v5398, %v5406
        %v5408 = vadd.f32 %v5407, 1.1283791
        %v5409 = vmul.f32 %v3756, %v5408
        %v5410 = vmul.f32 %v5398, 3.8918573e-05
        %v5411 = vadd.f32 %v5410, 0.001143296
        %v5412 = vmul.f32 %v5398, %v5411
        %v5413 = vadd.f32 %v5412, 0.014752088
        %v5414 = vmul.f32 %v5398, %v5413
        %v5415 = vadd.f32 %v5414, 0.112945676
        %v5416 = vmul.f32 %v5398, %v5415
        %v5417 = vadd.f32 %v5416, 0.4994258
        %v5418 = vmul.f32 %v5398, %v5417
        %v5419 = vadd.f32 %v5418, 1.0
        %v5420 = vrcp.pop %v5419
        %v5421 = vmul.f32 %v5419, %v5420
        %v5422 = vsub.f32 1.0, %v5421
        %v5423 = vmul.f32 %v5420, %v5422
        %v5424 = vadd.f32 %v5420, %v5423
        %vm5425 = vweird.f32 %v5419
        %vm5426 = vweird.f32 %v5420
        %vm5427 = vmor %vm5425, %vm5426
        %v5428 = vsel %vm5427, %v5420, %v5424
        %v5429 = vand.u32 2147483647, %v5419
        %vm5430 = vcmp.eq.f32.partialorder %v5429, 8.507059e+37
        %v5431 = vand.u32 %v5419, 2147483648
        %v5432 = vor.u32 1.1754944e-38, %v5431
        %v5433 = vsel %vm5430, %v5432, %v5428
        %v5434 = vmul.f32 %v5409, %v5433
        %v5435 = vmin.f32 %v5434, 1.0
        %v5436 = vmax.f32 %v5435, -1.0
        %v5437 = vadd.f32 %v3796, 1.0
        %v5438 = vadd.f32 %v3836, 1.0
        %v5439 = vadd.f32 %v3876, 1.0
        %v5440 = vadd.f32 %v3916, 1.0
        %v5441 = vadd.f32 %v3956, 1.0
        %v5442 = vadd.f32 %v3996, 1.0
        %v5443 = vadd.f32 %v4036, 1.0
        %v5444 = vadd.f32 %v4076, 1.0
        %v5445 = vadd.f32 %v4116, 1.0
        %v5446 = vadd.f32 %v4156, 1.0
        %v5447 = vadd.f32 %v4196, 1.0
        %v5448 = vadd.f32 %v4236, 1.0
        %v5449 = vadd.f32 %v4276, 1.0
        %v5450 = vadd.f32 %v4316, 1.0
        %v5451 = vadd.f32 %v4356, 1.0
        %v5452 = vadd.f32 %v4396, 1.0
        %v5453 = vadd.f32 %v4436, 1.0
        %v5454 = vadd.f32 %v4476, 1.0
        %v5455 = vadd.f32 %v4516, 1.0
        %v5456 = vadd.f32 %v4556, 1.0
        %v5457 = vadd.f32 %v4596, 1.0
        %v5458 = vadd.f32 %v4636, 1.0
        %v5459 = vadd.f32 %v4676, 1.0
        %v5460 = vadd.f32 %v4716, 1.0
        %v5461 = vadd.f32 %v4756, 1.0
        %v5462 = vadd.f32 %v4796, 1.0
        %v5463 = vadd.f32 %v4836, 1.0
        %v5464 = vadd.f32 %v4876, 1.0
        %v5465 = vadd.f32 %v4916, 1.0
        %v5466 = vadd.f32 %v4956, 1.0
        %v5467 = vadd.f32 %v4996, 1.0
        %v5468 = vadd.f32 %v5036, 1.0
        %v5469 = vadd.f32 %v5076, 1.0
        %v5470 = vadd.f32 %v5116, 1.0
        %v5471 = vadd.f32 %v5156, 1.0
        %v5472 = vadd.f32 %v5196, 1.0
        %v5473 = vadd.f32 %v5236, 1.0
        %v5474 = vadd.f32 %v5276, 1.0
        %v5475 = vadd.f32 %v5316, 1.0
        %v5476 = vadd.f32 %v5356, 1.0
        %v5477 = vadd.f32 %v5396, 1.0
        %v5478 = vadd.f32 %v5436, 1.0
        %v5479 = vmul.f32 %v3673, %v5437
        %v5480 = vmul.f32 %v3674, %v5438
        %v5481 = vmul.f32 %v3675, %v5439
        %v5482 = vmul.f32 %v3676, %v5440
        %v5483 = vmul.f32 %v3677, %v5441
        %v5484 = vmul.f32 %v3678, %v5442
        %v5485 = vmul.f32 %v3679, %v5443
        %v5486 = vmul.f32 %v3680, %v5444
        %v5487 = vmul.f32 %v3681, %v5445
        %v5488 = vmul.f32 %v3682, %v5446
        %v5489 = vmul.f32 %v3683, %v5447
        %v5490 = vmul.f32 %v3684, %v5448
        %v5491 = vmul.f32 %v3685, %v5449
        %v5492 = vmul.f32 %v3686, %v5450
        %v5493 = vmul.f32 %v3687, %v5451
        %v5494 = vmul.f32 %v3688, %v5452
        %v5495 = vmul.f32 %v3689, %v5453
        %v5496 = vmul.f32 %v3690, %v5454
        %v5497 = vmul.f32 %v3691, %v5455
        %v5498 = vmul.f32 %v3692, %v5456
        %v5499 = vmul.f32 %v3693, %v5457
        %v5500 = vmul.f32 %v3694, %v5458
        %v5501 = vmul.f32 %v3695, %v5459
        %v5502 = vmul.f32 %v3696, %v5460
        %v5503 = vmul.f32 %v3697, %v5461
        %v5504 = vmul.f32 %v3698, %v5462
        %v5505 = vmul.f32 %v3699, %v5463
        %v5506 = vmul.f32 %v3700, %v5464
        %v5507 = vmul.f32 %v3701, %v5465
        %v5508 = vmul.f32 %v3702, %v5466
        %v5509 = vmul.f32 %v3703, %v5467
        %v5510 = vmul.f32 %v3704, %v5468
        %v5511 = vmul.f32 %v3705, %v5469
        %v5512 = vmul.f32 %v3706, %v5470
        %v5513 = vmul.f32 %v3707, %v5471
        %v5514 = vmul.f32 %v3708, %v5472
        %v5515 = vmul.f32 %v3709, %v5473
        %v5516 = vmul.f32 %v3710, %v5474
        %v5517 = vmul.f32 %v3711, %v5475
        %v5518 = vmul.f32 %v3712, %v5476
        %v5519 = vmul.f32 %v3713, %v5477
        %v5520 = vmul.f32 %v3714, %v5478
        %5521 = vst [vmem:[%s280] sm:$0xff] %v5479
        %5522 = vst [vmem:[%s280 + $0x8] sm:$0xff] %v5480
        %5523 = vst [vmem:[%s280 + $0x10] sm:$0xff] %v5481
        %5524 = vst [vmem:[%s280 + $0x18] sm:$0xff] %v5482
        %5525 = vst [vmem:[%s280 + $0x20] sm:$0xff] %v5483
        %5526 = vst [vmem:[%s280 + $0x28] sm:$0xff] %v5484
        %5527 = vst [vmem:[%s280 + $0x30] sm:$0xff] %v5485
        %5528 = vst [vmem:[%s280 + $0x38] sm:$0xff] %v5486
        %5529 = vst [vmem:[%s280 + $0x40] sm:$0xff] %v5487
        %5530 = vst [vmem:[%s280 + $0x48] sm:$0xff] %v5488
        %5531 = vst [vmem:[%s280 + $0x50] sm:$0xff] %v5489
        %5532 = vst [vmem:[%s280 + $0x58] sm:$0xff] %v5490
        %5533 = vst [vmem:[%s280 + $0x60] sm:$0xff] %v5491
        %5534 = vst [vmem:[%s280 + $0x68] sm:$0xff] %v5492
        %5535 = vst [vmem:[%s280 + $0x70] sm:$0xff] %v5493
        %5536 = vst [vmem:[%s280 + $0x78] sm:$0xff] %v5494
        %5537 = vst [vmem:[%s280 + $0x80] sm:$0xff] %v5495
        %5538 = vst [vmem:[%s280 + $0x88] sm:$0xff] %v5496
        %5539 = vst [vmem:[%s280 + $0x90] sm:$0xff] %v5497
        %5540 = vst [vmem:[%s280 + $0x98] sm:$0xff] %v5498
        %5541 = vst [vmem:[%s280 + $0xa0] sm:$0xff] %v5499
        %5542 = vst [vmem:[%s280 + $0xa8] sm:$0xff] %v5500
        %5543 = vst [vmem:[%s280 + $0xb0] sm:$0xff] %v5501
        %5544 = vst [vmem:[%s280 + $0xb8] sm:$0xff] %v5502
        %5545 = vst [vmem:[%s280 + $0xc0] sm:$0xff] %v5503
        %5546 = vst [vmem:[%s280 + $0xc8] sm:$0xff] %v5504
        %5547 = vst [vmem:[%s280 + $0xd0] sm:$0xff] %v5505
        %5548 = vst [vmem:[%s280 + $0xd8] sm:$0xff] %v5506
        %5549 = vst [vmem:[%s280 + $0xe0] sm:$0xff] %v5507
        %5550 = vst [vmem:[%s280 + $0xe8] sm:$0xff] %v5508
        %5551 = vst [vmem:[%s280 + $0xf0] sm:$0xff] %v5509
        %5552 = vst [vmem:[%s280 + $0xf8] sm:$0xff] %v5510
        %5553 = vst [vmem:[%s280 + $0x100] sm:$0xff] %v5511
        %5554 = vst [vmem:[%s280 + $0x108] sm:$0xff] %v5512
        %5555 = vst [vmem:[%s280 + $0x110] sm:$0xff] %v5513
        %5556 = vst [vmem:[%s280 + $0x118] sm:$0xff] %v5514
        %5557 = vst [vmem:[%s280 + $0x120] sm:$0xff] %v5515
        %5558 = vst [vmem:[%s280 + $0x128] sm:$0xff] %v5516
        %5559 = vst [vmem:[%s280 + $0x130] sm:$0xff] %v5517
        %5560 = vst [vmem:[%s280 + $0x138] sm:$0xff] %v5518
        %5561 = vst [vmem:[%s280 + $0x140] sm:$0xff] %v5519
        %5562 = vst [vmem:[%s280 + $0x148] sm:$0xff] %v5520
        %s5563 = sand.u32 %s147, 1
        %s5564 = sand.u32 %s147, 1
        %s5565 = smul.addr %s5564, 336
        %s5566 = scalar_lea.vmem [#allocation7], %s5565
        // Predicated region
        $region49: #{fused_forward.1} parent=35 // pred_check
          %p5567 = pneg %p157
        $region50: #{fused_forward.1} parent=35 // pred_check_branch
          %5569 = sbr.rel (%p5567) target = $region52
        $region51: #{fused_forward.1} parent=35 // pred_region
          %s5570 = smul.u32 %s25, 2
          %s5571 = sadd.s32 %s5570, %s26
          %s5572 = smul.u32 6, %s5571
          %s5573 = smul.addr %s5572, 8
          %s5574 = scalar_lea.vmem %s4, %s5573
          // Predicated region
          $region53: #{fused_forward.1} parent=51 // pred_check
            _
          $region54: #{fused_forward.1} parent=51 // pred_check_branch
            %5576 = sbr.rel (0) target = $region56
          $region55: #{fused_forward.1} parent=51 // pred_region
            // Predicated region
            $region57: #{fused_forward.1} parent=55 // pred_check
              _
            $region58: #{fused_forward.1} parent=55 // pred_check_branch
              %5578 = sbr.rel (0) target = $region60
            $region59: #{fused_forward.1} parent=55 // pred_region
              loop: start=0, step=1, limit=1
              $region61: #{fused_forward.1} parent=59 // loop_pre_header
                _
              $region62: #{fused_forward.1} parent=59 // loop_header
                %s5580 = sphi 0, %s5584
                %p5581 = scmp.ge.s32.totalorder %s5580, 1
                %s5585 = sphi %s5566, %s5566
                %s5586 = sphi %s5574, %s5574
              $region63: #{fused_forward.1} parent=59 // loop_header_branch
                %5583 = sbr.rel (%p5581) target = $region67
              $region64: #{fused_forward.1} parent=59 // loop_body
                %v5587 = vld [vmem:[%s5585] sm:$0xff]
                %5588 = vst [vmem:[%s5586] sm:$0xff] %v5587
                %v5589 = vld [vmem:[%s5585 + $0x8] sm:$0xff]
                %5590 = vst [vmem:[%s5586 + $0x8] sm:$0xff] %v5589
                %v5591 = vld [vmem:[%s5585 + $0x10] sm:$0xff]
                %5592 = vst [vmem:[%s5586 + $0x10] sm:$0xff] %v5591
                %v5593 = vld [vmem:[%s5585 + $0x18] sm:$0xff]
                %5594 = vst [vmem:[%s5586 + $0x18] sm:$0xff] %v5593
                %v5595 = vld [vmem:[%s5585 + $0x20] sm:$0xff]
                %5596 = vst [vmem:[%s5586 + $0x20] sm:$0xff] %v5595
                %v5597 = vld [vmem:[%s5585 + $0x28] sm:$0xff]
                %5598 = vst [vmem:[%s5586 + $0x28] sm:$0xff] %v5597
                %v5599 = vld [vmem:[%s5585 + $0x30] sm:$0xff]
                %5600 = vst [vmem:[%s5586 + $0xc0] sm:$0xff] %v5599
                %v5601 = vld [vmem:[%s5585 + $0x38] sm:$0xff]
                %5602 = vst [vmem:[%s5586 + $0xc8] sm:$0xff] %v5601
                %v5603 = vld [vmem:[%s5585 + $0x40] sm:$0xff]
                %5604 = vst [vmem:[%s5586 + $0xd0] sm:$0xff] %v5603
                %v5605 = vld [vmem:[%s5585 + $0x48] sm:$0xff]
                %5606 = vst [vmem:[%s5586 + $0xd8] sm:$0xff] %v5605
                %v5607 = vld [vmem:[%s5585 + $0x50] sm:$0xff]
                %5608 = vst [vmem:[%s5586 + $0xe0] sm:$0xff] %v5607
                %v5609 = vld [vmem:[%s5585 + $0x58] sm:$0xff]
                %5610 = vst [vmem:[%s5586 + $0xe8] sm:$0xff] %v5609
                %v5611 = vld [vmem:[%s5585 + $0x60] sm:$0xff]
                %5612 = vst [vmem:[%s5586 + $0x180] sm:$0xff] %v5611
                %v5613 = vld [vmem:[%s5585 + $0x68] sm:$0xff]
                %5614 = vst [vmem:[%s5586 + $0x188] sm:$0xff] %v5613
                %v5615 = vld [vmem:[%s5585 + $0x70] sm:$0xff]
                %5616 = vst [vmem:[%s5586 + $0x190] sm:$0xff] %v5615
                %v5617 = vld [vmem:[%s5585 + $0x78] sm:$0xff]
                %5618 = vst [vmem:[%s5586 + $0x198] sm:$0xff] %v5617
                %v5619 = vld [vmem:[%s5585 + $0x80] sm:$0xff]
                %5620 = vst [vmem:[%s5586 + $0x1a0] sm:$0xff] %v5619
                %v5621 = vld [vmem:[%s5585 + $0x88] sm:$0xff]
                %5622 = vst [vmem:[%s5586 + $0x1a8] sm:$0xff] %v5621
                %v5623 = vld [vmem:[%s5585 + $0x90] sm:$0xff]
                %5624 = vst [vmem:[%s5586 + $0x240] sm:$0xff] %v5623
                %v5625 = vld [vmem:[%s5585 + $0x98] sm:$0xff]
                %5626 = vst [vmem:[%s5586 + $0x248] sm:$0xff] %v5625
                %v5627 = vld [vmem:[%s5585 + $0xa0] sm:$0xff]
                %5628 = vst [vmem:[%s5586 + $0x250] sm:$0xff] %v5627
                %v5629 = vld [vmem:[%s5585 + $0xa8] sm:$0xff]
                %5630 = vst [vmem:[%s5586 + $0x258] sm:$0xff] %v5629
                %v5631 = vld [vmem:[%s5585 + $0xb0] sm:$0xff]
                %5632 = vst [vmem:[%s5586 + $0x260] sm:$0xff] %v5631
                %v5633 = vld [vmem:[%s5585 + $0xb8] sm:$0xff]
                %5634 = vst [vmem:[%s5586 + $0x268] sm:$0xff] %v5633
                %v5635 = vld [vmem:[%s5585 + $0xc0] sm:$0xff]
                %5636 = vst [vmem:[%s5586 + $0x300] sm:$0xff] %v5635
                %v5637 = vld [vmem:[%s5585 + $0xc8] sm:$0xff]
                %5638 = vst [vmem:[%s5586 + $0x308] sm:$0xff] %v5637
                %v5639 = vld [vmem:[%s5585 + $0xd0] sm:$0xff]
                %5640 = vst [vmem:[%s5586 + $0x310] sm:$0xff] %v5639
                %v5641 = vld [vmem:[%s5585 + $0xd8] sm:$0xff]
                %5642 = vst [vmem:[%s5586 + $0x318] sm:$0xff] %v5641
                %v5643 = vld [vmem:[%s5585 + $0xe0] sm:$0xff]
                %5644 = vst [vmem:[%s5586 + $0x320] sm:$0xff] %v5643
                %v5645 = vld [vmem:[%s5585 + $0xe8] sm:$0xff]
                %5646 = vst [vmem:[%s5586 + $0x328] sm:$0xff] %v5645
                %v5647 = vld [vmem:[%s5585 + $0xf0] sm:$0xff]
                %5648 = vst [vmem:[%s5586 + $0x3c0] sm:$0xff] %v5647
                %v5649 = vld [vmem:[%s5585 + $0xf8] sm:$0xff]
                %5650 = vst [vmem:[%s5586 + $0x3c8] sm:$0xff] %v5649
                %v5651 = vld [vmem:[%s5585 + $0x100] sm:$0xff]
                %5652 = vst [vmem:[%s5586 + $0x3d0] sm:$0xff] %v5651
                %v5653 = vld [vmem:[%s5585 + $0x108] sm:$0xff]
                %5654 = vst [vmem:[%s5586 + $0x3d8] sm:$0xff] %v5653
                %v5655 = vld [vmem:[%s5585 + $0x110] sm:$0xff]
                %5656 = vst [vmem:[%s5586 + $0x3e0] sm:$0xff] %v5655
                %v5657 = vld [vmem:[%s5585 + $0x118] sm:$0xff]
                %5658 = vst [vmem:[%s5586 + $0x3e8] sm:$0xff] %v5657
                %v5659 = vld [vmem:[%s5585 + $0x120] sm:$0xff]
                %5660 = vst [vmem:[%s5586 + $0x480] sm:$0xff] %v5659
                %v5661 = vld [vmem:[%s5585 + $0x128] sm:$0xff]
                %5662 = vst [vmem:[%s5586 + $0x488] sm:$0xff] %v5661
                %v5663 = vld [vmem:[%s5585 + $0x130] sm:$0xff]
                %5664 = vst [vmem:[%s5586 + $0x490] sm:$0xff] %v5663
                %v5665 = vld [vmem:[%s5585 + $0x138] sm:$0xff]
                %5666 = vst [vmem:[%s5586 + $0x498] sm:$0xff] %v5665
                %v5667 = vld [vmem:[%s5585 + $0x140] sm:$0xff]
                %5668 = vst [vmem:[%s5586 + $0x4a0] sm:$0xff] %v5667
                %v5669 = vld [vmem:[%s5585 + $0x148] sm:$0xff]
                %5670 = vst [vmem:[%s5586 + $0x4a8] sm:$0xff] %v5669
              $region65: #{fused_forward.1} parent=59 // loop_footer
                %s5584 = sadd.s32 1, %s5580
              $region66: #{fused_forward.1} parent=59 // loop_footer_branch
                %5579 = sbr.rel target = $region62
              $region67: #{fused_forward.1} parent=59 // loop_exit
                _
            $region60: #{fused_forward.1} parent=55 // pred_fallthru
              _
            // Predicated region
            $region68: #{fused_forward.1} parent=55 // pred_check
              _
            $region69: #{fused_forward.1} parent=55 // pred_check_branch
              %5672 = sbr.rel target = $region71
            $region70: #{fused_forward.1} parent=55 // pred_region
              _
            $region71: #{fused_forward.1} parent=55 // pred_fallthru
              _
          $region56: #{fused_forward.1} parent=51 // pred_fallthru
            _
          %5673 = vnop
        $region52: #{fused_forward.1} parent=35 // pred_fallthru
          _
      $region36: #{fused_forward.1} parent=5 // pred_fallthru
        _
      %p5674 = scmp.le.s32.totalorder 2, %s16
      // Predicated region
      $region72: #{fused_forward.1} parent=5 // pred_check
        %p5675 = pneg %p5674
      $region73: #{fused_forward.1} parent=5 // pred_check_branch
        %5677 = sbr.rel (%p5675) target = $region75
      $region74: #{fused_forward.1} parent=5 // pred_region
        %s5678 = ssub.s32 %s16, 2
        // Predicated region
        $region76: #{fused_forward.1} parent=74 // pred_check
          %p5679 = pneg %p163
        $region77: #{fused_forward.1} parent=74 // pred_check_branch
          %5681 = sbr.rel (%p5679) target = $region79
        $region78: #{fused_forward.1} parent=74 // pred_region
          %s5682 = sand.u32 %s148, 1
          %s5683 = sand.u32 %s148, 1
          %s5684 = smul.addr %s5683, 336
          %s5685 = scalar_lea.vmem [#allocation7], %s5684
        $region79: #{fused_forward.1} parent=74 // pred_fallthru
          _
      $region75: #{fused_forward.1} parent=5 // pred_fallthru
        _
    $region6: #{fused_forward.1} parent=1 // loop_footer
      %s20 = sadd.s32 1, %s16
    $region7: #{fused_forward.1} parent=1 // loop_footer_branch
      %15 = sbr.rel target = $region3
    $region8: #{fused_forward.1} parent=1 // loop_exit
      _
    %5686 = vsyncpa [#allocation4], 1
    %s5687 = scalar_lea.sflag [#allocation4], 1
    %5688 = vsyncpa %s5687, 1
    %5689 = vsyncpa [#allocation6], 1
    %s5690 = scalar_lea.sflag [#allocation6], 1
    %5691 = vsyncpa %s5690, 1

</llo_original>
